<compile_context>
chip_gen: v7x
topology: tpu7x:2x2x1
jax: 0.10.0
libtpu: 0.0.40
codegen_flags: <defaults>
</compile_context>

<pallas_src>
import jax
import jax.numpy as jnp
from jax.experimental import pallas as pl
from jax.experimental.pallas import tpu as pltpu

# ---- small, module-consistent config ----
NUM_TOKENS = 128   # vocab (lane-dense multiple of 128)
EMB_DIM    = 32
HIDDEN     = 32
NUM_LAYERS = 3
BATCH      = 2
SEQ        = 8     # caption length; LSTM sequence length = SEQ + 1
BATCH_PAD  = 8     # pad batch to a full sublane group


def _make_lstm_kernel(num_layers, hidden, emb_dim, seq_len, batch_pad, batch):
    """Whole forward pass (gather + LSTM + classifier) in one invocation."""
    L, H, E, T, Bp, B = num_layers, hidden, emb_dim, seq_len, batch_pad, batch

    def kernel(cap_ref, img_ref, emb_ref, w_ih_ref, w_hh_ref, b_ref,
               wc_ref, bc_ref, out_ref, x_ref, xw0_ref, htop_ref):
        # cap_ref  : (B, T-1)   int32 captions, SMEM
        # img_ref  : (B, E)     image embedding
        # emb_ref  : (V, E)     embedding table (resident in VMEM, 16 KiB)
        # w_ih_ref : (L, E, 4H) input->gates weights, transposed
        # w_hh_ref : (L, H, 4H) hidden->gates weights, transposed
        # b_ref    : (L, 1, 4H) b_ih + b_hh per layer
        # wc_ref   : (H, V)     classifier weight (transposed)
        # bc_ref   : (1, V)
        # out_ref  : (T*Bp, V)  time-major logits (batch-padded)
        # x_ref    : (T*Bp, E)  scratch: assembled LSTM input
        # xw0_ref  : (T*Bp, 4H) scratch: hoisted layer-0 projection (+bias)
        # htop_ref : (T*Bp, H)  scratch: top-layer hidden states

        # ---- in-kernel input assembly (replaces wrapper gather/cat/pad) ----
        x_ref[...] = jnp.zeros_like(x_ref)          # deterministic padded rows
        x_ref[0:B, :] = img_ref[...]                # t = 0 rows: image embedding
        for t in range(1, T):                       # t >= 1: token embeddings
            for b in range(B):
                idx = cap_ref[b, t - 1]             # scalar from SMEM
                x_ref[pl.ds(t * Bp + b, 1), :] = emb_ref[pl.ds(idx, 1), :]

        # ---- hoisted layer-0 input projection (bias folded in) ----
        xw0_ref[...] = (jnp.dot(x_ref[...], w_ih_ref[0],
                                preferred_element_type=jnp.float32)
                        + b_ref[0])                 # (T*Bp, 4H)

        # ---- hoist loop-invariant weight loads / bias broadcasts ----
        w_hh = [w_hh_ref[l] for l in range(L)]                       # (H, 4H)
        w_ih = [None] + [w_ih_ref[l] for l in range(1, L)]           # (H, 4H)
        b_bc = [None] + [jnp.broadcast_to(b_ref[l], (Bp, 4 * H))
                         for l in range(1, L)]                       # (Bp, 4H)

        # ---- wavefront recurrence over diagonals d = t + l ----
        zeros = jnp.zeros((Bp, H), jnp.float32)
        h = [zeros] * L
        c = [zeros] * L
        for d in range(T + L - 1):
            new_h = list(h)
            new_c = list(c)
            for l in range(L):                      # layers on this diagonal
                t = d - l
                if not (0 <= t < T):
                    continue
                # all reads use the previous diagonal's state -> the (up to)
                # three per-diagonal chains are independent and overlap.
                if l == 0:
                    g_in = xw0_ref[pl.ds(t * Bp, Bp), :]
                else:
                    g_in = (jnp.dot(h[l - 1], w_ih[l],
                                    preferred_element_type=jnp.float32)
                            + b_bc[l])
                gates = g_in + jnp.dot(h[l], w_hh[l],
                                       preferred_element_type=jnp.float32)
                sg = jax.nn.sigmoid(gates)          # one full-vreg EUP pass
                tg = jnp.tanh(gates)                # one full-vreg EUP pass
                i_g = sg[:, 0 * H:1 * H]
                f_g = sg[:, 1 * H:2 * H]
                g_g = tg[:, 2 * H:3 * H]
                o_g = sg[:, 3 * H:4 * H]
                c_n = f_g * c[l] + i_g * g_g
                h_n = o_g * jnp.tanh(c_n)
                new_h[l] = h_n
                new_c[l] = c_n
                if l == L - 1:
                    htop_ref[pl.ds(t * Bp, Bp), :] = h_n
            h, c = new_h, new_c

        # ---- deferred classifier: one matmul, one dense lane-aligned store ----
        out_ref[...] = (jnp.dot(htop_ref[...], wc_ref[...],
                                preferred_element_type=jnp.float32)
                        + bc_ref[...])

    return kernel


def _lstm_decoder_forward(image_emb, captions, params):
    """Pallas implementation of LSTMDecoder.forward (lengths=None path)."""
    B, seq = captions.shape
    T = seq + 1
    H, L, V, E, Bp = HIDDEN, NUM_LAYERS, NUM_TOKENS, EMB_DIM, BATCH_PAD
    assert E == H, "stacked per-layer weights require emb_dim == hidden_size"
    assert B <= Bp

    # stacked per-layer LSTM weights (transposed for right-multiplication)
    w_ih_all = jnp.stack([params[f"w_ih_{l}"].T for l in range(L)],
                         axis=0).astype(jnp.float32)           # (L, E, 4H)
    w_hh_all = jnp.stack([params[f"w_hh_{l}"].T for l in range(L)],
                         axis=0).astype(jnp.float32)           # (L, H, 4H)
    b_all = jnp.stack([(params[f"b_ih_{l}"] + params[f"b_hh_{l}"])[None, :]
                       for l in range(L)], axis=0).astype(jnp.float32)  # (L,1,4H)
    wc_t = params["w_cls"].T.astype(jnp.float32)               # (H, V)
    bc = params["b_cls"][None, :].astype(jnp.float32)          # (1, V)
    emb_w = params["embedding"].astype(jnp.float32)            # (V, E)

    out_flat = pl.pallas_call(
        _make_lstm_kernel(L, H, E, T, Bp, B),
        out_shape=jax.ShapeDtypeStruct((T * Bp, V), jnp.float32),
        in_specs=[pl.BlockSpec(memory_space=pltpu.MemorySpace.SMEM)]
                 + [pl.BlockSpec(memory_space=pltpu.MemorySpace.VMEM)] * 7,
        out_specs=pl.BlockSpec(memory_space=pltpu.MemorySpace.VMEM),
        scratch_shapes=[
            pltpu.VMEM((T * Bp, E), jnp.float32),       # assembled x
            pltpu.VMEM((T * Bp, 4 * H), jnp.float32),   # hoisted layer-0 proj
            pltpu.VMEM((T * Bp, H), jnp.float32),       # top-layer hidden
        ],
    )(captions.astype(jnp.int32), image_emb.astype(jnp.float32), emb_w,
      w_ih_all, w_hh_all, b_all, wc_t, bc)

    out = out_flat.reshape(T, Bp, V)[:, :B, :]        # drop batch padding
    return jnp.transpose(out, (1, 0, 2))              # (B, T+1, V) batch-first


# jit the whole wrapper so the (tiny) remaining pre/post layout ops fuse with
# the pallas custom call instead of dispatching as separate XLA executables.
lstm_decoder_forward = jax.jit(_lstm_decoder_forward)


def reference_forward(image_emb, captions, params):
    """Pure-JAX reference (mirrors torch.nn.LSTM + Linear, eval mode)."""
    emb_w = params["embedding"]
    token_emb = jnp.take(emb_w, captions, axis=0)
    x = jnp.concatenate([image_emb[:, None, :], token_emb], axis=1)
    B, T, _ = x.shape
    H = HIDDEN
    inp = x
    for l in range(NUM_LAYERS):
        w_ih = params[f"w_ih_{l}"]
        w_hh = params[f"w_hh_{l}"]
        b = params[f"b_ih_{l}"] + params[f"b_hh_{l}"]
        h = jnp.zeros((B, H), jnp.float32)
        c = jnp.zeros((B, H), jnp.float32)
        outs = []
        for t in range(T):
            gates = inp[:, t, :] @ w_ih.T + h @ w_hh.T + b
            i_g = jax.nn.sigmoid(gates[:, 0 * H:1 * H])
            f_g = jax.nn.sigmoid(gates[:, 1 * H:2 * H])
            g_g = jnp.tanh(gates[:, 2 * H:3 * H])
            o_g = jax.nn.sigmoid(gates[:, 3 * H:4 * H])
            c = f_g * c + i_g * g_g
            h = o_g * jnp.tanh(c)
            outs.append(h)
        inp = jnp.stack(outs, axis=1)
    return inp @ params["w_cls"].T + params["b_cls"]


def init_params(key):
    """Deterministic parameter init (shapes per LSTMDecoder.__init__)."""
    params = {}
    k = 1.0 / jnp.sqrt(jnp.float32(HIDDEN))
    keys = jax.random.split(key, 4 * NUM_LAYERS + 3)
    ki = iter(keys)
    params["embedding"] = jax.random.normal(next(ki), (NUM_TOKENS, EMB_DIM), jnp.float32) * 0.1
    for l in range(NUM_LAYERS):
        in_dim = EMB_DIM if l == 0 else HIDDEN
        params[f"w_ih_{l}"] = jax.random.uniform(next(ki), (4 * HIDDEN, in_dim),
                                                 jnp.float32, -k, k)
        params[f"w_hh_{l}"] = jax.random.uniform(next(ki), (4 * HIDDEN, HIDDEN),
                                                 jnp.float32, -k, k)
        params[f"b_ih_{l}"] = jax.random.uniform(next(ki), (4 * HIDDEN,),
                                                 jnp.float32, -k, k)
        params[f"b_hh_{l}"] = jax.random.uniform(next(ki), (4 * HIDDEN,),
                                                 jnp.float32, -k, k)
    params["w_cls"] = jax.random.uniform(next(ki), (NUM_TOKENS, HIDDEN), jnp.float32, -k, k)
    params["b_cls"] = jax.random.uniform(next(ki), (NUM_TOKENS,), jnp.float32, -k, k)
    return params


if __name__ == "__main__":
    root = jax.random.PRNGKey(0)
    kp, ki, kc = jax.random.split(root, 3)

    params = init_params(kp)
    image_emb = jax.random.normal(ki, (BATCH, EMB_DIM), jnp.float32)           # [B, E]
    captions = jax.random.randint(kc, (BATCH, SEQ), 0, NUM_TOKENS, jnp.int32)  # [B, T]

    logits = lstm_decoder_forward(image_emb, captions, params)
    logits = jax.block_until_ready(logits)

    ref = reference_forward(image_emb, captions, params)
    assert logits.shape == (BATCH, SEQ + 1, NUM_TOKENS), logits.shape
    assert jnp.allclose(logits, ref, rtol=1e-4, atol=1e-4), \
        float(jnp.max(jnp.abs(logits - ref)))

    print("KERNEL_OK")
</pallas_src>

<mosaic_0001>
module attributes {stable_mosaic.version = 11 : i64} {
  func.func @kernel(%arg0: memref<2x8xi32, #tpu.memory_space<smem>>, %arg1: memref<2x32xf32, #tpu.memory_space<vmem>>, %arg2: memref<128x32xf32, #tpu.memory_space<vmem>>, %arg3: memref<3x32x128xf32, #tpu.memory_space<vmem>>, %arg4: memref<3x32x128xf32, #tpu.memory_space<vmem>>, %arg5: memref<3x1x128xf32, #tpu.memory_space<vmem>>, %arg6: memref<32x128xf32, #tpu.memory_space<vmem>>, %arg7: memref<1x128xf32, #tpu.memory_space<vmem>>, %arg8: memref<72x128xf32, #tpu.memory_space<vmem>>, %arg9: memref<72x32xf32, #tpu.memory_space<vmem>>, %arg10: memref<72x128xf32, #tpu.memory_space<vmem>>, %arg11: memref<72x32xf32, #tpu.memory_space<vmem>>) attributes {dimension_semantics = [], scalar_prefetch = 0 : i64, scratch_operands = 3 : i64, tpu.core_type = #tpu.core_type<tc>} {
    %cst = arith.constant 0.000000e+00 : f32
    %0 = vector.broadcast %cst : f32 to vector<72x32xf32>
    %c0 = arith.constant 0 : index
    %c0_0 = arith.constant 0 : index
    %1 = vector.load %arg9[%c0, %c0_0] : memref<72x32xf32, #tpu.memory_space<vmem>>, vector<72x32xf32>
    tpu.vector_store %arg9[%c0, %c0_0], %0 {strides = array<i32>} : memref<72x32xf32, #tpu.memory_space<vmem>>, vector<72x32xf32>,
    %c0_1 = arith.constant 0 : index
    %c0_2 = arith.constant 0 : index
    %2 = vector.load %arg1[%c0_1, %c0_2] : memref<2x32xf32, #tpu.memory_space<vmem>>, vector<2x32xf32>
    %c0_3 = arith.constant 0 : index
    %c0_4 = arith.constant 0 : index
    %3 = vector.load %arg9[%c0_3, %c0_4] : memref<72x32xf32, #tpu.memory_space<vmem>>, vector<2x32xf32>
    tpu.vector_store %arg9[%c0_3, %c0_4], %2 {strides = array<i32>} : memref<72x32xf32, #tpu.memory_space<vmem>>, vector<2x32xf32>,
    %c0_5 = arith.constant 0 : index
    %c0_6 = arith.constant 0 : index
    %4 = memref.load %arg0[%c0_5, %c0_6] : memref<2x8xi32, #tpu.memory_space<smem>>
    %5 = arith.index_cast %4 : i32 to index
    %c0_7 = arith.constant 0 : index
    %6 = vector.load %arg2[%5, %c0_7] : memref<128x32xf32, #tpu.memory_space<vmem>>, vector<1x32xf32>
    %c8 = arith.constant 8 : index
    %c0_8 = arith.constant 0 : index
    %7 = vector.load %arg9[%c8, %c0_8] : memref<72x32xf32, #tpu.memory_space<vmem>>, vector<1x32xf32>
    tpu.vector_store %arg9[%c8, %c0_8], %6 {strides = array<i32>} : memref<72x32xf32, #tpu.memory_space<vmem>>, vector<1x32xf32>,
    %c1 = arith.constant 1 : index
    %c0_9 = arith.constant 0 : index
    %8 = memref.load %arg0[%c1, %c0_9] : memref<2x8xi32, #tpu.memory_space<smem>>
    %9 = arith.index_cast %8 : i32 to index
    %c0_10 = arith.constant 0 : index
    %10 = vector.load %arg2[%9, %c0_10] : memref<128x32xf32, #tpu.memory_space<vmem>>, vector<1x32xf32>
    %c9 = arith.constant 9 : index
    %c0_11 = arith.constant 0 : index
    %11 = vector.load %arg9[%c9, %c0_11] : memref<72x32xf32, #tpu.memory_space<vmem>>, vector<1x32xf32>
    tpu.vector_store %arg9[%c9, %c0_11], %10 {strides = array<i32>} : memref<72x32xf32, #tpu.memory_space<vmem>>, vector<1x32xf32>,
    %c0_12 = arith.constant 0 : index
    %c1_13 = arith.constant 1 : index
    %12 = memref.load %arg0[%c0_12, %c1_13] : memref<2x8xi32, #tpu.memory_space<smem>>
    %13 = arith.index_cast %12 : i32 to index
    %c0_14 = arith.constant 0 : index
    %14 = vector.load %arg2[%13, %c0_14] : memref<128x32xf32, #tpu.memory_space<vmem>>, vector<1x32xf32>
    %c16 = arith.constant 16 : index
    %c0_15 = arith.constant 0 : index
    %15 = vector.load %arg9[%c16, %c0_15] : memref<72x32xf32, #tpu.memory_space<vmem>>, vector<1x32xf32>
    tpu.vector_store %arg9[%c16, %c0_15], %14 {strides = array<i32>} : memref<72x32xf32, #tpu.memory_space<vmem>>, vector<1x32xf32>,
    %c1_16 = arith.constant 1 : index
    %c1_17 = arith.constant 1 : index
    %16 = memref.load %arg0[%c1_16, %c1_17] : memref<2x8xi32, #tpu.memory_space<smem>>
    %17 = arith.index_cast %16 : i32 to index
    %c0_18 = arith.constant 0 : index
    %18 = vector.load %arg2[%17, %c0_18] : memref<128x32xf32, #tpu.memory_space<vmem>>, vector<1x32xf32>
    %c17 = arith.constant 17 : index
    %c0_19 = arith.constant 0 : index
    %19 = vector.load %arg9[%c17, %c0_19] : memref<72x32xf32, #tpu.memory_space<vmem>>, vector<1x32xf32>
    tpu.vector_store %arg9[%c17, %c0_19], %18 {strides = array<i32>} : memref<72x32xf32, #tpu.memory_space<vmem>>, vector<1x32xf32>,
    %c0_20 = arith.constant 0 : index
    %c2 = arith.constant 2 : index
    %20 = memref.load %arg0[%c0_20, %c2] : memref<2x8xi32, #tpu.memory_space<smem>>
    %21 = arith.index_cast %20 : i32 to index
    %c0_21 = arith.constant 0 : index
    %22 = vector.load %arg2[%21, %c0_21] : memref<128x32xf32, #tpu.memory_space<vmem>>, vector<1x32xf32>
    %c24 = arith.constant 24 : index
    %c0_22 = arith.constant 0 : index
    %23 = vector.load %arg9[%c24, %c0_22] : memref<72x32xf32, #tpu.memory_space<vmem>>, vector<1x32xf32>
    tpu.vector_store %arg9[%c24, %c0_22], %22 {strides = array<i32>} : memref<72x32xf32, #tpu.memory_space<vmem>>, vector<1x32xf32>,
    %c1_23 = arith.constant 1 : index
    %c2_24 = arith.constant 2 : index
    %24 = memref.load %arg0[%c1_23, %c2_24] : memref<2x8xi32, #tpu.memory_space<smem>>
    %25 = arith.index_cast %24 : i32 to index
    %c0_25 = arith.constant 0 : index
    %26 = vector.load %arg2[%25, %c0_25] : memref<128x32xf32, #tpu.memory_space<vmem>>, vector<1x32xf32>
    %c25 = arith.constant 25 : index
    %c0_26 = arith.constant 0 : index
    %27 = vector.load %arg9[%c25, %c0_26] : memref<72x32xf32, #tpu.memory_space<vmem>>, vector<1x32xf32>
    tpu.vector_store %arg9[%c25, %c0_26], %26 {strides = array<i32>} : memref<72x32xf32, #tpu.memory_space<vmem>>, vector<1x32xf32>,
    %c0_27 = arith.constant 0 : index
    %c3 = arith.constant 3 : index
    %28 = memref.load %arg0[%c0_27, %c3] : memref<2x8xi32, #tpu.memory_space<smem>>
    %29 = arith.index_cast %28 : i32 to index
    %c0_28 = arith.constant 0 : index
    %30 = vector.load %arg2[%29, %c0_28] : memref<128x32xf32, #tpu.memory_space<vmem>>, vector<1x32xf32>
    %c32 = arith.constant 32 : index
    %c0_29 = arith.constant 0 : index
    %31 = vector.load %arg9[%c32, %c0_29] : memref<72x32xf32, #tpu.memory_space<vmem>>, vector<1x32xf32>
    tpu.vector_store %arg9[%c32, %c0_29], %30 {strides = array<i32>} : memref<72x32xf32, #tpu.memory_space<vmem>>, vector<1x32xf32>,
    %c1_30 = arith.constant 1 : index
    %c3_31 = arith.constant 3 : index
    %32 = memref.load %arg0[%c1_30, %c3_31] : memref<2x8xi32, #tpu.memory_space<smem>>
    %33 = arith.index_cast %32 : i32 to index
    %c0_32 = arith.constant 0 : index
    %34 = vector.load %arg2[%33, %c0_32] : memref<128x32xf32, #tpu.memory_space<vmem>>, vector<1x32xf32>
    %c33 = arith.constant 33 : index
    %c0_33 = arith.constant 0 : index
    %35 = vector.load %arg9[%c33, %c0_33] : memref<72x32xf32, #tpu.memory_space<vmem>>, vector<1x32xf32>
    tpu.vector_store %arg9[%c33, %c0_33], %34 {strides = array<i32>} : memref<72x32xf32, #tpu.memory_space<vmem>>, vector<1x32xf32>,
    %c0_34 = arith.constant 0 : index
    %c4 = arith.constant 4 : index
    %36 = memref.load %arg0[%c0_34, %c4] : memref<2x8xi32, #tpu.memory_space<smem>>
    %37 = arith.index_cast %36 : i32 to index
    %c0_35 = arith.constant 0 : index
    %38 = vector.load %arg2[%37, %c0_35] : memref<128x32xf32, #tpu.memory_space<vmem>>, vector<1x32xf32>
    %c40 = arith.constant 40 : index
    %c0_36 = arith.constant 0 : index
    %39 = vector.load %arg9[%c40, %c0_36] : memref<72x32xf32, #tpu.memory_space<vmem>>, vector<1x32xf32>
    tpu.vector_store %arg9[%c40, %c0_36], %38 {strides = array<i32>} : memref<72x32xf32, #tpu.memory_space<vmem>>, vector<1x32xf32>,
    %c1_37 = arith.constant 1 : index
    %c4_38 = arith.constant 4 : index
    %40 = memref.load %arg0[%c1_37, %c4_38] : memref<2x8xi32, #tpu.memory_space<smem>>
    %41 = arith.index_cast %40 : i32 to index
    %c0_39 = arith.constant 0 : index
    %42 = vector.load %arg2[%41, %c0_39] : memref<128x32xf32, #tpu.memory_space<vmem>>, vector<1x32xf32>
    %c41 = arith.constant 41 : index
    %c0_40 = arith.constant 0 : index
    %43 = vector.load %arg9[%c41, %c0_40] : memref<72x32xf32, #tpu.memory_space<vmem>>, vector<1x32xf32>
    tpu.vector_store %arg9[%c41, %c0_40], %42 {strides = array<i32>} : memref<72x32xf32, #tpu.memory_space<vmem>>, vector<1x32xf32>,
    %c0_41 = arith.constant 0 : index
    %c5 = arith.constant 5 : index
    %44 = memref.load %arg0[%c0_41, %c5] : memref<2x8xi32, #tpu.memory_space<smem>>
    %45 = arith.index_cast %44 : i32 to index
    %c0_42 = arith.constant 0 : index
    %46 = vector.load %arg2[%45, %c0_42] : memref<128x32xf32, #tpu.memory_space<vmem>>, vector<1x32xf32>
    %c48 = arith.constant 48 : index
    %c0_43 = arith.constant 0 : index
    %47 = vector.load %arg9[%c48, %c0_43] : memref<72x32xf32, #tpu.memory_space<vmem>>, vector<1x32xf32>
    tpu.vector_store %arg9[%c48, %c0_43], %46 {strides = array<i32>} : memref<72x32xf32, #tpu.memory_space<vmem>>, vector<1x32xf32>,
    %c1_44 = arith.constant 1 : index
    %c5_45 = arith.constant 5 : index
    %48 = memref.load %arg0[%c1_44, %c5_45] : memref<2x8xi32, #tpu.memory_space<smem>>
    %49 = arith.index_cast %48 : i32 to index
    %c0_46 = arith.constant 0 : index
    %50 = vector.load %arg2[%49, %c0_46] : memref<128x32xf32, #tpu.memory_space<vmem>>, vector<1x32xf32>
    %c49 = arith.constant 49 : index
    %c0_47 = arith.constant 0 : index
    %51 = vector.load %arg9[%c49, %c0_47] : memref<72x32xf32, #tpu.memory_space<vmem>>, vector<1x32xf32>
    tpu.vector_store %arg9[%c49, %c0_47], %50 {strides = array<i32>} : memref<72x32xf32, #tpu.memory_space<vmem>>, vector<1x32xf32>,
    %c0_48 = arith.constant 0 : index
    %c6 = arith.constant 6 : index
    %52 = memref.load %arg0[%c0_48, %c6] : memref<2x8xi32, #tpu.memory_space<smem>>
    %53 = arith.index_cast %52 : i32 to index
    %c0_49 = arith.constant 0 : index
    %54 = vector.load %arg2[%53, %c0_49] : memref<128x32xf32, #tpu.memory_space<vmem>>, vector<1x32xf32>
    %c56 = arith.constant 56 : index
    %c0_50 = arith.constant 0 : index
    %55 = vector.load %arg9[%c56, %c0_50] : memref<72x32xf32, #tpu.memory_space<vmem>>, vector<1x32xf32>
    tpu.vector_store %arg9[%c56, %c0_50], %54 {strides = array<i32>} : memref<72x32xf32, #tpu.memory_space<vmem>>, vector<1x32xf32>,
    %c1_51 = arith.constant 1 : index
    %c6_52 = arith.constant 6 : index
    %56 = memref.load %arg0[%c1_51, %c6_52] : memref<2x8xi32, #tpu.memory_space<smem>>
    %57 = arith.index_cast %56 : i32 to index
    %c0_53 = arith.constant 0 : index
    %58 = vector.load %arg2[%57, %c0_53] : memref<128x32xf32, #tpu.memory_space<vmem>>, vector<1x32xf32>
    %c57 = arith.constant 57 : index
    %c0_54 = arith.constant 0 : index
    %59 = vector.load %arg9[%c57, %c0_54] : memref<72x32xf32, #tpu.memory_space<vmem>>, vector<1x32xf32>
    tpu.vector_store %arg9[%c57, %c0_54], %58 {strides = array<i32>} : memref<72x32xf32, #tpu.memory_space<vmem>>, vector<1x32xf32>,
    %c0_55 = arith.constant 0 : index
    %c7 = arith.constant 7 : index
    %60 = memref.load %arg0[%c0_55, %c7] : memref<2x8xi32, #tpu.memory_space<smem>>
    %61 = arith.index_cast %60 : i32 to index
    %c0_56 = arith.constant 0 : index
    %62 = vector.load %arg2[%61, %c0_56] : memref<128x32xf32, #tpu.memory_space<vmem>>, vector<1x32xf32>
    %c64 = arith.constant 64 : index
    %c0_57 = arith.constant 0 : index
    %63 = vector.load %arg9[%c64, %c0_57] : memref<72x32xf32, #tpu.memory_space<vmem>>, vector<1x32xf32>
    tpu.vector_store %arg9[%c64, %c0_57], %62 {strides = array<i32>} : memref<72x32xf32, #tpu.memory_space<vmem>>, vector<1x32xf32>,
    %c1_58 = arith.constant 1 : index
    %c7_59 = arith.constant 7 : index
    %64 = memref.load %arg0[%c1_58, %c7_59] : memref<2x8xi32, #tpu.memory_space<smem>>
    %65 = arith.index_cast %64 : i32 to index
    %c0_60 = arith.constant 0 : index
    %66 = vector.load %arg2[%65, %c0_60] : memref<128x32xf32, #tpu.memory_space<vmem>>, vector<1x32xf32>
    %c65 = arith.constant 65 : index
    %c0_61 = arith.constant 0 : index
    %67 = vector.load %arg9[%c65, %c0_61] : memref<72x32xf32, #tpu.memory_space<vmem>>, vector<1x32xf32>
    tpu.vector_store %arg9[%c65, %c0_61], %66 {strides = array<i32>} : memref<72x32xf32, #tpu.memory_space<vmem>>, vector<1x32xf32>,
    %c0_62 = arith.constant 0 : index
    %c0_63 = arith.constant 0 : index
    %68 = vector.load %arg9[%c0_62, %c0_63] : memref<72x32xf32, #tpu.memory_space<vmem>>, vector<72x32xf32>
    %c0_64 = arith.constant 0 : index
    %c0_65 = arith.constant 0 : index
    %c0_66 = arith.constant 0 : index
    %69 = vector.load %arg3[%c0_64, %c0_65, %c0_66] : memref<3x32x128xf32, #tpu.memory_space<vmem>>, vector<1x32x128xf32>
    %70 = vector.shape_cast %69 : vector<1x32x128xf32> to vector<32x128xf32>
    %cst_67 = arith.constant dense<0.000000e+00> : vector<72x128xf32>
    %71 = tpu.matmul %68, %70, %cst_67 {dimension_numbers = #tpu.dot_dimension_numbers<[1], [0], [0], [1], [0, 0, 1, 1], [], []>} : vector<72x32xf32>, vector<32x128xf32>, vector<72x128xf32> -> vector<72x128xf32>
    %c0_68 = arith.constant 0 : index
    %c0_69 = arith.constant 0 : index
    %c0_70 = arith.constant 0 : index
    %72 = vector.load %arg5[%c0_68, %c0_69, %c0_70] : memref<3x1x128xf32, #tpu.memory_space<vmem>>, vector<1x1x128xf32>
    %73 = vector.shape_cast %72 : vector<1x1x128xf32> to vector<1x128xf32>
    %74 = vector.broadcast %73 : vector<1x128xf32> to vector<72x128xf32>
    %75 = arith.addf %71, %74 : vector<72x128xf32>
    %c0_71 = arith.constant 0 : index
    %c0_72 = arith.constant 0 : index
    %76 = vector.load %arg10[%c0_71, %c0_72] : memref<72x128xf32, #tpu.memory_space<vmem>>, vector<72x128xf32>
    tpu.vector_store %arg10[%c0_71, %c0_72], %75 {strides = array<i32>} : memref<72x128xf32, #tpu.memory_space<vmem>>, vector<72x128xf32>,
    %c0_73 = arith.constant 0 : index
    %c0_74 = arith.constant 0 : index
    %c0_75 = arith.constant 0 : index
    %77 = vector.load %arg4[%c0_73, %c0_74, %c0_75] : memref<3x32x128xf32, #tpu.memory_space<vmem>>, vector<1x32x128xf32>
    %78 = vector.shape_cast %77 : vector<1x32x128xf32> to vector<32x128xf32>
    %c1_76 = arith.constant 1 : index
    %c0_77 = arith.constant 0 : index
    %c0_78 = arith.constant 0 : index
    %79 = vector.load %arg4[%c1_76, %c0_77, %c0_78] : memref<3x32x128xf32, #tpu.memory_space<vmem>>, vector<1x32x128xf32>
    %80 = vector.shape_cast %79 : vector<1x32x128xf32> to vector<32x128xf32>
    %c2_79 = arith.constant 2 : index
    %c0_80 = arith.constant 0 : index
    %c0_81 = arith.constant 0 : index
    %81 = vector.load %arg4[%c2_79, %c0_80, %c0_81] : memref<3x32x128xf32, #tpu.memory_space<vmem>>, vector<1x32x128xf32>
    %82 = vector.shape_cast %81 : vector<1x32x128xf32> to vector<32x128xf32>
    %c1_82 = arith.constant 1 : index
    %c0_83 = arith.constant 0 : index
    %c0_84 = arith.constant 0 : index
    %83 = vector.load %arg3[%c1_82, %c0_83, %c0_84] : memref<3x32x128xf32, #tpu.memory_space<vmem>>, vector<1x32x128xf32>
    %84 = vector.shape_cast %83 : vector<1x32x128xf32> to vector<32x128xf32>
    %c2_85 = arith.constant 2 : index
    %c0_86 = arith.constant 0 : index
    %c0_87 = arith.constant 0 : index
    %85 = vector.load %arg3[%c2_85, %c0_86, %c0_87] : memref<3x32x128xf32, #tpu.memory_space<vmem>>, vector<1x32x128xf32>
    %86 = vector.shape_cast %85 : vector<1x32x128xf32> to vector<32x128xf32>
    %c1_88 = arith.constant 1 : index
    %c0_89 = arith.constant 0 : index
    %c0_90 = arith.constant 0 : index
    %87 = vector.load %arg5[%c1_88, %c0_89, %c0_90] : memref<3x1x128xf32, #tpu.memory_space<vmem>>, vector<1x1x128xf32>
    %88 = vector.shape_cast %87 : vector<1x1x128xf32> to vector<1x128xf32>
    %89 = vector.shape_cast %88 : vector<1x128xf32> to vector<1x128xf32>
    %90 = vector.broadcast %89 : vector<1x128xf32> to vector<8x128xf32>
    %c2_91 = arith.constant 2 : index
    %c0_92 = arith.constant 0 : index
    %c0_93 = arith.constant 0 : index
    %91 = vector.load %arg5[%c2_91, %c0_92, %c0_93] : memref<3x1x128xf32, #tpu.memory_space<vmem>>, vector<1x1x128xf32>
    %92 = vector.shape_cast %91 : vector<1x1x128xf32> to vector<1x128xf32>
    %93 = vector.shape_cast %92 : vector<1x128xf32> to vector<1x128xf32>
    %94 = vector.broadcast %93 : vector<1x128xf32> to vector<8x128xf32>
    %cst_94 = arith.constant 0.000000e+00 : f32
    %95 = vector.broadcast %cst_94 : f32 to vector<8x32xf32>
    %c0_95 = arith.constant 0 : index
    %c0_96 = arith.constant 0 : index
    %96 = vector.load %arg10[%c0_95, %c0_96] : memref<72x128xf32, #tpu.memory_space<vmem>>, vector<8x128xf32>
    %cst_97 = arith.constant dense<0.000000e+00> : vector<8x128xf32>
    %97 = tpu.matmul %95, %78, %cst_97 {dimension_numbers = #tpu.dot_dimension_numbers<[1], [0], [0], [1], [0, 0, 1, 1], [], []>} : vector<8x32xf32>, vector<32x128xf32>, vector<8x128xf32> -> vector<8x128xf32>
    %98 = arith.addf %96, %97 : vector<8x128xf32>
    %99 = arith.negf %98 : vector<8x128xf32>
    %100 = math.exp %99 : vector<8x128xf32>
    %cst_98 = arith.constant 1.000000e+00 : f32
    %101 = vector.broadcast %cst_98 : f32 to vector<8x128xf32>
    %102 = arith.addf %101, %100 : vector<8x128xf32>
    %103 = arith.divf %101, %102 : vector<8x128xf32>
    %104 = math.tanh %98 : vector<8x128xf32>
    %105 = vector.extract_strided_slice %103 {offsets = [0, 0], sizes = [8, 32], strides = [1, 1]} : vector<8x128xf32> to vector<8x32xf32>
    %106 = vector.extract_strided_slice %103 {offsets = [0, 32], sizes = [8, 32], strides = [1, 1]} : vector<8x128xf32> to vector<8x32xf32>
    %107 = vector.extract_strided_slice %104 {offsets = [0, 64], sizes = [8, 32], strides = [1, 1]} : vector<8x128xf32> to vector<8x32xf32>
    %108 = vector.extract_strided_slice %103 {offsets = [0, 96], sizes = [8, 32], strides = [1, 1]} : vector<8x128xf32> to vector<8x32xf32>
    %109 = arith.mulf %106, %95 : vector<8x32xf32>
    %110 = arith.mulf %105, %107 : vector<8x32xf32>
    %111 = arith.addf %109, %110 : vector<8x32xf32>
    %112 = math.tanh %111 : vector<8x32xf32>
    %113 = arith.mulf %108, %112 : vector<8x32xf32>
    %c8_99 = arith.constant 8 : index
    %c0_100 = arith.constant 0 : index
    %114 = vector.load %arg10[%c8_99, %c0_100] : memref<72x128xf32, #tpu.memory_space<vmem>>, vector<8x128xf32>
    %cst_101 = arith.constant dense<0.000000e+00> : vector<8x128xf32>
    %115 = tpu.matmul %113, %78, %cst_101 {dimension_numbers = #tpu.dot_dimension_numbers<[1], [0], [0], [1], [0, 0, 1, 1], [], []>} : vector<8x32xf32>, vector<32x128xf32>, vector<8x128xf32> -> vector<8x128xf32>
    %116 = arith.addf %114, %115 : vector<8x128xf32>
    %117 = arith.negf %116 : vector<8x128xf32>
    %118 = math.exp %117 : vector<8x128xf32>
    %cst_102 = arith.constant 1.000000e+00 : f32
    %119 = vector.broadcast %cst_102 : f32 to vector<8x128xf32>
    %120 = arith.addf %119, %118 : vector<8x128xf32>
    %121 = arith.divf %119, %120 : vector<8x128xf32>
    %122 = math.tanh %116 : vector<8x128xf32>
    %123 = vector.extract_strided_slice %121 {offsets = [0, 0], sizes = [8, 32], strides = [1, 1]} : vector<8x128xf32> to vector<8x32xf32>
    %124 = vector.extract_strided_slice %121 {offsets = [0, 32], sizes = [8, 32], strides = [1, 1]} : vector<8x128xf32> to vector<8x32xf32>
    %125 = vector.extract_strided_slice %122 {offsets = [0, 64], sizes = [8, 32], strides = [1, 1]} : vector<8x128xf32> to vector<8x32xf32>
    %126 = vector.extract_strided_slice %121 {offsets = [0, 96], sizes = [8, 32], strides = [1, 1]} : vector<8x128xf32> to vector<8x32xf32>
    %127 = arith.mulf %124, %111 : vector<8x32xf32>
    %128 = arith.mulf %123, %125 : vector<8x32xf32>
    %129 = arith.addf %127, %128 : vector<8x32xf32>
    %130 = math.tanh %129 : vector<8x32xf32>
    %131 = arith.mulf %126, %130 : vector<8x32xf32>
    %cst_103 = arith.constant dense<0.000000e+00> : vector<8x128xf32>
    %132 = tpu.matmul %113, %84, %cst_103 {dimension_numbers = #tpu.dot_dimension_numbers<[1], [0], [0], [1], [0, 0, 1, 1], [], []>} : vector<8x32xf32>, vector<32x128xf32>, vector<8x128xf32> -> vector<8x128xf32>
    %133 = arith.addf %132, %90 : vector<8x128xf32>
    %cst_104 = arith.constant dense<0.000000e+00> : vector<8x128xf32>
    %134 = tpu.matmul %95, %80, %cst_104 {dimension_numbers = #tpu.dot_dimension_numbers<[1], [0], [0], [1], [0, 0, 1, 1], [], []>} : vector<8x32xf32>, vector<32x128xf32>, vector<8x128xf32> -> vector<8x128xf32>
    %135 = arith.addf %133, %134 : vector<8x128xf32>
    %136 = arith.negf %135 : vector<8x128xf32>
    %137 = math.exp %136 : vector<8x128xf32>
    %cst_105 = arith.constant 1.000000e+00 : f32
    %138 = vector.broadcast %cst_105 : f32 to vector<8x128xf32>
    %139 = arith.addf %138, %137 : vector<8x128xf32>
    %140 = arith.divf %138, %139 : vector<8x128xf32>
    %141 = math.tanh %135 : vector<8x128xf32>
    %142 = vector.extract_strided_slice %140 {offsets = [0, 0], sizes = [8, 32], strides = [1, 1]} : vector<8x128xf32> to vector<8x32xf32>
    %143 = vector.extract_strided_slice %140 {offsets = [0, 32], sizes = [8, 32], strides = [1, 1]} : vector<8x128xf32> to vector<8x32xf32>
    %144 = vector.extract_strided_slice %141 {offsets = [0, 64], sizes = [8, 32], strides = [1, 1]} : vector<8x128xf32> to vector<8x32xf32>
    %145 = vector.extract_strided_slice %140 {offsets = [0, 96], sizes = [8, 32], strides = [1, 1]} : vector<8x128xf32> to vector<8x32xf32>
    %146 = arith.mulf %143, %95 : vector<8x32xf32>
    %147 = arith.mulf %142, %144 : vector<8x32xf32>
    %148 = arith.addf %146, %147 : vector<8x32xf32>
    %149 = math.tanh %148 : vector<8x32xf32>
    %150 = arith.mulf %145, %149 : vector<8x32xf32>
    %c16_106 = arith.constant 16 : index
    %c0_107 = arith.constant 0 : index
    %151 = vector.load %arg10[%c16_106, %c0_107] : memref<72x128xf32, #tpu.memory_space<vmem>>, vector<8x128xf32>
    %cst_108 = arith.constant dense<0.000000e+00> : vector<8x128xf32>
    %152 = tpu.matmul %131, %78, %cst_108 {dimension_numbers = #tpu.dot_dimension_numbers<[1], [0], [0], [1], [0, 0, 1, 1], [], []>} : vector<8x32xf32>, vector<32x128xf32>, vector<8x128xf32> -> vector<8x128xf32>
    %153 = arith.addf %151, %152 : vector<8x128xf32>
    %154 = arith.negf %153 : vector<8x128xf32>
    %155 = math.exp %154 : vector<8x128xf32>
    %cst_109 = arith.constant 1.000000e+00 : f32
    %156 = vector.broadcast %cst_109 : f32 to vector<8x128xf32>
    %157 = arith.addf %156, %155 : vector<8x128xf32>
    %158 = arith.divf %156, %157 : vector<8x128xf32>
    %159 = math.tanh %153 : vector<8x128xf32>
    %160 = vector.extract_strided_slice %158 {offsets = [0, 0], sizes = [8, 32], strides = [1, 1]} : vector<8x128xf32> to vector<8x32xf32>
    %161 = vector.extract_strided_slice %158 {offsets = [0, 32], sizes = [8, 32], strides = [1, 1]} : vector<8x128xf32> to vector<8x32xf32>
    %162 = vector.extract_strided_slice %159 {offsets = [0, 64], sizes = [8, 32], strides = [1, 1]} : vector<8x128xf32> to vector<8x32xf32>
    %163 = vector.extract_strided_slice %158 {offsets = [0, 96], sizes = [8, 32], strides = [1, 1]} : vector<8x128xf32> to vector<8x32xf32>
    %164 = arith.mulf %161, %129 : vector<8x32xf32>
    %165 = arith.mulf %160, %162 : vector<8x32xf32>
    %166 = arith.addf %164, %165 : vector<8x32xf32>
    %167 = math.tanh %166 : vector<8x32xf32>
    %168 = arith.mulf %163, %167 : vector<8x32xf32>
    %cst_110 = arith.constant dense<0.000000e+00> : vector<8x128xf32>
    %169 = tpu.matmul %131, %84, %cst_110 {dimension_numbers = #tpu.dot_dimension_numbers<[1], [0], [0], [1], [0, 0, 1, 1], [], []>} : vector<8x32xf32>, vector<32x128xf32>, vector<8x128xf32> -> vector<8x128xf32>
    %170 = arith.addf %169, %90 : vector<8x128xf32>
    %cst_111 = arith.constant dense<0.000000e+00> : vector<8x128xf32>
    %171 = tpu.matmul %150, %80, %cst_111 {dimension_numbers = #tpu.dot_dimension_numbers<[1], [0], [0], [1], [0, 0, 1, 1], [], []>} : vector<8x32xf32>, vector<32x128xf32>, vector<8x128xf32> -> vector<8x128xf32>
    %172 = arith.addf %170, %171 : vector<8x128xf32>
    %173 = arith.negf %172 : vector<8x128xf32>
    %174 = math.exp %173 : vector<8x128xf32>
    %cst_112 = arith.constant 1.000000e+00 : f32
    %175 = vector.broadcast %cst_112 : f32 to vector<8x128xf32>
    %176 = arith.addf %175, %174 : vector<8x128xf32>
    %177 = arith.divf %175, %176 : vector<8x128xf32>
    %178 = math.tanh %172 : vector<8x128xf32>
    %179 = vector.extract_strided_slice %177 {offsets = [0, 0], sizes = [8, 32], strides = [1, 1]} : vector<8x128xf32> to vector<8x32xf32>
    %180 = vector.extract_strided_slice %177 {offsets = [0, 32], sizes = [8, 32], strides = [1, 1]} : vector<8x128xf32> to vector<8x32xf32>
    %181 = vector.extract_strided_slice %178 {offsets = [0, 64], sizes = [8, 32], strides = [1, 1]} : vector<8x128xf32> to vector<8x32xf32>
    %182 = vector.extract_strided_slice %177 {offsets = [0, 96], sizes = [8, 32], strides = [1, 1]} : vector<8x128xf32> to vector<8x32xf32>
    %183 = arith.mulf %180, %148 : vector<8x32xf32>
    %184 = arith.mulf %179, %181 : vector<8x32xf32>
    %185 = arith.addf %183, %184 : vector<8x32xf32>
    %186 = math.tanh %185 : vector<8x32xf32>
    %187 = arith.mulf %182, %186 : vector<8x32xf32>
    %cst_113 = arith.constant dense<0.000000e+00> : vector<8x128xf32>
    %188 = tpu.matmul %150, %86, %cst_113 {dimension_numbers = #tpu.dot_dimension_numbers<[1], [0], [0], [1], [0, 0, 1, 1], [], []>} : vector<8x32xf32>, vector<32x128xf32>, vector<8x128xf32> -> vector<8x128xf32>
    %189 = arith.addf %188, %94 : vector<8x128xf32>
    %cst_114 = arith.constant dense<0.000000e+00> : vector<8x128xf32>
    %190 = tpu.matmul %95, %82, %cst_114 {dimension_numbers = #tpu.dot_dimension_numbers<[1], [0], [0], [1], [0, 0, 1, 1], [], []>} : vector<8x32xf32>, vector<32x128xf32>, vector<8x128xf32> -> vector<8x128xf32>
    %191 = arith.addf %189, %190 : vector<8x128xf32>
    %192 = arith.negf %191 : vector<8x128xf32>
    %193 = math.exp %192 : vector<8x128xf32>
    %cst_115 = arith.constant 1.000000e+00 : f32
    %194 = vector.broadcast %cst_115 : f32 to vector<8x128xf32>
    %195 = arith.addf %194, %193 : vector<8x128xf32>
    %196 = arith.divf %194, %195 : vector<8x128xf32>
    %197 = math.tanh %191 : vector<8x128xf32>
    %198 = vector.extract_strided_slice %196 {offsets = [0, 0], sizes = [8, 32], strides = [1, 1]} : vector<8x128xf32> to vector<8x32xf32>
    %199 = vector.extract_strided_slice %196 {offsets = [0, 32], sizes = [8, 32], strides = [1, 1]} : vector<8x128xf32> to vector<8x32xf32>
    %200 = vector.extract_strided_slice %197 {offsets = [0, 64], sizes = [8, 32], strides = [1, 1]} : vector<8x128xf32> to vector<8x32xf32>
    %201 = vector.extract_strided_slice %196 {offsets = [0, 96], sizes = [8, 32], strides = [1, 1]} : vector<8x128xf32> to vector<8x32xf32>
    %202 = arith.mulf %199, %95 : vector<8x32xf32>
    %203 = arith.mulf %198, %200 : vector<8x32xf32>
    %204 = arith.addf %202, %203 : vector<8x32xf32>
    %205 = math.tanh %204 : vector<8x32xf32>
    %206 = arith.mulf %201, %205 : vector<8x32xf32>
    %c0_116 = arith.constant 0 : index
    %c0_117 = arith.constant 0 : index
    %207 = vector.load %arg11[%c0_116, %c0_117] : memref<72x32xf32, #tpu.memory_space<vmem>>, vector<8x32xf32>
    tpu.vector_store %arg11[%c0_116, %c0_117], %206 {strides = array<i32>} : memref<72x32xf32, #tpu.memory_space<vmem>>, vector<8x32xf32>,
    %c24_118 = arith.constant 24 : index
    %c0_119 = arith.constant 0 : index
    %208 = vector.load %arg10[%c24_118, %c0_119] : memref<72x128xf32, #tpu.memory_space<vmem>>, vector<8x128xf32>
    %cst_120 = arith.constant dense<0.000000e+00> : vector<8x128xf32>
    %209 = tpu.matmul %168, %78, %cst_120 {dimension_numbers = #tpu.dot_dimension_numbers<[1], [0], [0], [1], [0, 0, 1, 1], [], []>} : vector<8x32xf32>, vector<32x128xf32>, vector<8x128xf32> -> vector<8x128xf32>
    %210 = arith.addf %208, %209 : vector<8x128xf32>
    %211 = arith.negf %210 : vector<8x128xf32>
    %212 = math.exp %211 : vector<8x128xf32>
    %cst_121 = arith.constant 1.000000e+00 : f32
    %213 = vector.broadcast %cst_121 : f32 to vector<8x128xf32>
    %214 = arith.addf %213, %212 : vector<8x128xf32>
    %215 = arith.divf %213, %214 : vector<8x128xf32>
    %216 = math.tanh %210 : vector<8x128xf32>
    %217 = vector.extract_strided_slice %215 {offsets = [0, 0], sizes = [8, 32], strides = [1, 1]} : vector<8x128xf32> to vector<8x32xf32>
    %218 = vector.extract_strided_slice %215 {offsets = [0, 32], sizes = [8, 32], strides = [1, 1]} : vector<8x128xf32> to vector<8x32xf32>
    %219 = vector.extract_strided_slice %216 {offsets = [0, 64], sizes = [8, 32], strides = [1, 1]} : vector<8x128xf32> to vector<8x32xf32>
    %220 = vector.extract_strided_slice %215 {offsets = [0, 96], sizes = [8, 32], strides = [1, 1]} : vector<8x128xf32> to vector<8x32xf32>
    %221 = arith.mulf %218, %166 : vector<8x32xf32>
    %222 = arith.mulf %217, %219 : vector<8x32xf32>
    %223 = arith.addf %221, %222 : vector<8x32xf32>
    %224 = math.tanh %223 : vector<8x32xf32>
    %225 = arith.mulf %220, %224 : vector<8x32xf32>
    %cst_122 = arith.constant dense<0.000000e+00> : vector<8x128xf32>
    %226 = tpu.matmul %168, %84, %cst_122 {dimension_numbers = #tpu.dot_dimension_numbers<[1], [0], [0], [1], [0, 0, 1, 1], [], []>} : vector<8x32xf32>, vector<32x128xf32>, vector<8x128xf32> -> vector<8x128xf32>
    %227 = arith.addf %226, %90 : vector<8x128xf32>
    %cst_123 = arith.constant dense<0.000000e+00> : vector<8x128xf32>
    %228 = tpu.matmul %187, %80, %cst_123 {dimension_numbers = #tpu.dot_dimension_numbers<[1], [0], [0], [1], [0, 0, 1, 1], [], []>} : vector<8x32xf32>, vector<32x128xf32>, vector<8x128xf32> -> vector<8x128xf32>
    %229 = arith.addf %227, %228 : vector<8x128xf32>
    %230 = arith.negf %229 : vector<8x128xf32>
    %231 = math.exp %230 : vector<8x128xf32>
    %cst_124 = arith.constant 1.000000e+00 : f32
    %232 = vector.broadcast %cst_124 : f32 to vector<8x128xf32>
    %233 = arith.addf %232, %231 : vector<8x128xf32>
    %234 = arith.divf %232, %233 : vector<8x128xf32>
    %235 = math.tanh %229 : vector<8x128xf32>
    %236 = vector.extract_strided_slice %234 {offsets = [0, 0], sizes = [8, 32], strides = [1, 1]} : vector<8x128xf32> to vector<8x32xf32>
    %237 = vector.extract_strided_slice %234 {offsets = [0, 32], sizes = [8, 32], strides = [1, 1]} : vector<8x128xf32> to vector<8x32xf32>
    %238 = vector.extract_strided_slice %235 {offsets = [0, 64], sizes = [8, 32], strides = [1, 1]} : vector<8x128xf32> to vector<8x32xf32>
    %239 = vector.extract_strided_slice %234 {offsets = [0, 96], sizes = [8, 32], strides = [1, 1]} : vector<8x128xf32> to vector<8x32xf32>
    %240 = arith.mulf %237, %185 : vector<8x32xf32>
    %241 = arith.mulf %236, %238 : vector<8x32xf32>
    %242 = arith.addf %240, %241 : vector<8x32xf32>
    %243 = math.tanh %242 : vector<8x32xf32>
    %244 = arith.mulf %239, %243 : vector<8x32xf32>
    %cst_125 = arith.constant dense<0.000000e+00> : vector<8x128xf32>
    %245 = tpu.matmul %187, %86, %cst_125 {dimension_numbers = #tpu.dot_dimension_numbers<[1], [0], [0], [1], [0, 0, 1, 1], [], []>} : vector<8x32xf32>, vector<32x128xf32>, vector<8x128xf32> -> vector<8x128xf32>
    %246 = arith.addf %245, %94 : vector<8x128xf32>
    %cst_126 = arith.constant dense<0.000000e+00> : vector<8x128xf32>
    %247 = tpu.matmul %206, %82, %cst_126 {dimension_numbers = #tpu.dot_dimension_numbers<[1], [0], [0], [1], [0, 0, 1, 1], [], []>} : vector<8x32xf32>, vector<32x128xf32>, vector<8x128xf32> -> vector<8x128xf32>
    %248 = arith.addf %246, %247 : vector<8x128xf32>
    %249 = arith.negf %248 : vector<8x128xf32>
    %250 = math.exp %249 : vector<8x128xf32>
    %cst_127 = arith.constant 1.000000e+00 : f32
    %251 = vector.broadcast %cst_127 : f32 to vector<8x128xf32>
    %252 = arith.addf %251, %250 : vector<8x128xf32>
    %253 = arith.divf %251, %252 : vector<8x128xf32>
    %254 = math.tanh %248 : vector<8x128xf32>
    %255 = vector.extract_strided_slice %253 {offsets = [0, 0], sizes = [8, 32], strides = [1, 1]} : vector<8x128xf32> to vector<8x32xf32>
    %256 = vector.extract_strided_slice %253 {offsets = [0, 32], sizes = [8, 32], strides = [1, 1]} : vector<8x128xf32> to vector<8x32xf32>
    %257 = vector.extract_strided_slice %254 {offsets = [0, 64], sizes = [8, 32], strides = [1, 1]} : vector<8x128xf32> to vector<8x32xf32>
    %258 = vector.extract_strided_slice %253 {offsets = [0, 96], sizes = [8, 32], strides = [1, 1]} : vector<8x128xf32> to vector<8x32xf32>
    %259 = arith.mulf %256, %204 : vector<8x32xf32>
    %260 = arith.mulf %255, %257 : vector<8x32xf32>
    %261 = arith.addf %259, %260 : vector<8x32xf32>
    %262 = math.tanh %261 : vector<8x32xf32>
    %263 = arith.mulf %258, %262 : vector<8x32xf32>
    %c8_128 = arith.constant 8 : index
    %c0_129 = arith.constant 0 : index
    %264 = vector.load %arg11[%c8_128, %c0_129] : memref<72x32xf32, #tpu.memory_space<vmem>>, vector<8x32xf32>
    tpu.vector_store %arg11[%c8_128, %c0_129], %263 {strides = array<i32>} : memref<72x32xf32, #tpu.memory_space<vmem>>, vector<8x32xf32>,
    %c32_130 = arith.constant 32 : index
    %c0_131 = arith.constant 0 : index
    %265 = vector.load %arg10[%c32_130, %c0_131] : memref<72x128xf32, #tpu.memory_space<vmem>>, vector<8x128xf32>
    %cst_132 = arith.constant dense<0.000000e+00> : vector<8x128xf32>
    %266 = tpu.matmul %225, %78, %cst_132 {dimension_numbers = #tpu.dot_dimension_numbers<[1], [0], [0], [1], [0, 0, 1, 1], [], []>} : vector<8x32xf32>, vector<32x128xf32>, vector<8x128xf32> -> vector<8x128xf32>
    %267 = arith.addf %265, %266 : vector<8x128xf32>
    %268 = arith.negf %267 : vector<8x128xf32>
    %269 = math.exp %268 : vector<8x128xf32>
    %cst_133 = arith.constant 1.000000e+00 : f32
    %270 = vector.broadcast %cst_133 : f32 to vector<8x128xf32>
    %271 = arith.addf %270, %269 : vector<8x128xf32>
    %272 = arith.divf %270, %271 : vector<8x128xf32>
    %273 = math.tanh %267 : vector<8x128xf32>
    %274 = vector.extract_strided_slice %272 {offsets = [0, 0], sizes = [8, 32], strides = [1, 1]} : vector<8x128xf32> to vector<8x32xf32>
    %275 = vector.extract_strided_slice %272 {offsets = [0, 32], sizes = [8, 32], strides = [1, 1]} : vector<8x128xf32> to vector<8x32xf32>
    %276 = vector.extract_strided_slice %273 {offsets = [0, 64], sizes = [8, 32], strides = [1, 1]} : vector<8x128xf32> to vector<8x32xf32>
    %277 = vector.extract_strided_slice %272 {offsets = [0, 96], sizes = [8, 32], strides = [1, 1]} : vector<8x128xf32> to vector<8x32xf32>
    %278 = arith.mulf %275, %223 : vector<8x32xf32>
    %279 = arith.mulf %274, %276 : vector<8x32xf32>
    %280 = arith.addf %278, %279 : vector<8x32xf32>
    %281 = math.tanh %280 : vector<8x32xf32>
    %282 = arith.mulf %277, %281 : vector<8x32xf32>
    %cst_134 = arith.constant dense<0.000000e+00> : vector<8x128xf32>
    %283 = tpu.matmul %225, %84, %cst_134 {dimension_numbers = #tpu.dot_dimension_numbers<[1], [0], [0], [1], [0, 0, 1, 1], [], []>} : vector<8x32xf32>, vector<32x128xf32>, vector<8x128xf32> -> vector<8x128xf32>
    %284 = arith.addf %283, %90 : vector<8x128xf32>
    %cst_135 = arith.constant dense<0.000000e+00> : vector<8x128xf32>
    %285 = tpu.matmul %244, %80, %cst_135 {dimension_numbers = #tpu.dot_dimension_numbers<[1], [0], [0], [1], [0, 0, 1, 1], [], []>} : vector<8x32xf32>, vector<32x128xf32>, vector<8x128xf32> -> vector<8x128xf32>
    %286 = arith.addf %284, %285 : vector<8x128xf32>
    %287 = arith.negf %286 : vector<8x128xf32>
    %288 = math.exp %287 : vector<8x128xf32>
    %cst_136 = arith.constant 1.000000e+00 : f32
    %289 = vector.broadcast %cst_136 : f32 to vector<8x128xf32>
    %290 = arith.addf %289, %288 : vector<8x128xf32>
    %291 = arith.divf %289, %290 : vector<8x128xf32>
    %292 = math.tanh %286 : vector<8x128xf32>
    %293 = vector.extract_strided_slice %291 {offsets = [0, 0], sizes = [8, 32], strides = [1, 1]} : vector<8x128xf32> to vector<8x32xf32>
    %294 = vector.extract_strided_slice %291 {offsets = [0, 32], sizes = [8, 32], strides = [1, 1]} : vector<8x128xf32> to vector<8x32xf32>
    %295 = vector.extract_strided_slice %292 {offsets = [0, 64], sizes = [8, 32], strides = [1, 1]} : vector<8x128xf32> to vector<8x32xf32>
    %296 = vector.extract_strided_slice %291 {offsets = [0, 96], sizes = [8, 32], strides = [1, 1]} : vector<8x128xf32> to vector<8x32xf32>
    %297 = arith.mulf %294, %242 : vector<8x32xf32>
    %298 = arith.mulf %293, %295 : vector<8x32xf32>
    %299 = arith.addf %297, %298 : vector<8x32xf32>
    %300 = math.tanh %299 : vector<8x32xf32>
    %301 = arith.mulf %296, %300 : vector<8x32xf32>
    %cst_137 = arith.constant dense<0.000000e+00> : vector<8x128xf32>
    %302 = tpu.matmul %244, %86, %cst_137 {dimension_numbers = #tpu.dot_dimension_numbers<[1], [0], [0], [1], [0, 0, 1, 1], [], []>} : vector<8x32xf32>, vector<32x128xf32>, vector<8x128xf32> -> vector<8x128xf32>
    %303 = arith.addf %302, %94 : vector<8x128xf32>
    %cst_138 = arith.constant dense<0.000000e+00> : vector<8x128xf32>
    %304 = tpu.matmul %263, %82, %cst_138 {dimension_numbers = #tpu.dot_dimension_numbers<[1], [0], [0], [1], [0, 0, 1, 1], [], []>} : vector<8x32xf32>, vector<32x128xf32>, vector<8x128xf32> -> vector<8x128xf32>
    %305 = arith.addf %303, %304 : vector<8x128xf32>
    %306 = arith.negf %305 : vector<8x128xf32>
    %307 = math.exp %306 : vector<8x128xf32>
    %cst_139 = arith.constant 1.000000e+00 : f32
    %308 = vector.broadcast %cst_139 : f32 to vector<8x128xf32>
    %309 = arith.addf %308, %307 : vector<8x128xf32>
    %310 = arith.divf %308, %309 : vector<8x128xf32>
    %311 = math.tanh %305 : vector<8x128xf32>
    %312 = vector.extract_strided_slice %310 {offsets = [0, 0], sizes = [8, 32], strides = [1, 1]} : vector<8x128xf32> to vector<8x32xf32>
    %313 = vector.extract_strided_slice %310 {offsets = [0, 32], sizes = [8, 32], strides = [1, 1]} : vector<8x128xf32> to vector<8x32xf32>
    %314 = vector.extract_strided_slice %311 {offsets = [0, 64], sizes = [8, 32], strides = [1, 1]} : vector<8x128xf32> to vector<8x32xf32>
    %315 = vector.extract_strided_slice %310 {offsets = [0, 96], sizes = [8, 32], strides = [1, 1]} : vector<8x128xf32> to vector<8x32xf32>
    %316 = arith.mulf %313, %261 : vector<8x32xf32>
    %317 = arith.mulf %312, %314 : vector<8x32xf32>
    %318 = arith.addf %316, %317 : vector<8x32xf32>
    %319 = math.tanh %318 : vector<8x32xf32>
    %320 = arith.mulf %315, %319 : vector<8x32xf32>
    %c16_140 = arith.constant 16 : index
    %c0_141 = arith.constant 0 : index
    %321 = vector.load %arg11[%c16_140, %c0_141] : memref<72x32xf32, #tpu.memory_space<vmem>>, vector<8x32xf32>
    tpu.vector_store %arg11[%c16_140, %c0_141], %320 {strides = array<i32>} : memref<72x32xf32, #tpu.memory_space<vmem>>, vector<8x32xf32>,
    %c40_142 = arith.constant 40 : index
    %c0_143 = arith.constant 0 : index
    %322 = vector.load %arg10[%c40_142, %c0_143] : memref<72x128xf32, #tpu.memory_space<vmem>>, vector<8x128xf32>
    %cst_144 = arith.constant dense<0.000000e+00> : vector<8x128xf32>
    %323 = tpu.matmul %282, %78, %cst_144 {dimension_numbers = #tpu.dot_dimension_numbers<[1], [0], [0], [1], [0, 0, 1, 1], [], []>} : vector<8x32xf32>, vector<32x128xf32>, vector<8x128xf32> -> vector<8x128xf32>
    %324 = arith.addf %322, %323 : vector<8x128xf32>
    %325 = arith.negf %324 : vector<8x128xf32>
    %326 = math.exp %325 : vector<8x128xf32>
    %cst_145 = arith.constant 1.000000e+00 : f32
    %327 = vector.broadcast %cst_145 : f32 to vector<8x128xf32>
    %328 = arith.addf %327, %326 : vector<8x128xf32>
    %329 = arith.divf %327, %328 : vector<8x128xf32>
    %330 = math.tanh %324 : vector<8x128xf32>
    %331 = vector.extract_strided_slice %329 {offsets = [0, 0], sizes = [8, 32], strides = [1, 1]} : vector<8x128xf32> to vector<8x32xf32>
    %332 = vector.extract_strided_slice %329 {offsets = [0, 32], sizes = [8, 32], strides = [1, 1]} : vector<8x128xf32> to vector<8x32xf32>
    %333 = vector.extract_strided_slice %330 {offsets = [0, 64], sizes = [8, 32], strides = [1, 1]} : vector<8x128xf32> to vector<8x32xf32>
    %334 = vector.extract_strided_slice %329 {offsets = [0, 96], sizes = [8, 32], strides = [1, 1]} : vector<8x128xf32> to vector<8x32xf32>
    %335 = arith.mulf %332, %280 : vector<8x32xf32>
    %336 = arith.mulf %331, %333 : vector<8x32xf32>
    %337 = arith.addf %335, %336 : vector<8x32xf32>
    %338 = math.tanh %337 : vector<8x32xf32>
    %339 = arith.mulf %334, %338 : vector<8x32xf32>
    %cst_146 = arith.constant dense<0.000000e+00> : vector<8x128xf32>
    %340 = tpu.matmul %282, %84, %cst_146 {dimension_numbers = #tpu.dot_dimension_numbers<[1], [0], [0], [1], [0, 0, 1, 1], [], []>} : vector<8x32xf32>, vector<32x128xf32>, vector<8x128xf32> -> vector<8x128xf32>
    %341 = arith.addf %340, %90 : vector<8x128xf32>
    %cst_147 = arith.constant dense<0.000000e+00> : vector<8x128xf32>
    %342 = tpu.matmul %301, %80, %cst_147 {dimension_numbers = #tpu.dot_dimension_numbers<[1], [0], [0], [1], [0, 0, 1, 1], [], []>} : vector<8x32xf32>, vector<32x128xf32>, vector<8x128xf32> -> vector<8x128xf32>
    %343 = arith.addf %341, %342 : vector<8x128xf32>
    %344 = arith.negf %343 : vector<8x128xf32>
    %345 = math.exp %344 : vector<8x128xf32>
    %cst_148 = arith.constant 1.000000e+00 : f32
    %346 = vector.broadcast %cst_148 : f32 to vector<8x128xf32>
    %347 = arith.addf %346, %345 : vector<8x128xf32>
    %348 = arith.divf %346, %347 : vector<8x128xf32>
    %349 = math.tanh %343 : vector<8x128xf32>
    %350 = vector.extract_strided_slice %348 {offsets = [0, 0], sizes = [8, 32], strides = [1, 1]} : vector<8x128xf32> to vector<8x32xf32>
    %351 = vector.extract_strided_slice %348 {offsets = [0, 32], sizes = [8, 32], strides = [1, 1]} : vector<8x128xf32> to vector<8x32xf32>
    %352 = vector.extract_strided_slice %349 {offsets = [0, 64], sizes = [8, 32], strides = [1, 1]} : vector<8x128xf32> to vector<8x32xf32>
    %353 = vector.extract_strided_slice %348 {offsets = [0, 96], sizes = [8, 32], strides = [1, 1]} : vector<8x128xf32> to vector<8x32xf32>
    %354 = arith.mulf %351, %299 : vector<8x32xf32>
    %355 = arith.mulf %350, %352 : vector<8x32xf32>
    %356 = arith.addf %354, %355 : vector<8x32xf32>
    %357 = math.tanh %356 : vector<8x32xf32>
    %358 = arith.mulf %353, %357 : vector<8x32xf32>
    %cst_149 = arith.constant dense<0.000000e+00> : vector<8x128xf32>
    %359 = tpu.matmul %301, %86, %cst_149 {dimension_numbers = #tpu.dot_dimension_numbers<[1], [0], [0], [1], [0, 0, 1, 1], [], []>} : vector<8x32xf32>, vector<32x128xf32>, vector<8x128xf32> -> vector<8x128xf32>
    %360 = arith.addf %359, %94 : vector<8x128xf32>
    %cst_150 = arith.constant dense<0.000000e+00> : vector<8x128xf32>
    %361 = tpu.matmul %320, %82, %cst_150 {dimension_numbers = #tpu.dot_dimension_numbers<[1], [0], [0], [1], [0, 0, 1, 1], [], []>} : vector<8x32xf32>, vector<32x128xf32>, vector<8x128xf32> -> vector<8x128xf32>
    %362 = arith.addf %360, %361 : vector<8x128xf32>
    %363 = arith.negf %362 : vector<8x128xf32>
    %364 = math.exp %363 : vector<8x128xf32>
    %cst_151 = arith.constant 1.000000e+00 : f32
    %365 = vector.broadcast %cst_151 : f32 to vector<8x128xf32>
    %366 = arith.addf %365, %364 : vector<8x128xf32>
    %367 = arith.divf %365, %366 : vector<8x128xf32>
    %368 = math.tanh %362 : vector<8x128xf32>
    %369 = vector.extract_strided_slice %367 {offsets = [0, 0], sizes = [8, 32], strides = [1, 1]} : vector<8x128xf32> to vector<8x32xf32>
    %370 = vector.extract_strided_slice %367 {offsets = [0, 32], sizes = [8, 32], strides = [1, 1]} : vector<8x128xf32> to vector<8x32xf32>
    %371 = vector.extract_strided_slice %368 {offsets = [0, 64], sizes = [8, 32], strides = [1, 1]} : vector<8x128xf32> to vector<8x32xf32>
    %372 = vector.extract_strided_slice %367 {offsets = [0, 96], sizes = [8, 32], strides = [1, 1]} : vector<8x128xf32> to vector<8x32xf32>
    %373 = arith.mulf %370, %318 : vector<8x32xf32>
    %374 = arith.mulf %369, %371 : vector<8x32xf32>
    %375 = arith.addf %373, %374 : vector<8x32xf32>
    %376 = math.tanh %375 : vector<8x32xf32>
    %377 = arith.mulf %372, %376 : vector<8x32xf32>
    %c24_152 = arith.constant 24 : index
    %c0_153 = arith.constant 0 : index
    %378 = vector.load %arg11[%c24_152, %c0_153] : memref<72x32xf32, #tpu.memory_space<vmem>>, vector<8x32xf32>
    tpu.vector_store %arg11[%c24_152, %c0_153], %377 {strides = array<i32>} : memref<72x32xf32, #tpu.memory_space<vmem>>, vector<8x32xf32>,
    %c48_154 = arith.constant 48 : index
    %c0_155 = arith.constant 0 : index
    %379 = vector.load %arg10[%c48_154, %c0_155] : memref<72x128xf32, #tpu.memory_space<vmem>>, vector<8x128xf32>
    %cst_156 = arith.constant dense<0.000000e+00> : vector<8x128xf32>
    %380 = tpu.matmul %339, %78, %cst_156 {dimension_numbers = #tpu.dot_dimension_numbers<[1], [0], [0], [1], [0, 0, 1, 1], [], []>} : vector<8x32xf32>, vector<32x128xf32>, vector<8x128xf32> -> vector<8x128xf32>
    %381 = arith.addf %379, %380 : vector<8x128xf32>
    %382 = arith.negf %381 : vector<8x128xf32>
    %383 = math.exp %382 : vector<8x128xf32>
    %cst_157 = arith.constant 1.000000e+00 : f32
    %384 = vector.broadcast %cst_157 : f32 to vector<8x128xf32>
    %385 = arith.addf %384, %383 : vector<8x128xf32>
    %386 = arith.divf %384, %385 : vector<8x128xf32>
    %387 = math.tanh %381 : vector<8x128xf32>
    %388 = vector.extract_strided_slice %386 {offsets = [0, 0], sizes = [8, 32], strides = [1, 1]} : vector<8x128xf32> to vector<8x32xf32>
    %389 = vector.extract_strided_slice %386 {offsets = [0, 32], sizes = [8, 32], strides = [1, 1]} : vector<8x128xf32> to vector<8x32xf32>
    %390 = vector.extract_strided_slice %387 {offsets = [0, 64], sizes = [8, 32], strides = [1, 1]} : vector<8x128xf32> to vector<8x32xf32>
    %391 = vector.extract_strided_slice %386 {offsets = [0, 96], sizes = [8, 32], strides = [1, 1]} : vector<8x128xf32> to vector<8x32xf32>
    %392 = arith.mulf %389, %337 : vector<8x32xf32>
    %393 = arith.mulf %388, %390 : vector<8x32xf32>
    %394 = arith.addf %392, %393 : vector<8x32xf32>
    %395 = math.tanh %394 : vector<8x32xf32>
    %396 = arith.mulf %391, %395 : vector<8x32xf32>
    %cst_158 = arith.constant dense<0.000000e+00> : vector<8x128xf32>
    %397 = tpu.matmul %339, %84, %cst_158 {dimension_numbers = #tpu.dot_dimension_numbers<[1], [0], [0], [1], [0, 0, 1, 1], [], []>} : vector<8x32xf32>, vector<32x128xf32>, vector<8x128xf32> -> vector<8x128xf32>
    %398 = arith.addf %397, %90 : vector<8x128xf32>
    %cst_159 = arith.constant dense<0.000000e+00> : vector<8x128xf32>
    %399 = tpu.matmul %358, %80, %cst_159 {dimension_numbers = #tpu.dot_dimension_numbers<[1], [0], [0], [1], [0, 0, 1, 1], [], []>} : vector<8x32xf32>, vector<32x128xf32>, vector<8x128xf32> -> vector<8x128xf32>
    %400 = arith.addf %398, %399 : vector<8x128xf32>
    %401 = arith.negf %400 : vector<8x128xf32>
    %402 = math.exp %401 : vector<8x128xf32>
    %cst_160 = arith.constant 1.000000e+00 : f32
    %403 = vector.broadcast %cst_160 : f32 to vector<8x128xf32>
    %404 = arith.addf %403, %402 : vector<8x128xf32>
    %405 = arith.divf %403, %404 : vector<8x128xf32>
    %406 = math.tanh %400 : vector<8x128xf32>
    %407 = vector.extract_strided_slice %405 {offsets = [0, 0], sizes = [8, 32], strides = [1, 1]} : vector<8x128xf32> to vector<8x32xf32>
    %408 = vector.extract_strided_slice %405 {offsets = [0, 32], sizes = [8, 32], strides = [1, 1]} : vector<8x128xf32> to vector<8x32xf32>
    %409 = vector.extract_strided_slice %406 {offsets = [0, 64], sizes = [8, 32], strides = [1, 1]} : vector<8x128xf32> to vector<8x32xf32>
    %410 = vector.extract_strided_slice %405 {offsets = [0, 96], sizes = [8, 32], strides = [1, 1]} : vector<8x128xf32> to vector<8x32xf32>
    %411 = arith.mulf %408, %356 : vector<8x32xf32>
    %412 = arith.mulf %407, %409 : vector<8x32xf32>
    %413 = arith.addf %411, %412 : vector<8x32xf32>
    %414 = math.tanh %413 : vector<8x32xf32>
    %415 = arith.mulf %410, %414 : vector<8x32xf32>
    %cst_161 = arith.constant dense<0.000000e+00> : vector<8x128xf32>
    %416 = tpu.matmul %358, %86, %cst_161 {dimension_numbers = #tpu.dot_dimension_numbers<[1], [0], [0], [1], [0, 0, 1, 1], [], []>} : vector<8x32xf32>, vector<32x128xf32>, vector<8x128xf32> -> vector<8x128xf32>
    %417 = arith.addf %416, %94 : vector<8x128xf32>
    %cst_162 = arith.constant dense<0.000000e+00> : vector<8x128xf32>
    %418 = tpu.matmul %377, %82, %cst_162 {dimension_numbers = #tpu.dot_dimension_numbers<[1], [0], [0], [1], [0, 0, 1, 1], [], []>} : vector<8x32xf32>, vector<32x128xf32>, vector<8x128xf32> -> vector<8x128xf32>
    %419 = arith.addf %417, %418 : vector<8x128xf32>
    %420 = arith.negf %419 : vector<8x128xf32>
    %421 = math.exp %420 : vector<8x128xf32>
    %cst_163 = arith.constant 1.000000e+00 : f32
    %422 = vector.broadcast %cst_163 : f32 to vector<8x128xf32>
    %423 = arith.addf %422, %421 : vector<8x128xf32>
    %424 = arith.divf %422, %423 : vector<8x128xf32>
    %425 = math.tanh %419 : vector<8x128xf32>
    %426 = vector.extract_strided_slice %424 {offsets = [0, 0], sizes = [8, 32], strides = [1, 1]} : vector<8x128xf32> to vector<8x32xf32>
    %427 = vector.extract_strided_slice %424 {offsets = [0, 32], sizes = [8, 32], strides = [1, 1]} : vector<8x128xf32> to vector<8x32xf32>
    %428 = vector.extract_strided_slice %425 {offsets = [0, 64], sizes = [8, 32], strides = [1, 1]} : vector<8x128xf32> to vector<8x32xf32>
    %429 = vector.extract_strided_slice %424 {offsets = [0, 96], sizes = [8, 32], strides = [1, 1]} : vector<8x128xf32> to vector<8x32xf32>
    %430 = arith.mulf %427, %375 : vector<8x32xf32>
    %431 = arith.mulf %426, %428 : vector<8x32xf32>
    %432 = arith.addf %430, %431 : vector<8x32xf32>
    %433 = math.tanh %432 : vector<8x32xf32>
    %434 = arith.mulf %429, %433 : vector<8x32xf32>
    %c32_164 = arith.constant 32 : index
    %c0_165 = arith.constant 0 : index
    %435 = vector.load %arg11[%c32_164, %c0_165] : memref<72x32xf32, #tpu.memory_space<vmem>>, vector<8x32xf32>
    tpu.vector_store %arg11[%c32_164, %c0_165], %434 {strides = array<i32>} : memref<72x32xf32, #tpu.memory_space<vmem>>, vector<8x32xf32>,
    %c56_166 = arith.constant 56 : index
    %c0_167 = arith.constant 0 : index
    %436 = vector.load %arg10[%c56_166, %c0_167] : memref<72x128xf32, #tpu.memory_space<vmem>>, vector<8x128xf32>
    %cst_168 = arith.constant dense<0.000000e+00> : vector<8x128xf32>
    %437 = tpu.matmul %396, %78, %cst_168 {dimension_numbers = #tpu.dot_dimension_numbers<[1], [0], [0], [1], [0, 0, 1, 1], [], []>} : vector<8x32xf32>, vector<32x128xf32>, vector<8x128xf32> -> vector<8x128xf32>
    %438 = arith.addf %436, %437 : vector<8x128xf32>
    %439 = arith.negf %438 : vector<8x128xf32>
    %440 = math.exp %439 : vector<8x128xf32>
    %cst_169 = arith.constant 1.000000e+00 : f32
    %441 = vector.broadcast %cst_169 : f32 to vector<8x128xf32>
    %442 = arith.addf %441, %440 : vector<8x128xf32>
    %443 = arith.divf %441, %442 : vector<8x128xf32>
    %444 = math.tanh %438 : vector<8x128xf32>
    %445 = vector.extract_strided_slice %443 {offsets = [0, 0], sizes = [8, 32], strides = [1, 1]} : vector<8x128xf32> to vector<8x32xf32>
    %446 = vector.extract_strided_slice %443 {offsets = [0, 32], sizes = [8, 32], strides = [1, 1]} : vector<8x128xf32> to vector<8x32xf32>
    %447 = vector.extract_strided_slice %444 {offsets = [0, 64], sizes = [8, 32], strides = [1, 1]} : vector<8x128xf32> to vector<8x32xf32>
    %448 = vector.extract_strided_slice %443 {offsets = [0, 96], sizes = [8, 32], strides = [1, 1]} : vector<8x128xf32> to vector<8x32xf32>
    %449 = arith.mulf %446, %394 : vector<8x32xf32>
    %450 = arith.mulf %445, %447 : vector<8x32xf32>
    %451 = arith.addf %449, %450 : vector<8x32xf32>
    %452 = math.tanh %451 : vector<8x32xf32>
    %453 = arith.mulf %448, %452 : vector<8x32xf32>
    %cst_170 = arith.constant dense<0.000000e+00> : vector<8x128xf32>
    %454 = tpu.matmul %396, %84, %cst_170 {dimension_numbers = #tpu.dot_dimension_numbers<[1], [0], [0], [1], [0, 0, 1, 1], [], []>} : vector<8x32xf32>, vector<32x128xf32>, vector<8x128xf32> -> vector<8x128xf32>
    %455 = arith.addf %454, %90 : vector<8x128xf32>
    %cst_171 = arith.constant dense<0.000000e+00> : vector<8x128xf32>
    %456 = tpu.matmul %415, %80, %cst_171 {dimension_numbers = #tpu.dot_dimension_numbers<[1], [0], [0], [1], [0, 0, 1, 1], [], []>} : vector<8x32xf32>, vector<32x128xf32>, vector<8x128xf32> -> vector<8x128xf32>
    %457 = arith.addf %455, %456 : vector<8x128xf32>
    %458 = arith.negf %457 : vector<8x128xf32>
    %459 = math.exp %458 : vector<8x128xf32>
    %cst_172 = arith.constant 1.000000e+00 : f32
    %460 = vector.broadcast %cst_172 : f32 to vector<8x128xf32>
    %461 = arith.addf %460, %459 : vector<8x128xf32>
    %462 = arith.divf %460, %461 : vector<8x128xf32>
    %463 = math.tanh %457 : vector<8x128xf32>
    %464 = vector.extract_strided_slice %462 {offsets = [0, 0], sizes = [8, 32], strides = [1, 1]} : vector<8x128xf32> to vector<8x32xf32>
    %465 = vector.extract_strided_slice %462 {offsets = [0, 32], sizes = [8, 32], strides = [1, 1]} : vector<8x128xf32> to vector<8x32xf32>
    %466 = vector.extract_strided_slice %463 {offsets = [0, 64], sizes = [8, 32], strides = [1, 1]} : vector<8x128xf32> to vector<8x32xf32>
    %467 = vector.extract_strided_slice %462 {offsets = [0, 96], sizes = [8, 32], strides = [1, 1]} : vector<8x128xf32> to vector<8x32xf32>
    %468 = arith.mulf %465, %413 : vector<8x32xf32>
    %469 = arith.mulf %464, %466 : vector<8x32xf32>
    %470 = arith.addf %468, %469 : vector<8x32xf32>
    %471 = math.tanh %470 : vector<8x32xf32>
    %472 = arith.mulf %467, %471 : vector<8x32xf32>
    %cst_173 = arith.constant dense<0.000000e+00> : vector<8x128xf32>
    %473 = tpu.matmul %415, %86, %cst_173 {dimension_numbers = #tpu.dot_dimension_numbers<[1], [0], [0], [1], [0, 0, 1, 1], [], []>} : vector<8x32xf32>, vector<32x128xf32>, vector<8x128xf32> -> vector<8x128xf32>
    %474 = arith.addf %473, %94 : vector<8x128xf32>
    %cst_174 = arith.constant dense<0.000000e+00> : vector<8x128xf32>
    %475 = tpu.matmul %434, %82, %cst_174 {dimension_numbers = #tpu.dot_dimension_numbers<[1], [0], [0], [1], [0, 0, 1, 1], [], []>} : vector<8x32xf32>, vector<32x128xf32>, vector<8x128xf32> -> vector<8x128xf32>
    %476 = arith.addf %474, %475 : vector<8x128xf32>
    %477 = arith.negf %476 : vector<8x128xf32>
    %478 = math.exp %477 : vector<8x128xf32>
    %cst_175 = arith.constant 1.000000e+00 : f32
    %479 = vector.broadcast %cst_175 : f32 to vector<8x128xf32>
    %480 = arith.addf %479, %478 : vector<8x128xf32>
    %481 = arith.divf %479, %480 : vector<8x128xf32>
    %482 = math.tanh %476 : vector<8x128xf32>
    %483 = vector.extract_strided_slice %481 {offsets = [0, 0], sizes = [8, 32], strides = [1, 1]} : vector<8x128xf32> to vector<8x32xf32>
    %484 = vector.extract_strided_slice %481 {offsets = [0, 32], sizes = [8, 32], strides = [1, 1]} : vector<8x128xf32> to vector<8x32xf32>
    %485 = vector.extract_strided_slice %482 {offsets = [0, 64], sizes = [8, 32], strides = [1, 1]} : vector<8x128xf32> to vector<8x32xf32>
    %486 = vector.extract_strided_slice %481 {offsets = [0, 96], sizes = [8, 32], strides = [1, 1]} : vector<8x128xf32> to vector<8x32xf32>
    %487 = arith.mulf %484, %432 : vector<8x32xf32>
    %488 = arith.mulf %483, %485 : vector<8x32xf32>
    %489 = arith.addf %487, %488 : vector<8x32xf32>
    %490 = math.tanh %489 : vector<8x32xf32>
    %491 = arith.mulf %486, %490 : vector<8x32xf32>
    %c40_176 = arith.constant 40 : index
    %c0_177 = arith.constant 0 : index
    %492 = vector.load %arg11[%c40_176, %c0_177] : memref<72x32xf32, #tpu.memory_space<vmem>>, vector<8x32xf32>
    tpu.vector_store %arg11[%c40_176, %c0_177], %491 {strides = array<i32>} : memref<72x32xf32, #tpu.memory_space<vmem>>, vector<8x32xf32>,
    %c64_178 = arith.constant 64 : index
    %c0_179 = arith.constant 0 : index
    %493 = vector.load %arg10[%c64_178, %c0_179] : memref<72x128xf32, #tpu.memory_space<vmem>>, vector<8x128xf32>
    %cst_180 = arith.constant dense<0.000000e+00> : vector<8x128xf32>
    %494 = tpu.matmul %453, %78, %cst_180 {dimension_numbers = #tpu.dot_dimension_numbers<[1], [0], [0], [1], [0, 0, 1, 1], [], []>} : vector<8x32xf32>, vector<32x128xf32>, vector<8x128xf32> -> vector<8x128xf32>
    %495 = arith.addf %493, %494 : vector<8x128xf32>
    %496 = arith.negf %495 : vector<8x128xf32>
    %497 = math.exp %496 : vector<8x128xf32>
    %cst_181 = arith.constant 1.000000e+00 : f32
    %498 = vector.broadcast %cst_181 : f32 to vector<8x128xf32>
    %499 = arith.addf %498, %497 : vector<8x128xf32>
    %500 = arith.divf %498, %499 : vector<8x128xf32>
    %501 = math.tanh %495 : vector<8x128xf32>
    %502 = vector.extract_strided_slice %500 {offsets = [0, 0], sizes = [8, 32], strides = [1, 1]} : vector<8x128xf32> to vector<8x32xf32>
    %503 = vector.extract_strided_slice %500 {offsets = [0, 32], sizes = [8, 32], strides = [1, 1]} : vector<8x128xf32> to vector<8x32xf32>
    %504 = vector.extract_strided_slice %501 {offsets = [0, 64], sizes = [8, 32], strides = [1, 1]} : vector<8x128xf32> to vector<8x32xf32>
    %505 = vector.extract_strided_slice %500 {offsets = [0, 96], sizes = [8, 32], strides = [1, 1]} : vector<8x128xf32> to vector<8x32xf32>
    %506 = arith.mulf %503, %451 : vector<8x32xf32>
    %507 = arith.mulf %502, %504 : vector<8x32xf32>
    %508 = arith.addf %506, %507 : vector<8x32xf32>
    %509 = math.tanh %508 : vector<8x32xf32>
    %510 = arith.mulf %505, %509 : vector<8x32xf32>
    %cst_182 = arith.constant dense<0.000000e+00> : vector<8x128xf32>
    %511 = tpu.matmul %453, %84, %cst_182 {dimension_numbers = #tpu.dot_dimension_numbers<[1], [0], [0], [1], [0, 0, 1, 1], [], []>} : vector<8x32xf32>, vector<32x128xf32>, vector<8x128xf32> -> vector<8x128xf32>
    %512 = arith.addf %511, %90 : vector<8x128xf32>
    %cst_183 = arith.constant dense<0.000000e+00> : vector<8x128xf32>
    %513 = tpu.matmul %472, %80, %cst_183 {dimension_numbers = #tpu.dot_dimension_numbers<[1], [0], [0], [1], [0, 0, 1, 1], [], []>} : vector<8x32xf32>, vector<32x128xf32>, vector<8x128xf32> -> vector<8x128xf32>
    %514 = arith.addf %512, %513 : vector<8x128xf32>
    %515 = arith.negf %514 : vector<8x128xf32>
    %516 = math.exp %515 : vector<8x128xf32>
    %cst_184 = arith.constant 1.000000e+00 : f32
    %517 = vector.broadcast %cst_184 : f32 to vector<8x128xf32>
    %518 = arith.addf %517, %516 : vector<8x128xf32>
    %519 = arith.divf %517, %518 : vector<8x128xf32>
    %520 = math.tanh %514 : vector<8x128xf32>
    %521 = vector.extract_strided_slice %519 {offsets = [0, 0], sizes = [8, 32], strides = [1, 1]} : vector<8x128xf32> to vector<8x32xf32>
    %522 = vector.extract_strided_slice %519 {offsets = [0, 32], sizes = [8, 32], strides = [1, 1]} : vector<8x128xf32> to vector<8x32xf32>
    %523 = vector.extract_strided_slice %520 {offsets = [0, 64], sizes = [8, 32], strides = [1, 1]} : vector<8x128xf32> to vector<8x32xf32>
    %524 = vector.extract_strided_slice %519 {offsets = [0, 96], sizes = [8, 32], strides = [1, 1]} : vector<8x128xf32> to vector<8x32xf32>
    %525 = arith.mulf %522, %470 : vector<8x32xf32>
    %526 = arith.mulf %521, %523 : vector<8x32xf32>
    %527 = arith.addf %525, %526 : vector<8x32xf32>
    %528 = math.tanh %527 : vector<8x32xf32>
    %529 = arith.mulf %524, %528 : vector<8x32xf32>
    %cst_185 = arith.constant dense<0.000000e+00> : vector<8x128xf32>
    %530 = tpu.matmul %472, %86, %cst_185 {dimension_numbers = #tpu.dot_dimension_numbers<[1], [0], [0], [1], [0, 0, 1, 1], [], []>} : vector<8x32xf32>, vector<32x128xf32>, vector<8x128xf32> -> vector<8x128xf32>
    %531 = arith.addf %530, %94 : vector<8x128xf32>
    %cst_186 = arith.constant dense<0.000000e+00> : vector<8x128xf32>
    %532 = tpu.matmul %491, %82, %cst_186 {dimension_numbers = #tpu.dot_dimension_numbers<[1], [0], [0], [1], [0, 0, 1, 1], [], []>} : vector<8x32xf32>, vector<32x128xf32>, vector<8x128xf32> -> vector<8x128xf32>
    %533 = arith.addf %531, %532 : vector<8x128xf32>
    %534 = arith.negf %533 : vector<8x128xf32>
    %535 = math.exp %534 : vector<8x128xf32>
    %cst_187 = arith.constant 1.000000e+00 : f32
    %536 = vector.broadcast %cst_187 : f32 to vector<8x128xf32>
    %537 = arith.addf %536, %535 : vector<8x128xf32>
    %538 = arith.divf %536, %537 : vector<8x128xf32>
    %539 = math.tanh %533 : vector<8x128xf32>
    %540 = vector.extract_strided_slice %538 {offsets = [0, 0], sizes = [8, 32], strides = [1, 1]} : vector<8x128xf32> to vector<8x32xf32>
    %541 = vector.extract_strided_slice %538 {offsets = [0, 32], sizes = [8, 32], strides = [1, 1]} : vector<8x128xf32> to vector<8x32xf32>
    %542 = vector.extract_strided_slice %539 {offsets = [0, 64], sizes = [8, 32], strides = [1, 1]} : vector<8x128xf32> to vector<8x32xf32>
    %543 = vector.extract_strided_slice %538 {offsets = [0, 96], sizes = [8, 32], strides = [1, 1]} : vector<8x128xf32> to vector<8x32xf32>
    %544 = arith.mulf %541, %489 : vector<8x32xf32>
    %545 = arith.mulf %540, %542 : vector<8x32xf32>
    %546 = arith.addf %544, %545 : vector<8x32xf32>
    %547 = math.tanh %546 : vector<8x32xf32>
    %548 = arith.mulf %543, %547 : vector<8x32xf32>
    %c48_188 = arith.constant 48 : index
    %c0_189 = arith.constant 0 : index
    %549 = vector.load %arg11[%c48_188, %c0_189] : memref<72x32xf32, #tpu.memory_space<vmem>>, vector<8x32xf32>
    tpu.vector_store %arg11[%c48_188, %c0_189], %548 {strides = array<i32>} : memref<72x32xf32, #tpu.memory_space<vmem>>, vector<8x32xf32>,
    %cst_190 = arith.constant dense<0.000000e+00> : vector<8x128xf32>
    %550 = tpu.matmul %510, %84, %cst_190 {dimension_numbers = #tpu.dot_dimension_numbers<[1], [0], [0], [1], [0, 0, 1, 1], [], []>} : vector<8x32xf32>, vector<32x128xf32>, vector<8x128xf32> -> vector<8x128xf32>
    %551 = arith.addf %550, %90 : vector<8x128xf32>
    %cst_191 = arith.constant dense<0.000000e+00> : vector<8x128xf32>
    %552 = tpu.matmul %529, %80, %cst_191 {dimension_numbers = #tpu.dot_dimension_numbers<[1], [0], [0], [1], [0, 0, 1, 1], [], []>} : vector<8x32xf32>, vector<32x128xf32>, vector<8x128xf32> -> vector<8x128xf32>
    %553 = arith.addf %551, %552 : vector<8x128xf32>
    %554 = arith.negf %553 : vector<8x128xf32>
    %555 = math.exp %554 : vector<8x128xf32>
    %cst_192 = arith.constant 1.000000e+00 : f32
    %556 = vector.broadcast %cst_192 : f32 to vector<8x128xf32>
    %557 = arith.addf %556, %555 : vector<8x128xf32>
    %558 = arith.divf %556, %557 : vector<8x128xf32>
    %559 = math.tanh %553 : vector<8x128xf32>
    %560 = vector.extract_strided_slice %558 {offsets = [0, 0], sizes = [8, 32], strides = [1, 1]} : vector<8x128xf32> to vector<8x32xf32>
    %561 = vector.extract_strided_slice %558 {offsets = [0, 32], sizes = [8, 32], strides = [1, 1]} : vector<8x128xf32> to vector<8x32xf32>
    %562 = vector.extract_strided_slice %559 {offsets = [0, 64], sizes = [8, 32], strides = [1, 1]} : vector<8x128xf32> to vector<8x32xf32>
    %563 = vector.extract_strided_slice %558 {offsets = [0, 96], sizes = [8, 32], strides = [1, 1]} : vector<8x128xf32> to vector<8x32xf32>
    %564 = arith.mulf %561, %527 : vector<8x32xf32>
    %565 = arith.mulf %560, %562 : vector<8x32xf32>
    %566 = arith.addf %564, %565 : vector<8x32xf32>
    %567 = math.tanh %566 : vector<8x32xf32>
    %568 = arith.mulf %563, %567 : vector<8x32xf32>
    %cst_193 = arith.constant dense<0.000000e+00> : vector<8x128xf32>
    %569 = tpu.matmul %529, %86, %cst_193 {dimension_numbers = #tpu.dot_dimension_numbers<[1], [0], [0], [1], [0, 0, 1, 1], [], []>} : vector<8x32xf32>, vector<32x128xf32>, vector<8x128xf32> -> vector<8x128xf32>
    %570 = arith.addf %569, %94 : vector<8x128xf32>
    %cst_194 = arith.constant dense<0.000000e+00> : vector<8x128xf32>
    %571 = tpu.matmul %548, %82, %cst_194 {dimension_numbers = #tpu.dot_dimension_numbers<[1], [0], [0], [1], [0, 0, 1, 1], [], []>} : vector<8x32xf32>, vector<32x128xf32>, vector<8x128xf32> -> vector<8x128xf32>
    %572 = arith.addf %570, %571 : vector<8x128xf32>
    %573 = arith.negf %572 : vector<8x128xf32>
    %574 = math.exp %573 : vector<8x128xf32>
    %cst_195 = arith.constant 1.000000e+00 : f32
    %575 = vector.broadcast %cst_195 : f32 to vector<8x128xf32>
    %576 = arith.addf %575, %574 : vector<8x128xf32>
    %577 = arith.divf %575, %576 : vector<8x128xf32>
    %578 = math.tanh %572 : vector<8x128xf32>
    %579 = vector.extract_strided_slice %577 {offsets = [0, 0], sizes = [8, 32], strides = [1, 1]} : vector<8x128xf32> to vector<8x32xf32>
    %580 = vector.extract_strided_slice %577 {offsets = [0, 32], sizes = [8, 32], strides = [1, 1]} : vector<8x128xf32> to vector<8x32xf32>
    %581 = vector.extract_strided_slice %578 {offsets = [0, 64], sizes = [8, 32], strides = [1, 1]} : vector<8x128xf32> to vector<8x32xf32>
    %582 = vector.extract_strided_slice %577 {offsets = [0, 96], sizes = [8, 32], strides = [1, 1]} : vector<8x128xf32> to vector<8x32xf32>
    %583 = arith.mulf %580, %546 : vector<8x32xf32>
    %584 = arith.mulf %579, %581 : vector<8x32xf32>
    %585 = arith.addf %583, %584 : vector<8x32xf32>
    %586 = math.tanh %585 : vector<8x32xf32>
    %587 = arith.mulf %582, %586 : vector<8x32xf32>
    %c56_196 = arith.constant 56 : index
    %c0_197 = arith.constant 0 : index
    %588 = vector.load %arg11[%c56_196, %c0_197] : memref<72x32xf32, #tpu.memory_space<vmem>>, vector<8x32xf32>
    tpu.vector_store %arg11[%c56_196, %c0_197], %587 {strides = array<i32>} : memref<72x32xf32, #tpu.memory_space<vmem>>, vector<8x32xf32>,
    %cst_198 = arith.constant dense<0.000000e+00> : vector<8x128xf32>
    %589 = tpu.matmul %568, %86, %cst_198 {dimension_numbers = #tpu.dot_dimension_numbers<[1], [0], [0], [1], [0, 0, 1, 1], [], []>} : vector<8x32xf32>, vector<32x128xf32>, vector<8x128xf32> -> vector<8x128xf32>
    %590 = arith.addf %589, %94 : vector<8x128xf32>
    %cst_199 = arith.constant dense<0.000000e+00> : vector<8x128xf32>
    %591 = tpu.matmul %587, %82, %cst_199 {dimension_numbers = #tpu.dot_dimension_numbers<[1], [0], [0], [1], [0, 0, 1, 1], [], []>} : vector<8x32xf32>, vector<32x128xf32>, vector<8x128xf32> -> vector<8x128xf32>
    %592 = arith.addf %590, %591 : vector<8x128xf32>
    %593 = arith.negf %592 : vector<8x128xf32>
    %594 = math.exp %593 : vector<8x128xf32>
    %cst_200 = arith.constant 1.000000e+00 : f32
    %595 = vector.broadcast %cst_200 : f32 to vector<8x128xf32>
    %596 = arith.addf %595, %594 : vector<8x128xf32>
    %597 = arith.divf %595, %596 : vector<8x128xf32>
    %598 = math.tanh %592 : vector<8x128xf32>
    %599 = vector.extract_strided_slice %597 {offsets = [0, 0], sizes = [8, 32], strides = [1, 1]} : vector<8x128xf32> to vector<8x32xf32>
    %600 = vector.extract_strided_slice %597 {offsets = [0, 32], sizes = [8, 32], strides = [1, 1]} : vector<8x128xf32> to vector<8x32xf32>
    %601 = vector.extract_strided_slice %598 {offsets = [0, 64], sizes = [8, 32], strides = [1, 1]} : vector<8x128xf32> to vector<8x32xf32>
    %602 = vector.extract_strided_slice %597 {offsets = [0, 96], sizes = [8, 32], strides = [1, 1]} : vector<8x128xf32> to vector<8x32xf32>
    %603 = arith.mulf %600, %585 : vector<8x32xf32>
    %604 = arith.mulf %599, %601 : vector<8x32xf32>
    %605 = arith.addf %603, %604 : vector<8x32xf32>
    %606 = math.tanh %605 : vector<8x32xf32>
    %607 = arith.mulf %602, %606 : vector<8x32xf32>
    %c64_201 = arith.constant 64 : index
    %c0_202 = arith.constant 0 : index
    %608 = vector.load %arg11[%c64_201, %c0_202] : memref<72x32xf32, #tpu.memory_space<vmem>>, vector<8x32xf32>
    tpu.vector_store %arg11[%c64_201, %c0_202], %607 {strides = array<i32>} : memref<72x32xf32, #tpu.memory_space<vmem>>, vector<8x32xf32>,
    %c0_203 = arith.constant 0 : index
    %c0_204 = arith.constant 0 : index
    %609 = vector.load %arg11[%c0_203, %c0_204] : memref<72x32xf32, #tpu.memory_space<vmem>>, vector<72x32xf32>
    %c0_205 = arith.constant 0 : index
    %c0_206 = arith.constant 0 : index
    %610 = vector.load %arg6[%c0_205, %c0_206] : memref<32x128xf32, #tpu.memory_space<vmem>>, vector<32x128xf32>
    %cst_207 = arith.constant dense<0.000000e+00> : vector<72x128xf32>
    %611 = tpu.matmul %609, %610, %cst_207 {dimension_numbers = #tpu.dot_dimension_numbers<[1], [0], [0], [1], [0, 0, 1, 1], [], []>} : vector<72x32xf32>, vector<32x128xf32>, vector<72x128xf32> -> vector<72x128xf32>
    %c0_208 = arith.constant 0 : index
    %c0_209 = arith.constant 0 : index
    %612 = vector.load %arg7[%c0_208, %c0_209] : memref<1x128xf32, #tpu.memory_space<vmem>>, vector<1x128xf32>
    %613 = vector.broadcast %612 : vector<1x128xf32> to vector<72x128xf32>
    %614 = arith.addf %611, %613 : vector<72x128xf32>
    %c0_210 = arith.constant 0 : index
    %c0_211 = arith.constant 0 : index
    %615 = vector.load %arg8[%c0_210, %c0_211] : memref<72x128xf32, #tpu.memory_space<vmem>>, vector<72x128xf32>
    tpu.vector_store %arg8[%c0_210, %c0_211], %614 {strides = array<i32>} : memref<72x128xf32, #tpu.memory_space<vmem>>, vector<72x128xf32>,
    return
  }
}

</mosaic_0001>

<llo_original>
// kernel: _lstm_decoder_forward.1
$region0: #{_lstm_decoder_forward.1}
  #allocation0 [shape = 'u32[]', space=smem, size = 0x4, offset = 0x4, fixed_abs, tag = 'smem constant byte address 0x4 - core index']
  #allocation1 [shape = 'u32[144,128]{1,0:T(1,128)}', space=vmem, size = 0x12000, scoped, tag = 'internal scratch']
  #allocation2 [shape = 'f32[72,32]{1,0:T(8,128)}', space=vmem, size = 0x9000, scoped, tag = 'scratch operand']
  #allocation3 [shape = 'f32[72,128]{1,0:T(8,128)}', space=vmem, size = 0x9000, scoped, tag = 'scratch operand']
  #allocation4 [shape = 'f32[72,32]{1,0:T(8,128)}', space=vmem, size = 0x9000, scoped, tag = 'scratch operand']
  %s0 = inlined_call_operand.vmem [shape: s32[2,8], index: 0, kind: input, shape index: {}]
  %s1 = inlined_call_operand.vmem [shape: f32[2,32], index: 1, kind: input, shape index: {}]
  %s2 = inlined_call_operand.vmem [shape: f32[128,32], index: 2, kind: input, shape index: {}]
  %s3 = inlined_call_operand.vmem [shape: f32[3,32,128], index: 3, kind: input, shape index: {}]
  %s4 = inlined_call_operand.vmem [shape: f32[3,32,128], index: 4, kind: input, shape index: {}]
  %s5 = inlined_call_operand.vmem [shape: f32[3,1,128], index: 5, kind: input, shape index: {}]
  %s6 = inlined_call_operand.vmem [shape: f32[32,128], index: 6, kind: input, shape index: {}]
  %s7 = inlined_call_operand.vmem [shape: f32[1,128], index: 7, kind: input, shape index: {}]
  %s8 = inlined_call_operand.vmem [shape: f32[72,128], index: 8, kind: output, shape index: {}]
  %s9 = sld [smem:[#allocation0]]
  $region46: #{_lstm_decoder_forward.1} parent=0
    _
  %s11 = ssub.s32 1, %s9
  %s12 = scalar_select 0, %s11, %s9
  $region1: #{_lstm_decoder_forward.1} parent=0
    #allocation5 [shape = 'u8[1024]{0}', space=smem, size = 0x400, scoped, tag = 'input window, operand 0, single buffered']
    #allocation6 [shape = 's32[1]{0}', space=sflag, size = 0x4, scoped, tag = 'scoped memory for _lstm_decoder_forward.1']
    %13 = vsyncpa [#allocation6], 0
    // Predicated region
    $region2: #{_lstm_decoder_forward.1} parent=1 // pred_check
      _
    $region3: #{_lstm_decoder_forward.1} parent=1 // pred_check_branch
      %15 = sbr.rel (0) target = $region5
    $region4: #{_lstm_decoder_forward.1} parent=1 // pred_region
      %s17 = ssub.s32 32, 32
      %18 = vsyncadd [#allocation6], %s17
      %s20 = sshll.u32 %s0, 4
      %s21 = int_to_ptr.vmem [resolvable:$true] %s20
      %23 = dma.vmem_to_smem %s21, 32, [#allocation5], [#allocation6]
    $region5: #{_lstm_decoder_forward.1} parent=1 // pred_fallthru
      _
    // Predicated region
    $region6: #{_lstm_decoder_forward.1} parent=1 // pred_check
      _
    $region7: #{_lstm_decoder_forward.1} parent=1 // pred_check_branch
      %25 = sbr.rel (0) target = $region9
    $region8: #{_lstm_decoder_forward.1} parent=1 // pred_region
      _
    $region9: #{_lstm_decoder_forward.1} parent=1 // pred_fallthru
      _
    // Predicated region
    $region10: #{_lstm_decoder_forward.1} parent=1 // pred_check
      _
    $region11: #{_lstm_decoder_forward.1} parent=1 // pred_check_branch
      %27 = sbr.rel (0) target = $region13
    $region12: #{_lstm_decoder_forward.1} parent=1 // pred_region
      _
    $region13: #{_lstm_decoder_forward.1} parent=1 // pred_fallthru
      _
    // Predicated region
    $region14: #{_lstm_decoder_forward.1} parent=1 // pred_check
      _
    $region15: #{_lstm_decoder_forward.1} parent=1 // pred_check_branch
      %29 = sbr.rel (0) target = $region17
    $region16: #{_lstm_decoder_forward.1} parent=1 // pred_region
      _
    $region17: #{_lstm_decoder_forward.1} parent=1 // pred_fallthru
      _
    // Predicated region
    $region18: #{_lstm_decoder_forward.1} parent=1 // pred_check
      _
    $region19: #{_lstm_decoder_forward.1} parent=1 // pred_check_branch
      %31 = sbr.rel (0) target = $region21
    $region20: #{_lstm_decoder_forward.1} parent=1 // pred_region
      _
    $region21: #{_lstm_decoder_forward.1} parent=1 // pred_fallthru
      _
    // Predicated region
    $region22: #{_lstm_decoder_forward.1} parent=1 // pred_check
      _
    $region23: #{_lstm_decoder_forward.1} parent=1 // pred_check_branch
      %33 = sbr.rel (0) target = $region25
    $region24: #{_lstm_decoder_forward.1} parent=1 // pred_region
      _
    $region25: #{_lstm_decoder_forward.1} parent=1 // pred_fallthru
      _
    // Predicated region
    $region26: #{_lstm_decoder_forward.1} parent=1 // pred_check
      _
    $region27: #{_lstm_decoder_forward.1} parent=1 // pred_check_branch
      %35 = sbr.rel (0) target = $region29
    $region28: #{_lstm_decoder_forward.1} parent=1 // pred_region
      _
    $region29: #{_lstm_decoder_forward.1} parent=1 // pred_fallthru
      _
    // Predicated region
    $region30: #{_lstm_decoder_forward.1} parent=1 // pred_check
      _
    $region31: #{_lstm_decoder_forward.1} parent=1 // pred_check_branch
      %37 = sbr.rel (0) target = $region33
    $region32: #{_lstm_decoder_forward.1} parent=1 // pred_region
      _
    $region33: #{_lstm_decoder_forward.1} parent=1 // pred_fallthru
      _
    // Predicated region
    $region34: #{_lstm_decoder_forward.1} parent=1 // pred_check
      _
    $region35: #{_lstm_decoder_forward.1} parent=1 // pred_check_branch
      %39 = sbr.rel (0) target = $region37
    $region36: #{_lstm_decoder_forward.1} parent=1 // pred_region
      %40 = dma.done [#allocation6], 32
    $region37: #{_lstm_decoder_forward.1} parent=1 // pred_fallthru
      _
    %41 = sfence
    %vm42 = vcmask 261120
    %43 = vst.msk [vmem:[#allocation2] sm:$0xff] %vm42, 0.0
    %44 = vst.msk [vmem:[#allocation2 + $0x8] sm:$0xff] %vm42, 0.0
    %45 = vst.msk [vmem:[#allocation2 + $0x10] sm:$0xff] %vm42, 0.0
    %46 = vst.msk [vmem:[#allocation2 + $0x18] sm:$0xff] %vm42, 0.0
    %47 = vst.msk [vmem:[#allocation2 + $0x20] sm:$0xff] %vm42, 0.0
    %48 = vst.msk [vmem:[#allocation2 + $0x28] sm:$0xff] %vm42, 0.0
    %49 = vst.msk [vmem:[#allocation2 + $0x30] sm:$0xff] %vm42, 0.0
    %50 = vst.msk [vmem:[#allocation2 + $0x38] sm:$0xff] %vm42, 0.0
    %51 = vst.msk [vmem:[#allocation2 + $0x40] sm:$0xff] %vm42, 0.0
    %v52 = vld [vmem:[%s1] sm:$0x3]
    %vm53 = vcmask 254976
    %54 = vst.msk [vmem:[#allocation2] sm:$0x3] %vm53, %v52
    %s55 = sld [smem:[#allocation5]]
    %s56 = scalar_lea.vmem %s2, %s55
    %v57 = vld [vmem:[%s56] sm:$0x1]
    %vm58 = vcmask 253952
    %59 = vst.msk [vmem:[#allocation2 + $0x8] sm:$0x1] %vm58, %v57
    %s60 = sld [smem:[#allocation5 + $0x80]]
    %s61 = scalar_lea.vmem %s2, %s60
    %v62 = vld [vmem:[%s61] sm:$0x1]
    %63 = vst.msk [vmem:[#allocation2 + $0x9] sm:$0x1] %vm58, %v62
    %s64 = sld [smem:[#allocation5 + $0x1]]
    %s65 = scalar_lea.vmem %s2, %s64
    %v66 = vld [vmem:[%s65] sm:$0x1]
    %67 = vst.msk [vmem:[#allocation2 + $0x10] sm:$0x1] %vm58, %v66
    %s68 = sld [smem:[#allocation5 + $0x81]]
    %s69 = scalar_lea.vmem %s2, %s68
    %v70 = vld [vmem:[%s69] sm:$0x1]
    %71 = vst.msk [vmem:[#allocation2 + $0x11] sm:$0x1] %vm58, %v70
    %s72 = sld [smem:[#allocation5 + $0x2]]
    %s73 = scalar_lea.vmem %s2, %s72
    %v74 = vld [vmem:[%s73] sm:$0x1]
    %75 = vst.msk [vmem:[#allocation2 + $0x18] sm:$0x1] %vm58, %v74
    %s76 = sld [smem:[#allocation5 + $0x82]]
    %s77 = scalar_lea.vmem %s2, %s76
    %v78 = vld [vmem:[%s77] sm:$0x1]
    %79 = vst.msk [vmem:[#allocation2 + $0x19] sm:$0x1] %vm58, %v78
    %s80 = sld [smem:[#allocation5 + $0x3]]
    %s81 = scalar_lea.vmem %s2, %s80
    %v82 = vld [vmem:[%s81] sm:$0x1]
    %83 = vst.msk [vmem:[#allocation2 + $0x20] sm:$0x1] %vm58, %v82
    %s84 = sld [smem:[#allocation5 + $0x83]]
    %s85 = scalar_lea.vmem %s2, %s84
    %v86 = vld [vmem:[%s85] sm:$0x1]
    %87 = vst.msk [vmem:[#allocation2 + $0x21] sm:$0x1] %vm58, %v86
    %s88 = sld [smem:[#allocation5 + $0x4]]
    %s89 = scalar_lea.vmem %s2, %s88
    %v90 = vld [vmem:[%s89] sm:$0x1]
    %91 = vst.msk [vmem:[#allocation2 + $0x28] sm:$0x1] %vm58, %v90
    %s92 = sld [smem:[#allocation5 + $0x84]]
    %s93 = scalar_lea.vmem %s2, %s92
    %v94 = vld [vmem:[%s93] sm:$0x1]
    %95 = vst.msk [vmem:[#allocation2 + $0x29] sm:$0x1] %vm58, %v94
    %s96 = sld [smem:[#allocation5 + $0x5]]
    %s97 = scalar_lea.vmem %s2, %s96
    %v98 = vld [vmem:[%s97] sm:$0x1]
    %99 = vst.msk [vmem:[#allocation2 + $0x30] sm:$0x1] %vm58, %v98
    %s100 = sld [smem:[#allocation5 + $0x85]]
    %s101 = scalar_lea.vmem %s2, %s100
    %v102 = vld [vmem:[%s101] sm:$0x1]
    %103 = vst.msk [vmem:[#allocation2 + $0x31] sm:$0x1] %vm58, %v102
    %s104 = sld [smem:[#allocation5 + $0x6]]
    %s105 = scalar_lea.vmem %s2, %s104
    %v106 = vld [vmem:[%s105] sm:$0x1]
    %107 = vst.msk [vmem:[#allocation2 + $0x38] sm:$0x1] %vm58, %v106
    %s108 = sld [smem:[#allocation5 + $0x86]]
    %s109 = scalar_lea.vmem %s2, %s108
    %v110 = vld [vmem:[%s109] sm:$0x1]
    %111 = vst.msk [vmem:[#allocation2 + $0x39] sm:$0x1] %vm58, %v110
    %s112 = sld [smem:[#allocation5 + $0x7]]
    %s113 = scalar_lea.vmem %s2, %s112
    %v114 = vld [vmem:[%s113] sm:$0x1]
    %115 = vst.msk [vmem:[#allocation2 + $0x40] sm:$0x1] %vm58, %v114
    %s116 = sld [smem:[#allocation5 + $0x87]]
    %s117 = scalar_lea.vmem %s2, %s116
    %v118 = vld [vmem:[%s117] sm:$0x1]
    %119 = vst.msk [vmem:[#allocation2 + $0x41] sm:$0x1] %vm58, %v118
    %v120 = vld [vmem:[#allocation2] sm:$0xff]
    %v121 = vld [vmem:[#allocation2 + $0x8] sm:$0xff]
    %v122 = vld [vmem:[#allocation2 + $0x10] sm:$0xff]
    %v123 = vld [vmem:[#allocation2 + $0x18] sm:$0xff]
    %v124 = vld [vmem:[#allocation2 + $0x20] sm:$0xff]
    %v125 = vld [vmem:[#allocation2 + $0x28] sm:$0xff]
    %v126 = vld [vmem:[#allocation2 + $0x30] sm:$0xff]
    %v127 = vld [vmem:[#allocation2 + $0x38] sm:$0xff]
    %v128 = vld [vmem:[#allocation2 + $0x40] sm:$0xff]
    %v129 = vld [vmem:[%s3] sm:$0xff]
    %v130 = vld [vmem:[%s3 + $0x8] sm:$0xff]
    %v131 = vld [vmem:[%s3 + $0x10] sm:$0xff]
    %v132 = vld [vmem:[%s3 + $0x18] sm:$0xff]
    %v133 = vld [vmem:[%s5] sm:$0x1]
    %v135 = vlaneseq
    %v136 = vshrl.u32 %v135, 7
    %v137 = vsub.s32 0, %v136
    %v138 = vrot.slane %v133, %v137
    %v141 = vsel %vm42, %v120, 0
    %v144 = vsel %vm42, %v121, 0
    %v147 = vsel %vm42, %v122, 0
    %v150 = vsel %vm42, %v123, 0
    %v153 = vsel %vm42, %v124, 0
    %v156 = vsel %vm42, %v125, 0
    %v159 = vsel %vm42, %v126, 0
    %v162 = vsel %vm42, %v127, 0
    %v165 = vsel %vm42, %v128, 0
    %167 = vmatprep.subr.mxu0 0.0
    %168 = vmatpush1.msra.mxu0 %v129
    %169 = vmatprep.subr.mxu0 0.0
    %170 = vmatpush1.msra.mxu0 %v130
    %171 = vmatprep.subr.mxu0 0.0
    %172 = vmatpush1.msra.mxu0 %v131
    %173 = vmatprep.subr.mxu0 0.0
    %174 = vmatpush1.msra.mxu0 %v132
    %175 = vmatprep.subr.mxu0 0.0
    %176 = vmatpush1.msra.mxu0 0.0
    %177 = vmatprep.subr.mxu0 0.0
    %178 = vmatpush1.msra.mxu0 0.0
    %179 = vmatprep.subr.mxu0 0.0
    %180 = vmatpush1.msra.mxu0 0.0
    %181 = vmatprep.subr.mxu0 0.0
    %182 = vmatpush1.msra.mxu0 0.0
    %183 = vmatprep.subr.mxu0 0.0
    %184 = vmatpush1.msra.mxu0 0.0
    %185 = vmatprep.subr.mxu0 0.0
    %186 = vmatpush1.msra.mxu0 0.0
    %187 = vmatprep.subr.mxu0 0.0
    %188 = vmatpush1.msra.mxu0 0.0
    %189 = vmatprep.subr.mxu0 0.0
    %190 = vmatpush1.msra.mxu0 0.0
    %191 = vmatprep.subr.mxu0 0.0
    %192 = vmatpush1.msra.mxu0 0.0
    %193 = vmatprep.subr.mxu0 0.0
    %194 = vmatpush1.msra.mxu0 0.0
    %195 = vmatprep.subr.mxu0 0.0
    %196 = vmatpush1.msra.mxu0 0.0
    %197 = vmatprep.subr.mxu0 0.0
    %198 = vmatpush1.msra.mxu0 0.0
    %199 = vmatprep.subr.mxu0 0.0
    %200 = vmatpush1.msra.mxu0 0.0
    %201 = vmatprep.subr.mxu0 0.0
    %202 = vmatpush1.msra.mxu0 0.0
    %203 = vmatprep.subr.mxu0 0.0
    %204 = vmatpush1.msra.mxu0 0.0
    %205 = vmatprep.subr.mxu0 0.0
    %206 = vmatpush1.msra.mxu0 0.0
    %207 = vmatprep.subr.mxu0 0.0
    %208 = vmatpush1.msra.mxu0 0.0
    %209 = vmatprep.subr.mxu0 0.0
    %210 = vmatpush1.msra.mxu0 0.0
    %211 = vmatprep.subr.mxu0 0.0
    %212 = vmatpush1.msra.mxu0 0.0
    %213 = vmatprep.subr.mxu0 0.0
    %214 = vmatpush1.msra.mxu0 0.0
    %215 = vmatprep.subr.mxu0 0.0
    %216 = vmatpush1.msra.mxu0 0.0
    %217 = vmatprep.subr.mxu0 0.0
    %218 = vmatpush1.msra.mxu0 0.0
    %219 = vmatprep.subr.mxu0 0.0
    %220 = vmatpush1.msra.mxu0 0.0
    %221 = vmatprep.subr.mxu0 0.0
    %222 = vmatpush1.msra.mxu0 0.0
    %223 = vmatprep.subr.mxu0 0.0
    %224 = vmatpush1.msra.mxu0 0.0
    %225 = vmatprep.subr.mxu0 0.0
    %226 = vmatpush1.msra.mxu0 0.0
    %227 = vmatprep.subr.mxu0 0.0
    %228 = vmatpush1.msra.mxu0 0.0
    %229 = vmatprep.subr.mxu0 0.0
    %230 = vmatpush1.msra.mxu0 0.0
    %231 = vmatprep.mubr.f32.mxu0 0.0
    %232 = vmatmul.mubr.f32.gmra.mrb[0].mxu0 %v141
    %v233 = vpop.f32.mrb[0].mxu0
    %v234 = vadd.f32 %v138, %v233
    %v235 = vpop.f32.mrb[0].mxu0
    %236 = vmatprep.mubr.f32.mxu0 0.0
    %237 = vmatmul.mubr.f32.gmra.mrb[0].mxu0 %v144
    %v238 = vpop.f32.mrb[0].mxu0
    %v239 = vadd.f32 %v138, %v238
    %v240 = vpop.f32.mrb[0].mxu0
    %241 = vmatprep.mubr.f32.mxu0 0.0
    %242 = vmatmul.mubr.f32.gmra.mrb[0].mxu0 %v147
    %v243 = vpop.f32.mrb[0].mxu0
    %v244 = vadd.f32 %v138, %v243
    %v245 = vpop.f32.mrb[0].mxu0
    %246 = vmatprep.mubr.f32.mxu0 0.0
    %247 = vmatmul.mubr.f32.gmra.mrb[0].mxu0 %v150
    %v248 = vpop.f32.mrb[0].mxu0
    %v249 = vadd.f32 %v138, %v248
    %v250 = vpop.f32.mrb[0].mxu0
    %251 = vmatprep.mubr.f32.mxu0 0.0
    %252 = vmatmul.mubr.f32.gmra.mrb[0].mxu0 %v153
    %v253 = vpop.f32.mrb[0].mxu0
    %v254 = vadd.f32 %v138, %v253
    %v255 = vpop.f32.mrb[0].mxu0
    %256 = vmatprep.mubr.f32.mxu0 0.0
    %257 = vmatmul.mubr.f32.gmra.mrb[0].mxu0 %v156
    %v258 = vpop.f32.mrb[0].mxu0
    %v259 = vadd.f32 %v138, %v258
    %v260 = vpop.f32.mrb[0].mxu0
    %261 = vmatprep.mubr.f32.mxu0 0.0
    %262 = vmatmul.mubr.f32.gmra.mrb[0].mxu0 %v159
    %v263 = vpop.f32.mrb[0].mxu0
    %v264 = vadd.f32 %v138, %v263
    %v265 = vpop.f32.mrb[0].mxu0
    %266 = vmatprep.mubr.f32.mxu0 0.0
    %267 = vmatmul.mubr.f32.gmra.mrb[0].mxu0 %v162
    %v268 = vpop.f32.mrb[0].mxu0
    %v269 = vadd.f32 %v138, %v268
    %v270 = vpop.f32.mrb[0].mxu0
    %271 = vmatprep.mubr.f32.mxu0 0.0
    %272 = vmatmul.mubr.f32.gmra.mrb[0].mxu0 %v165
    %v273 = vpop.f32.mrb[0].mxu0
    %v274 = vadd.f32 %v138, %v273
    %v275 = vpop.f32.mrb[0].mxu0
    %276 = vdwg.mxu0
    %277 = vst [vmem:[#allocation3] sm:$0xff] %v234
    %278 = vst [vmem:[#allocation3 + $0x8] sm:$0xff] %v239
    %279 = vst [vmem:[#allocation3 + $0x10] sm:$0xff] %v244
    %280 = vst [vmem:[#allocation3 + $0x18] sm:$0xff] %v249
    %281 = vst [vmem:[#allocation3 + $0x20] sm:$0xff] %v254
    %282 = vst [vmem:[#allocation3 + $0x28] sm:$0xff] %v259
    %283 = vst [vmem:[#allocation3 + $0x30] sm:$0xff] %v264
    %284 = vst [vmem:[#allocation3 + $0x38] sm:$0xff] %v269
    %285 = vst [vmem:[#allocation3 + $0x40] sm:$0xff] %v274
    %v286 = vld [vmem:[%s4] sm:$0xff]
    %v287 = vld [vmem:[%s4 + $0x8] sm:$0xff]
    %v288 = vld [vmem:[%s4 + $0x10] sm:$0xff]
    %v289 = vld [vmem:[%s4 + $0x18] sm:$0xff]
    %s290 = scalar_lea.vmem %s4, 32
    %v291 = vld [vmem:[%s290] sm:$0xff]
    %v292 = vld [vmem:[%s290 + $0x8] sm:$0xff]
    %v293 = vld [vmem:[%s290 + $0x10] sm:$0xff]
    %v294 = vld [vmem:[%s290 + $0x18] sm:$0xff]
    %s295 = scalar_lea.vmem %s4, 64
    %v296 = vld [vmem:[%s295] sm:$0xff]
    %v297 = vld [vmem:[%s295 + $0x8] sm:$0xff]
    %v298 = vld [vmem:[%s295 + $0x10] sm:$0xff]
    %v299 = vld [vmem:[%s295 + $0x18] sm:$0xff]
    %s300 = scalar_lea.vmem %s3, 32
    %v301 = vld [vmem:[%s300] sm:$0xff]
    %v302 = vld [vmem:[%s300 + $0x8] sm:$0xff]
    %v303 = vld [vmem:[%s300 + $0x10] sm:$0xff]
    %v304 = vld [vmem:[%s300 + $0x18] sm:$0xff]
    %s305 = scalar_lea.vmem %s3, 64
    %v306 = vld [vmem:[%s305] sm:$0xff]
    %v307 = vld [vmem:[%s305 + $0x8] sm:$0xff]
    %v308 = vld [vmem:[%s305 + $0x10] sm:$0xff]
    %v309 = vld [vmem:[%s305 + $0x18] sm:$0xff]
    %s310 = scalar_lea.vmem %s5, 1
    %v311 = vld [vmem:[%s310] sm:$0x1]
    %v313 = vlaneseq
    %v314 = vshrl.u32 %v313, 7
    %v315 = vsub.s32 0, %v314
    %v316 = vrot.slane %v311, %v315
    %s318 = scalar_lea.vmem %s5, 2
    %v319 = vld [vmem:[%s318] sm:$0x1]
    %v321 = vlaneseq
    %v322 = vshrl.u32 %v321, 7
    %v323 = vsub.s32 0, %v322
    %v324 = vrot.slane %v319, %v323
    %v326 = vld [vmem:[#allocation3] sm:$0xff]
    %v328 = vsel %vm42, 0.0, 0
    %330 = vmatprep.subr.mxu0 0.0
    %331 = vmatpush1.msra.mxu0 %v286
    %332 = vmatprep.subr.mxu0 0.0
    %333 = vmatpush1.msra.mxu0 %v287
    %334 = vmatprep.subr.mxu0 0.0
    %335 = vmatpush1.msra.mxu0 %v288
    %336 = vmatprep.subr.mxu0 0.0
    %337 = vmatpush1.msra.mxu0 %v289
    %338 = vmatprep.subr.mxu0 0.0
    %339 = vmatpush1.msra.mxu0 0.0
    %340 = vmatprep.subr.mxu0 0.0
    %341 = vmatpush1.msra.mxu0 0.0
    %342 = vmatprep.subr.mxu0 0.0
    %343 = vmatpush1.msra.mxu0 0.0
    %344 = vmatprep.subr.mxu0 0.0
    %345 = vmatpush1.msra.mxu0 0.0
    %346 = vmatprep.subr.mxu0 0.0
    %347 = vmatpush1.msra.mxu0 0.0
    %348 = vmatprep.subr.mxu0 0.0
    %349 = vmatpush1.msra.mxu0 0.0
    %350 = vmatprep.subr.mxu0 0.0
    %351 = vmatpush1.msra.mxu0 0.0
    %352 = vmatprep.subr.mxu0 0.0
    %353 = vmatpush1.msra.mxu0 0.0
    %354 = vmatprep.subr.mxu0 0.0
    %355 = vmatpush1.msra.mxu0 0.0
    %356 = vmatprep.subr.mxu0 0.0
    %357 = vmatpush1.msra.mxu0 0.0
    %358 = vmatprep.subr.mxu0 0.0
    %359 = vmatpush1.msra.mxu0 0.0
    %360 = vmatprep.subr.mxu0 0.0
    %361 = vmatpush1.msra.mxu0 0.0
    %362 = vmatprep.subr.mxu0 0.0
    %363 = vmatpush1.msra.mxu0 0.0
    %364 = vmatprep.subr.mxu0 0.0
    %365 = vmatpush1.msra.mxu0 0.0
    %366 = vmatprep.subr.mxu0 0.0
    %367 = vmatpush1.msra.mxu0 0.0
    %368 = vmatprep.subr.mxu0 0.0
    %369 = vmatpush1.msra.mxu0 0.0
    %370 = vmatprep.subr.mxu0 0.0
    %371 = vmatpush1.msra.mxu0 0.0
    %372 = vmatprep.subr.mxu0 0.0
    %373 = vmatpush1.msra.mxu0 0.0
    %374 = vmatprep.subr.mxu0 0.0
    %375 = vmatpush1.msra.mxu0 0.0
    %376 = vmatprep.subr.mxu0 0.0
    %377 = vmatpush1.msra.mxu0 0.0
    %378 = vmatprep.subr.mxu0 0.0
    %379 = vmatpush1.msra.mxu0 0.0
    %380 = vmatprep.subr.mxu0 0.0
    %381 = vmatpush1.msra.mxu0 0.0
    %382 = vmatprep.subr.mxu0 0.0
    %383 = vmatpush1.msra.mxu0 0.0
    %384 = vmatprep.subr.mxu0 0.0
    %385 = vmatpush1.msra.mxu0 0.0
    %386 = vmatprep.subr.mxu0 0.0
    %387 = vmatpush1.msra.mxu0 0.0
    %388 = vmatprep.subr.mxu0 0.0
    %389 = vmatpush1.msra.mxu0 0.0
    %390 = vmatprep.subr.mxu0 0.0
    %391 = vmatpush1.msra.mxu0 0.0
    %392 = vmatprep.subr.mxu0 0.0
    %393 = vmatpush1.msra.mxu0 0.0
    %394 = vmatprep.mubr.f32.mxu0 0.0
    %395 = vmatmul.mubr.f32.gmra.mrb[0].mxu0 %v328
    %v396 = vpop.f32.mrb[0].mxu0
    %v397 = vadd.f32 0.0, %v396
    %v398 = vpop.f32.mrb[0].mxu0
    %399 = vdwg.mxu0
    %v400 = vadd.f32 %v326, %v397
    %v401 = vxor.u32 %v400, 2147483648
    %v402 = vmul.f32 %v401, 1.442695
    %v403 = vpow.pop %v402
    %v404 = vadd.f32 %v403, 1.0
    %v405 = vrcp.pop %v404
    %v406 = vmul.f32 1.0, %v405
    %v407 = vtanh.pop %v400
    %v408 = vmul.f32 %v406, 0.0
    %410 = vrot.lane.b32.xlu0 %v407, 64
    %v411 = vpop.permute.xlu0 %410
    %v413 = vmul.f32 %v406, %v411
    %415 = vrot.lane.b32.xlu0 %v413, 32
    %v416 = vpop.permute.xlu0 %415
    %v418 = vadd.f32 %v408, %v416
    %v419 = vtanh.pop %v418
    %421 = vrot.lane.b32.xlu0 %v419, 64
    %v422 = vpop.permute.xlu0 %421
    %v424 = vmul.f32 %v406, %v422
    %v425 = vld [vmem:[#allocation3 + $0x8] sm:$0xff]
    %427 = vrot.lane.b32.xlu0 %v424, 32
    %v428 = vpop.permute.xlu0 %427
    %v429 = vsel %vm42, %v428, 0
    %431 = vmatprep.subr.mxu0 0.0
    %432 = vmatpush1.msra.mxu0 %v286
    %433 = vmatprep.subr.mxu0 0.0
    %434 = vmatpush1.msra.mxu0 %v287
    %435 = vmatprep.subr.mxu0 0.0
    %436 = vmatpush1.msra.mxu0 %v288
    %437 = vmatprep.subr.mxu0 0.0
    %438 = vmatpush1.msra.mxu0 %v289
    %439 = vmatprep.subr.mxu0 0.0
    %440 = vmatpush1.msra.mxu0 0.0
    %441 = vmatprep.subr.mxu0 0.0
    %442 = vmatpush1.msra.mxu0 0.0
    %443 = vmatprep.subr.mxu0 0.0
    %444 = vmatpush1.msra.mxu0 0.0
    %445 = vmatprep.subr.mxu0 0.0
    %446 = vmatpush1.msra.mxu0 0.0
    %447 = vmatprep.subr.mxu0 0.0
    %448 = vmatpush1.msra.mxu0 0.0
    %449 = vmatprep.subr.mxu0 0.0
    %450 = vmatpush1.msra.mxu0 0.0
    %451 = vmatprep.subr.mxu0 0.0
    %452 = vmatpush1.msra.mxu0 0.0
    %453 = vmatprep.subr.mxu0 0.0
    %454 = vmatpush1.msra.mxu0 0.0
    %455 = vmatprep.subr.mxu0 0.0
    %456 = vmatpush1.msra.mxu0 0.0
    %457 = vmatprep.subr.mxu0 0.0
    %458 = vmatpush1.msra.mxu0 0.0
    %459 = vmatprep.subr.mxu0 0.0
    %460 = vmatpush1.msra.mxu0 0.0
    %461 = vmatprep.subr.mxu0 0.0
    %462 = vmatpush1.msra.mxu0 0.0
    %463 = vmatprep.subr.mxu0 0.0
    %464 = vmatpush1.msra.mxu0 0.0
    %465 = vmatprep.subr.mxu0 0.0
    %466 = vmatpush1.msra.mxu0 0.0
    %467 = vmatprep.subr.mxu0 0.0
    %468 = vmatpush1.msra.mxu0 0.0
    %469 = vmatprep.subr.mxu0 0.0
    %470 = vmatpush1.msra.mxu0 0.0
    %471 = vmatprep.subr.mxu0 0.0
    %472 = vmatpush1.msra.mxu0 0.0
    %473 = vmatprep.subr.mxu0 0.0
    %474 = vmatpush1.msra.mxu0 0.0
    %475 = vmatprep.subr.mxu0 0.0
    %476 = vmatpush1.msra.mxu0 0.0
    %477 = vmatprep.subr.mxu0 0.0
    %478 = vmatpush1.msra.mxu0 0.0
    %479 = vmatprep.subr.mxu0 0.0
    %480 = vmatpush1.msra.mxu0 0.0
    %481 = vmatprep.subr.mxu0 0.0
    %482 = vmatpush1.msra.mxu0 0.0
    %483 = vmatprep.subr.mxu0 0.0
    %484 = vmatpush1.msra.mxu0 0.0
    %485 = vmatprep.subr.mxu0 0.0
    %486 = vmatpush1.msra.mxu0 0.0
    %487 = vmatprep.subr.mxu0 0.0
    %488 = vmatpush1.msra.mxu0 0.0
    %489 = vmatprep.subr.mxu0 0.0
    %490 = vmatpush1.msra.mxu0 0.0
    %491 = vmatprep.subr.mxu0 0.0
    %492 = vmatpush1.msra.mxu0 0.0
    %493 = vmatprep.subr.mxu0 0.0
    %494 = vmatpush1.msra.mxu0 0.0
    %495 = vmatprep.mubr.f32.mxu0 0.0
    %496 = vmatmul.mubr.f32.gmra.mrb[0].mxu0 %v429
    %v497 = vpop.f32.mrb[0].mxu0
    %v498 = vadd.f32 0.0, %v497
    %v499 = vpop.f32.mrb[0].mxu0
    %500 = vdwg.mxu0
    %v501 = vadd.f32 %v425, %v498
    %v502 = vxor.u32 %v501, 2147483648
    %v503 = vmul.f32 %v502, 1.442695
    %v504 = vpow.pop %v503
    %v505 = vadd.f32 %v504, 1.0
    %v506 = vrcp.pop %v505
    %v507 = vmul.f32 1.0, %v506
    %v508 = vtanh.pop %v501
    %v509 = vmul.f32 %v507, %v418
    %511 = vrot.lane.b32.xlu0 %v508, 64
    %v512 = vpop.permute.xlu0 %511
    %v514 = vmul.f32 %v507, %v512
    %516 = vrot.lane.b32.xlu0 %v514, 32
    %v517 = vpop.permute.xlu0 %516
    %v519 = vadd.f32 %v509, %v517
    %v520 = vtanh.pop %v519
    %522 = vrot.lane.b32.xlu0 %v520, 64
    %v523 = vpop.permute.xlu0 %522
    %v525 = vmul.f32 %v507, %v523
    %526 = vmatprep.subr.mxu0 0.0
    %527 = vmatpush1.msra.mxu0 %v301
    %528 = vmatprep.subr.mxu0 0.0
    %529 = vmatpush1.msra.mxu0 %v302
    %530 = vmatprep.subr.mxu0 0.0
    %531 = vmatpush1.msra.mxu0 %v303
    %532 = vmatprep.subr.mxu0 0.0
    %533 = vmatpush1.msra.mxu0 %v304
    %534 = vmatprep.subr.mxu0 0.0
    %535 = vmatpush1.msra.mxu0 0.0
    %536 = vmatprep.subr.mxu0 0.0
    %537 = vmatpush1.msra.mxu0 0.0
    %538 = vmatprep.subr.mxu0 0.0
    %539 = vmatpush1.msra.mxu0 0.0
    %540 = vmatprep.subr.mxu0 0.0
    %541 = vmatpush1.msra.mxu0 0.0
    %542 = vmatprep.subr.mxu0 0.0
    %543 = vmatpush1.msra.mxu0 0.0
    %544 = vmatprep.subr.mxu0 0.0
    %545 = vmatpush1.msra.mxu0 0.0
    %546 = vmatprep.subr.mxu0 0.0
    %547 = vmatpush1.msra.mxu0 0.0
    %548 = vmatprep.subr.mxu0 0.0
    %549 = vmatpush1.msra.mxu0 0.0
    %550 = vmatprep.subr.mxu0 0.0
    %551 = vmatpush1.msra.mxu0 0.0
    %552 = vmatprep.subr.mxu0 0.0
    %553 = vmatpush1.msra.mxu0 0.0
    %554 = vmatprep.subr.mxu0 0.0
    %555 = vmatpush1.msra.mxu0 0.0
    %556 = vmatprep.subr.mxu0 0.0
    %557 = vmatpush1.msra.mxu0 0.0
    %558 = vmatprep.subr.mxu0 0.0
    %559 = vmatpush1.msra.mxu0 0.0
    %560 = vmatprep.subr.mxu0 0.0
    %561 = vmatpush1.msra.mxu0 0.0
    %562 = vmatprep.subr.mxu0 0.0
    %563 = vmatpush1.msra.mxu0 0.0
    %564 = vmatprep.subr.mxu0 0.0
    %565 = vmatpush1.msra.mxu0 0.0
    %566 = vmatprep.subr.mxu0 0.0
    %567 = vmatpush1.msra.mxu0 0.0
    %568 = vmatprep.subr.mxu0 0.0
    %569 = vmatpush1.msra.mxu0 0.0
    %570 = vmatprep.subr.mxu0 0.0
    %571 = vmatpush1.msra.mxu0 0.0
    %572 = vmatprep.subr.mxu0 0.0
    %573 = vmatpush1.msra.mxu0 0.0
    %574 = vmatprep.subr.mxu0 0.0
    %575 = vmatpush1.msra.mxu0 0.0
    %576 = vmatprep.subr.mxu0 0.0
    %577 = vmatpush1.msra.mxu0 0.0
    %578 = vmatprep.subr.mxu0 0.0
    %579 = vmatpush1.msra.mxu0 0.0
    %580 = vmatprep.subr.mxu0 0.0
    %581 = vmatpush1.msra.mxu0 0.0
    %582 = vmatprep.subr.mxu0 0.0
    %583 = vmatpush1.msra.mxu0 0.0
    %584 = vmatprep.subr.mxu0 0.0
    %585 = vmatpush1.msra.mxu0 0.0
    %586 = vmatprep.subr.mxu0 0.0
    %587 = vmatpush1.msra.mxu0 0.0
    %588 = vmatprep.subr.mxu0 0.0
    %589 = vmatpush1.msra.mxu0 0.0
    %590 = vmatprep.mubr.f32.mxu0 0.0
    %591 = vmatmul.mubr.f32.gmra.mrb[0].mxu0 %v429
    %v592 = vpop.f32.mrb[0].mxu0
    %v593 = vadd.f32 %v316, %v592
    %v594 = vpop.f32.mrb[0].mxu0
    %595 = vdwg.mxu0
    %596 = vmatprep.subr.mxu0 0.0
    %597 = vmatpush1.msra.mxu0 %v291
    %598 = vmatprep.subr.mxu0 0.0
    %599 = vmatpush1.msra.mxu0 %v292
    %600 = vmatprep.subr.mxu0 0.0
    %601 = vmatpush1.msra.mxu0 %v293
    %602 = vmatprep.subr.mxu0 0.0
    %603 = vmatpush1.msra.mxu0 %v294
    %604 = vmatprep.subr.mxu0 0.0
    %605 = vmatpush1.msra.mxu0 0.0
    %606 = vmatprep.subr.mxu0 0.0
    %607 = vmatpush1.msra.mxu0 0.0
    %608 = vmatprep.subr.mxu0 0.0
    %609 = vmatpush1.msra.mxu0 0.0
    %610 = vmatprep.subr.mxu0 0.0
    %611 = vmatpush1.msra.mxu0 0.0
    %612 = vmatprep.subr.mxu0 0.0
    %613 = vmatpush1.msra.mxu0 0.0
    %614 = vmatprep.subr.mxu0 0.0
    %615 = vmatpush1.msra.mxu0 0.0
    %616 = vmatprep.subr.mxu0 0.0
    %617 = vmatpush1.msra.mxu0 0.0
    %618 = vmatprep.subr.mxu0 0.0
    %619 = vmatpush1.msra.mxu0 0.0
    %620 = vmatprep.subr.mxu0 0.0
    %621 = vmatpush1.msra.mxu0 0.0
    %622 = vmatprep.subr.mxu0 0.0
    %623 = vmatpush1.msra.mxu0 0.0
    %624 = vmatprep.subr.mxu0 0.0
    %625 = vmatpush1.msra.mxu0 0.0
    %626 = vmatprep.subr.mxu0 0.0
    %627 = vmatpush1.msra.mxu0 0.0
    %628 = vmatprep.subr.mxu0 0.0
    %629 = vmatpush1.msra.mxu0 0.0
    %630 = vmatprep.subr.mxu0 0.0
    %631 = vmatpush1.msra.mxu0 0.0
    %632 = vmatprep.subr.mxu0 0.0
    %633 = vmatpush1.msra.mxu0 0.0
    %634 = vmatprep.subr.mxu0 0.0
    %635 = vmatpush1.msra.mxu0 0.0
    %636 = vmatprep.subr.mxu0 0.0
    %637 = vmatpush1.msra.mxu0 0.0
    %638 = vmatprep.subr.mxu0 0.0
    %639 = vmatpush1.msra.mxu0 0.0
    %640 = vmatprep.subr.mxu0 0.0
    %641 = vmatpush1.msra.mxu0 0.0
    %642 = vmatprep.subr.mxu0 0.0
    %643 = vmatpush1.msra.mxu0 0.0
    %644 = vmatprep.subr.mxu0 0.0
    %645 = vmatpush1.msra.mxu0 0.0
    %646 = vmatprep.subr.mxu0 0.0
    %647 = vmatpush1.msra.mxu0 0.0
    %648 = vmatprep.subr.mxu0 0.0
    %649 = vmatpush1.msra.mxu0 0.0
    %650 = vmatprep.subr.mxu0 0.0
    %651 = vmatpush1.msra.mxu0 0.0
    %652 = vmatprep.subr.mxu0 0.0
    %653 = vmatpush1.msra.mxu0 0.0
    %654 = vmatprep.subr.mxu0 0.0
    %655 = vmatpush1.msra.mxu0 0.0
    %656 = vmatprep.subr.mxu0 0.0
    %657 = vmatpush1.msra.mxu0 0.0
    %658 = vmatprep.subr.mxu0 0.0
    %659 = vmatpush1.msra.mxu0 0.0
    %660 = vmatprep.mubr.f32.mxu0 0.0
    %661 = vmatmul.mubr.f32.gmra.mrb[0].mxu0 %v328
    %v662 = vpop.f32.mrb[0].mxu0
    %v663 = vadd.f32 0.0, %v662
    %v664 = vpop.f32.mrb[0].mxu0
    %665 = vdwg.mxu0
    %v666 = vadd.f32 %v593, %v663
    %v667 = vxor.u32 %v666, 2147483648
    %v668 = vmul.f32 %v667, 1.442695
    %v669 = vpow.pop %v668
    %v670 = vadd.f32 %v669, 1.0
    %v671 = vrcp.pop %v670
    %v672 = vmul.f32 1.0, %v671
    %v673 = vtanh.pop %v666
    %v674 = vmul.f32 %v672, 0.0
    %676 = vrot.lane.b32.xlu0 %v673, 64
    %v677 = vpop.permute.xlu0 %676
    %v679 = vmul.f32 %v672, %v677
    %681 = vrot.lane.b32.xlu0 %v679, 32
    %v682 = vpop.permute.xlu0 %681
    %v684 = vadd.f32 %v674, %v682
    %v685 = vtanh.pop %v684
    %687 = vrot.lane.b32.xlu0 %v685, 64
    %v688 = vpop.permute.xlu0 %687
    %v690 = vmul.f32 %v672, %v688
    %v691 = vld [vmem:[#allocation3 + $0x10] sm:$0xff]
    %693 = vrot.lane.b32.xlu0 %v525, 32
    %v694 = vpop.permute.xlu0 %693
    %v695 = vsel %vm42, %v694, 0
    %697 = vmatprep.subr.mxu0 0.0
    %698 = vmatpush1.msra.mxu0 %v286
    %699 = vmatprep.subr.mxu0 0.0
    %700 = vmatpush1.msra.mxu0 %v287
    %701 = vmatprep.subr.mxu0 0.0
    %702 = vmatpush1.msra.mxu0 %v288
    %703 = vmatprep.subr.mxu0 0.0
    %704 = vmatpush1.msra.mxu0 %v289
    %705 = vmatprep.subr.mxu0 0.0
    %706 = vmatpush1.msra.mxu0 0.0
    %707 = vmatprep.subr.mxu0 0.0
    %708 = vmatpush1.msra.mxu0 0.0
    %709 = vmatprep.subr.mxu0 0.0
    %710 = vmatpush1.msra.mxu0 0.0
    %711 = vmatprep.subr.mxu0 0.0
    %712 = vmatpush1.msra.mxu0 0.0
    %713 = vmatprep.subr.mxu0 0.0
    %714 = vmatpush1.msra.mxu0 0.0
    %715 = vmatprep.subr.mxu0 0.0
    %716 = vmatpush1.msra.mxu0 0.0
    %717 = vmatprep.subr.mxu0 0.0
    %718 = vmatpush1.msra.mxu0 0.0
    %719 = vmatprep.subr.mxu0 0.0
    %720 = vmatpush1.msra.mxu0 0.0
    %721 = vmatprep.subr.mxu0 0.0
    %722 = vmatpush1.msra.mxu0 0.0
    %723 = vmatprep.subr.mxu0 0.0
    %724 = vmatpush1.msra.mxu0 0.0
    %725 = vmatprep.subr.mxu0 0.0
    %726 = vmatpush1.msra.mxu0 0.0
    %727 = vmatprep.subr.mxu0 0.0
    %728 = vmatpush1.msra.mxu0 0.0
    %729 = vmatprep.subr.mxu0 0.0
    %730 = vmatpush1.msra.mxu0 0.0
    %731 = vmatprep.subr.mxu0 0.0
    %732 = vmatpush1.msra.mxu0 0.0
    %733 = vmatprep.subr.mxu0 0.0
    %734 = vmatpush1.msra.mxu0 0.0
    %735 = vmatprep.subr.mxu0 0.0
    %736 = vmatpush1.msra.mxu0 0.0
    %737 = vmatprep.subr.mxu0 0.0
    %738 = vmatpush1.msra.mxu0 0.0
    %739 = vmatprep.subr.mxu0 0.0
    %740 = vmatpush1.msra.mxu0 0.0
    %741 = vmatprep.subr.mxu0 0.0
    %742 = vmatpush1.msra.mxu0 0.0
    %743 = vmatprep.subr.mxu0 0.0
    %744 = vmatpush1.msra.mxu0 0.0
    %745 = vmatprep.subr.mxu0 0.0
    %746 = vmatpush1.msra.mxu0 0.0
    %747 = vmatprep.subr.mxu0 0.0
    %748 = vmatpush1.msra.mxu0 0.0
    %749 = vmatprep.subr.mxu0 0.0
    %750 = vmatpush1.msra.mxu0 0.0
    %751 = vmatprep.subr.mxu0 0.0
    %752 = vmatpush1.msra.mxu0 0.0
    %753 = vmatprep.subr.mxu0 0.0
    %754 = vmatpush1.msra.mxu0 0.0
    %755 = vmatprep.subr.mxu0 0.0
    %756 = vmatpush1.msra.mxu0 0.0
    %757 = vmatprep.subr.mxu0 0.0
    %758 = vmatpush1.msra.mxu0 0.0
    %759 = vmatprep.subr.mxu0 0.0
    %760 = vmatpush1.msra.mxu0 0.0
    %761 = vmatprep.mubr.f32.mxu0 0.0
    %762 = vmatmul.mubr.f32.gmra.mrb[0].mxu0 %v695
    %v763 = vpop.f32.mrb[0].mxu0
    %v764 = vadd.f32 0.0, %v763
    %v765 = vpop.f32.mrb[0].mxu0
    %766 = vdwg.mxu0
    %v767 = vadd.f32 %v691, %v764
    %v768 = vxor.u32 %v767, 2147483648
    %v769 = vmul.f32 %v768, 1.442695
    %v770 = vpow.pop %v769
    %v771 = vadd.f32 %v770, 1.0
    %v772 = vrcp.pop %v771
    %v773 = vmul.f32 1.0, %v772
    %v774 = vtanh.pop %v767
    %v775 = vmul.f32 %v773, %v519
    %777 = vrot.lane.b32.xlu0 %v774, 64
    %v778 = vpop.permute.xlu0 %777
    %v780 = vmul.f32 %v773, %v778
    %782 = vrot.lane.b32.xlu0 %v780, 32
    %v783 = vpop.permute.xlu0 %782
    %v785 = vadd.f32 %v775, %v783
    %v786 = vtanh.pop %v785
    %788 = vrot.lane.b32.xlu0 %v786, 64
    %v789 = vpop.permute.xlu0 %788
    %v791 = vmul.f32 %v773, %v789
    %792 = vmatprep.subr.mxu0 0.0
    %793 = vmatpush1.msra.mxu0 %v301
    %794 = vmatprep.subr.mxu0 0.0
    %795 = vmatpush1.msra.mxu0 %v302
    %796 = vmatprep.subr.mxu0 0.0
    %797 = vmatpush1.msra.mxu0 %v303
    %798 = vmatprep.subr.mxu0 0.0
    %799 = vmatpush1.msra.mxu0 %v304
    %800 = vmatprep.subr.mxu0 0.0
    %801 = vmatpush1.msra.mxu0 0.0
    %802 = vmatprep.subr.mxu0 0.0
    %803 = vmatpush1.msra.mxu0 0.0
    %804 = vmatprep.subr.mxu0 0.0
    %805 = vmatpush1.msra.mxu0 0.0
    %806 = vmatprep.subr.mxu0 0.0
    %807 = vmatpush1.msra.mxu0 0.0
    %808 = vmatprep.subr.mxu0 0.0
    %809 = vmatpush1.msra.mxu0 0.0
    %810 = vmatprep.subr.mxu0 0.0
    %811 = vmatpush1.msra.mxu0 0.0
    %812 = vmatprep.subr.mxu0 0.0
    %813 = vmatpush1.msra.mxu0 0.0
    %814 = vmatprep.subr.mxu0 0.0
    %815 = vmatpush1.msra.mxu0 0.0
    %816 = vmatprep.subr.mxu0 0.0
    %817 = vmatpush1.msra.mxu0 0.0
    %818 = vmatprep.subr.mxu0 0.0
    %819 = vmatpush1.msra.mxu0 0.0
    %820 = vmatprep.subr.mxu0 0.0
    %821 = vmatpush1.msra.mxu0 0.0
    %822 = vmatprep.subr.mxu0 0.0
    %823 = vmatpush1.msra.mxu0 0.0
    %824 = vmatprep.subr.mxu0 0.0
    %825 = vmatpush1.msra.mxu0 0.0
    %826 = vmatprep.subr.mxu0 0.0
    %827 = vmatpush1.msra.mxu0 0.0
    %828 = vmatprep.subr.mxu0 0.0
    %829 = vmatpush1.msra.mxu0 0.0
    %830 = vmatprep.subr.mxu0 0.0
    %831 = vmatpush1.msra.mxu0 0.0
    %832 = vmatprep.subr.mxu0 0.0
    %833 = vmatpush1.msra.mxu0 0.0
    %834 = vmatprep.subr.mxu0 0.0
    %835 = vmatpush1.msra.mxu0 0.0
    %836 = vmatprep.subr.mxu0 0.0
    %837 = vmatpush1.msra.mxu0 0.0
    %838 = vmatprep.subr.mxu0 0.0
    %839 = vmatpush1.msra.mxu0 0.0
    %840 = vmatprep.subr.mxu0 0.0
    %841 = vmatpush1.msra.mxu0 0.0
    %842 = vmatprep.subr.mxu0 0.0
    %843 = vmatpush1.msra.mxu0 0.0
    %844 = vmatprep.subr.mxu0 0.0
    %845 = vmatpush1.msra.mxu0 0.0
    %846 = vmatprep.subr.mxu0 0.0
    %847 = vmatpush1.msra.mxu0 0.0
    %848 = vmatprep.subr.mxu0 0.0
    %849 = vmatpush1.msra.mxu0 0.0
    %850 = vmatprep.subr.mxu0 0.0
    %851 = vmatpush1.msra.mxu0 0.0
    %852 = vmatprep.subr.mxu0 0.0
    %853 = vmatpush1.msra.mxu0 0.0
    %854 = vmatprep.subr.mxu0 0.0
    %855 = vmatpush1.msra.mxu0 0.0
    %856 = vmatprep.mubr.f32.mxu0 0.0
    %857 = vmatmul.mubr.f32.gmra.mrb[0].mxu0 %v695
    %v858 = vpop.f32.mrb[0].mxu0
    %v859 = vadd.f32 %v316, %v858
    %v860 = vpop.f32.mrb[0].mxu0
    %861 = vdwg.mxu0
    %863 = vrot.lane.b32.xlu0 %v690, 32
    %v864 = vpop.permute.xlu0 %863
    %v865 = vsel %vm42, %v864, 0
    %867 = vmatprep.subr.mxu0 0.0
    %868 = vmatpush1.msra.mxu0 %v291
    %869 = vmatprep.subr.mxu0 0.0
    %870 = vmatpush1.msra.mxu0 %v292
    %871 = vmatprep.subr.mxu0 0.0
    %872 = vmatpush1.msra.mxu0 %v293
    %873 = vmatprep.subr.mxu0 0.0
    %874 = vmatpush1.msra.mxu0 %v294
    %875 = vmatprep.subr.mxu0 0.0
    %876 = vmatpush1.msra.mxu0 0.0
    %877 = vmatprep.subr.mxu0 0.0
    %878 = vmatpush1.msra.mxu0 0.0
    %879 = vmatprep.subr.mxu0 0.0
    %880 = vmatpush1.msra.mxu0 0.0
    %881 = vmatprep.subr.mxu0 0.0
    %882 = vmatpush1.msra.mxu0 0.0
    %883 = vmatprep.subr.mxu0 0.0
    %884 = vmatpush1.msra.mxu0 0.0
    %885 = vmatprep.subr.mxu0 0.0
    %886 = vmatpush1.msra.mxu0 0.0
    %887 = vmatprep.subr.mxu0 0.0
    %888 = vmatpush1.msra.mxu0 0.0
    %889 = vmatprep.subr.mxu0 0.0
    %890 = vmatpush1.msra.mxu0 0.0
    %891 = vmatprep.subr.mxu0 0.0
    %892 = vmatpush1.msra.mxu0 0.0
    %893 = vmatprep.subr.mxu0 0.0
    %894 = vmatpush1.msra.mxu0 0.0
    %895 = vmatprep.subr.mxu0 0.0
    %896 = vmatpush1.msra.mxu0 0.0
    %897 = vmatprep.subr.mxu0 0.0
    %898 = vmatpush1.msra.mxu0 0.0
    %899 = vmatprep.subr.mxu0 0.0
    %900 = vmatpush1.msra.mxu0 0.0
    %901 = vmatprep.subr.mxu0 0.0
    %902 = vmatpush1.msra.mxu0 0.0
    %903 = vmatprep.subr.mxu0 0.0
    %904 = vmatpush1.msra.mxu0 0.0
    %905 = vmatprep.subr.mxu0 0.0
    %906 = vmatpush1.msra.mxu0 0.0
    %907 = vmatprep.subr.mxu0 0.0
    %908 = vmatpush1.msra.mxu0 0.0
    %909 = vmatprep.subr.mxu0 0.0
    %910 = vmatpush1.msra.mxu0 0.0
    %911 = vmatprep.subr.mxu0 0.0
    %912 = vmatpush1.msra.mxu0 0.0
    %913 = vmatprep.subr.mxu0 0.0
    %914 = vmatpush1.msra.mxu0 0.0
    %915 = vmatprep.subr.mxu0 0.0
    %916 = vmatpush1.msra.mxu0 0.0
    %917 = vmatprep.subr.mxu0 0.0
    %918 = vmatpush1.msra.mxu0 0.0
    %919 = vmatprep.subr.mxu0 0.0
    %920 = vmatpush1.msra.mxu0 0.0
    %921 = vmatprep.subr.mxu0 0.0
    %922 = vmatpush1.msra.mxu0 0.0
    %923 = vmatprep.subr.mxu0 0.0
    %924 = vmatpush1.msra.mxu0 0.0
    %925 = vmatprep.subr.mxu0 0.0
    %926 = vmatpush1.msra.mxu0 0.0
    %927 = vmatprep.subr.mxu0 0.0
    %928 = vmatpush1.msra.mxu0 0.0
    %929 = vmatprep.subr.mxu0 0.0
    %930 = vmatpush1.msra.mxu0 0.0
    %931 = vmatprep.mubr.f32.mxu0 0.0
    %932 = vmatmul.mubr.f32.gmra.mrb[0].mxu0 %v865
    %v933 = vpop.f32.mrb[0].mxu0
    %v934 = vadd.f32 0.0, %v933
    %v935 = vpop.f32.mrb[0].mxu0
    %936 = vdwg.mxu0
    %v937 = vadd.f32 %v859, %v934
    %v938 = vxor.u32 %v937, 2147483648
    %v939 = vmul.f32 %v938, 1.442695
    %v940 = vpow.pop %v939
    %v941 = vadd.f32 %v940, 1.0
    %v942 = vrcp.pop %v941
    %v943 = vmul.f32 1.0, %v942
    %v944 = vtanh.pop %v937
    %v945 = vmul.f32 %v943, %v684
    %947 = vrot.lane.b32.xlu0 %v944, 64
    %v948 = vpop.permute.xlu0 %947
    %v950 = vmul.f32 %v943, %v948
    %952 = vrot.lane.b32.xlu0 %v950, 32
    %v953 = vpop.permute.xlu0 %952
    %v955 = vadd.f32 %v945, %v953
    %v956 = vtanh.pop %v955
    %958 = vrot.lane.b32.xlu0 %v956, 64
    %v959 = vpop.permute.xlu0 %958
    %v961 = vmul.f32 %v943, %v959
    %962 = vmatprep.subr.mxu0 0.0
    %963 = vmatpush1.msra.mxu0 %v306
    %964 = vmatprep.subr.mxu0 0.0
    %965 = vmatpush1.msra.mxu0 %v307
    %966 = vmatprep.subr.mxu0 0.0
    %967 = vmatpush1.msra.mxu0 %v308
    %968 = vmatprep.subr.mxu0 0.0
    %969 = vmatpush1.msra.mxu0 %v309
    %970 = vmatprep.subr.mxu0 0.0
    %971 = vmatpush1.msra.mxu0 0.0
    %972 = vmatprep.subr.mxu0 0.0
    %973 = vmatpush1.msra.mxu0 0.0
    %974 = vmatprep.subr.mxu0 0.0
    %975 = vmatpush1.msra.mxu0 0.0
    %976 = vmatprep.subr.mxu0 0.0
    %977 = vmatpush1.msra.mxu0 0.0
    %978 = vmatprep.subr.mxu0 0.0
    %979 = vmatpush1.msra.mxu0 0.0
    %980 = vmatprep.subr.mxu0 0.0
    %981 = vmatpush1.msra.mxu0 0.0
    %982 = vmatprep.subr.mxu0 0.0
    %983 = vmatpush1.msra.mxu0 0.0
    %984 = vmatprep.subr.mxu0 0.0
    %985 = vmatpush1.msra.mxu0 0.0
    %986 = vmatprep.subr.mxu0 0.0
    %987 = vmatpush1.msra.mxu0 0.0
    %988 = vmatprep.subr.mxu0 0.0
    %989 = vmatpush1.msra.mxu0 0.0
    %990 = vmatprep.subr.mxu0 0.0
    %991 = vmatpush1.msra.mxu0 0.0
    %992 = vmatprep.subr.mxu0 0.0
    %993 = vmatpush1.msra.mxu0 0.0
    %994 = vmatprep.subr.mxu0 0.0
    %995 = vmatpush1.msra.mxu0 0.0
    %996 = vmatprep.subr.mxu0 0.0
    %997 = vmatpush1.msra.mxu0 0.0
    %998 = vmatprep.subr.mxu0 0.0
    %999 = vmatpush1.msra.mxu0 0.0
    %1000 = vmatprep.subr.mxu0 0.0
    %1001 = vmatpush1.msra.mxu0 0.0
    %1002 = vmatprep.subr.mxu0 0.0
    %1003 = vmatpush1.msra.mxu0 0.0
    %1004 = vmatprep.subr.mxu0 0.0
    %1005 = vmatpush1.msra.mxu0 0.0
    %1006 = vmatprep.subr.mxu0 0.0
    %1007 = vmatpush1.msra.mxu0 0.0
    %1008 = vmatprep.subr.mxu0 0.0
    %1009 = vmatpush1.msra.mxu0 0.0
    %1010 = vmatprep.subr.mxu0 0.0
    %1011 = vmatpush1.msra.mxu0 0.0
    %1012 = vmatprep.subr.mxu0 0.0
    %1013 = vmatpush1.msra.mxu0 0.0
    %1014 = vmatprep.subr.mxu0 0.0
    %1015 = vmatpush1.msra.mxu0 0.0
    %1016 = vmatprep.subr.mxu0 0.0
    %1017 = vmatpush1.msra.mxu0 0.0
    %1018 = vmatprep.subr.mxu0 0.0
    %1019 = vmatpush1.msra.mxu0 0.0
    %1020 = vmatprep.subr.mxu0 0.0
    %1021 = vmatpush1.msra.mxu0 0.0
    %1022 = vmatprep.subr.mxu0 0.0
    %1023 = vmatpush1.msra.mxu0 0.0
    %1024 = vmatprep.subr.mxu0 0.0
    %1025 = vmatpush1.msra.mxu0 0.0
    %1026 = vmatprep.mubr.f32.mxu0 0.0
    %1027 = vmatmul.mubr.f32.gmra.mrb[0].mxu0 %v865
    %v1028 = vpop.f32.mrb[0].mxu0
    %v1029 = vadd.f32 %v324, %v1028
    %v1030 = vpop.f32.mrb[0].mxu0
    %1031 = vdwg.mxu0
    %1032 = vmatprep.subr.mxu0 0.0
    %1033 = vmatpush1.msra.mxu0 %v296
    %1034 = vmatprep.subr.mxu0 0.0
    %1035 = vmatpush1.msra.mxu0 %v297
    %1036 = vmatprep.subr.mxu0 0.0
    %1037 = vmatpush1.msra.mxu0 %v298
    %1038 = vmatprep.subr.mxu0 0.0
    %1039 = vmatpush1.msra.mxu0 %v299
    %1040 = vmatprep.subr.mxu0 0.0
    %1041 = vmatpush1.msra.mxu0 0.0
    %1042 = vmatprep.subr.mxu0 0.0
    %1043 = vmatpush1.msra.mxu0 0.0
    %1044 = vmatprep.subr.mxu0 0.0
    %1045 = vmatpush1.msra.mxu0 0.0
    %1046 = vmatprep.subr.mxu0 0.0
    %1047 = vmatpush1.msra.mxu0 0.0
    %1048 = vmatprep.subr.mxu0 0.0
    %1049 = vmatpush1.msra.mxu0 0.0
    %1050 = vmatprep.subr.mxu0 0.0
    %1051 = vmatpush1.msra.mxu0 0.0
    %1052 = vmatprep.subr.mxu0 0.0
    %1053 = vmatpush1.msra.mxu0 0.0
    %1054 = vmatprep.subr.mxu0 0.0
    %1055 = vmatpush1.msra.mxu0 0.0
    %1056 = vmatprep.subr.mxu0 0.0
    %1057 = vmatpush1.msra.mxu0 0.0
    %1058 = vmatprep.subr.mxu0 0.0
    %1059 = vmatpush1.msra.mxu0 0.0
    %1060 = vmatprep.subr.mxu0 0.0
    %1061 = vmatpush1.msra.mxu0 0.0
    %1062 = vmatprep.subr.mxu0 0.0
    %1063 = vmatpush1.msra.mxu0 0.0
    %1064 = vmatprep.subr.mxu0 0.0
    %1065 = vmatpush1.msra.mxu0 0.0
    %1066 = vmatprep.subr.mxu0 0.0
    %1067 = vmatpush1.msra.mxu0 0.0
    %1068 = vmatprep.subr.mxu0 0.0
    %1069 = vmatpush1.msra.mxu0 0.0
    %1070 = vmatprep.subr.mxu0 0.0
    %1071 = vmatpush1.msra.mxu0 0.0
    %1072 = vmatprep.subr.mxu0 0.0
    %1073 = vmatpush1.msra.mxu0 0.0
    %1074 = vmatprep.subr.mxu0 0.0
    %1075 = vmatpush1.msra.mxu0 0.0
    %1076 = vmatprep.subr.mxu0 0.0
    %1077 = vmatpush1.msra.mxu0 0.0
    %1078 = vmatprep.subr.mxu0 0.0
    %1079 = vmatpush1.msra.mxu0 0.0
    %1080 = vmatprep.subr.mxu0 0.0
    %1081 = vmatpush1.msra.mxu0 0.0
    %1082 = vmatprep.subr.mxu0 0.0
    %1083 = vmatpush1.msra.mxu0 0.0
    %1084 = vmatprep.subr.mxu0 0.0
    %1085 = vmatpush1.msra.mxu0 0.0
    %1086 = vmatprep.subr.mxu0 0.0
    %1087 = vmatpush1.msra.mxu0 0.0
    %1088 = vmatprep.subr.mxu0 0.0
    %1089 = vmatpush1.msra.mxu0 0.0
    %1090 = vmatprep.subr.mxu0 0.0
    %1091 = vmatpush1.msra.mxu0 0.0
    %1092 = vmatprep.subr.mxu0 0.0
    %1093 = vmatpush1.msra.mxu0 0.0
    %1094 = vmatprep.subr.mxu0 0.0
    %1095 = vmatpush1.msra.mxu0 0.0
    %1096 = vmatprep.mubr.f32.mxu0 0.0
    %1097 = vmatmul.mubr.f32.gmra.mrb[0].mxu0 %v328
    %v1098 = vpop.f32.mrb[0].mxu0
    %v1099 = vadd.f32 0.0, %v1098
    %v1100 = vpop.f32.mrb[0].mxu0
    %1101 = vdwg.mxu0
    %v1102 = vadd.f32 %v1029, %v1099
    %v1103 = vxor.u32 %v1102, 2147483648
    %v1104 = vmul.f32 %v1103, 1.442695
    %v1105 = vpow.pop %v1104
    %v1106 = vadd.f32 %v1105, 1.0
    %v1107 = vrcp.pop %v1106
    %v1108 = vmul.f32 1.0, %v1107
    %v1109 = vtanh.pop %v1102
    %v1110 = vmul.f32 %v1108, 0.0
    %1112 = vrot.lane.b32.xlu0 %v1109, 64
    %v1113 = vpop.permute.xlu0 %1112
    %v1115 = vmul.f32 %v1108, %v1113
    %1117 = vrot.lane.b32.xlu0 %v1115, 32
    %v1118 = vpop.permute.xlu0 %1117
    %v1120 = vadd.f32 %v1110, %v1118
    %v1121 = vtanh.pop %v1120
    %1123 = vrot.lane.b32.xlu0 %v1121, 64
    %v1124 = vpop.permute.xlu0 %1123
    %v1126 = vmul.f32 %v1108, %v1124
    %1128 = vrot.lane.b32.xlu0 %v1126, 32
    %v1129 = vpop.permute.xlu0 %1128
    %1131 = vst.msk [vmem:[#allocation4] sm:$0xff] %vm42, %v1129
    %v1132 = vld [vmem:[#allocation3 + $0x18] sm:$0xff]
    %1134 = vrot.lane.b32.xlu0 %v791, 32
    %v1135 = vpop.permute.xlu0 %1134
    %v1136 = vsel %vm42, %v1135, 0
    %1138 = vmatprep.subr.mxu0 0.0
    %1139 = vmatpush1.msra.mxu0 %v286
    %1140 = vmatprep.subr.mxu0 0.0
    %1141 = vmatpush1.msra.mxu0 %v287
    %1142 = vmatprep.subr.mxu0 0.0
    %1143 = vmatpush1.msra.mxu0 %v288
    %1144 = vmatprep.subr.mxu0 0.0
    %1145 = vmatpush1.msra.mxu0 %v289
    %1146 = vmatprep.subr.mxu0 0.0
    %1147 = vmatpush1.msra.mxu0 0.0
    %1148 = vmatprep.subr.mxu0 0.0
    %1149 = vmatpush1.msra.mxu0 0.0
    %1150 = vmatprep.subr.mxu0 0.0
    %1151 = vmatpush1.msra.mxu0 0.0
    %1152 = vmatprep.subr.mxu0 0.0
    %1153 = vmatpush1.msra.mxu0 0.0
    %1154 = vmatprep.subr.mxu0 0.0
    %1155 = vmatpush1.msra.mxu0 0.0
    %1156 = vmatprep.subr.mxu0 0.0
    %1157 = vmatpush1.msra.mxu0 0.0
    %1158 = vmatprep.subr.mxu0 0.0
    %1159 = vmatpush1.msra.mxu0 0.0
    %1160 = vmatprep.subr.mxu0 0.0
    %1161 = vmatpush1.msra.mxu0 0.0
    %1162 = vmatprep.subr.mxu0 0.0
    %1163 = vmatpush1.msra.mxu0 0.0
    %1164 = vmatprep.subr.mxu0 0.0
    %1165 = vmatpush1.msra.mxu0 0.0
    %1166 = vmatprep.subr.mxu0 0.0
    %1167 = vmatpush1.msra.mxu0 0.0
    %1168 = vmatprep.subr.mxu0 0.0
    %1169 = vmatpush1.msra.mxu0 0.0
    %1170 = vmatprep.subr.mxu0 0.0
    %1171 = vmatpush1.msra.mxu0 0.0
    %1172 = vmatprep.subr.mxu0 0.0
    %1173 = vmatpush1.msra.mxu0 0.0
    %1174 = vmatprep.subr.mxu0 0.0
    %1175 = vmatpush1.msra.mxu0 0.0
    %1176 = vmatprep.subr.mxu0 0.0
    %1177 = vmatpush1.msra.mxu0 0.0
    %1178 = vmatprep.subr.mxu0 0.0
    %1179 = vmatpush1.msra.mxu0 0.0
    %1180 = vmatprep.subr.mxu0 0.0
    %1181 = vmatpush1.msra.mxu0 0.0
    %1182 = vmatprep.subr.mxu0 0.0
    %1183 = vmatpush1.msra.mxu0 0.0
    %1184 = vmatprep.subr.mxu0 0.0
    %1185 = vmatpush1.msra.mxu0 0.0
    %1186 = vmatprep.subr.mxu0 0.0
    %1187 = vmatpush1.msra.mxu0 0.0
    %1188 = vmatprep.subr.mxu0 0.0
    %1189 = vmatpush1.msra.mxu0 0.0
    %1190 = vmatprep.subr.mxu0 0.0
    %1191 = vmatpush1.msra.mxu0 0.0
    %1192 = vmatprep.subr.mxu0 0.0
    %1193 = vmatpush1.msra.mxu0 0.0
    %1194 = vmatprep.subr.mxu0 0.0
    %1195 = vmatpush1.msra.mxu0 0.0
    %1196 = vmatprep.subr.mxu0 0.0
    %1197 = vmatpush1.msra.mxu0 0.0
    %1198 = vmatprep.subr.mxu0 0.0
    %1199 = vmatpush1.msra.mxu0 0.0
    %1200 = vmatprep.subr.mxu0 0.0
    %1201 = vmatpush1.msra.mxu0 0.0
    %1202 = vmatprep.mubr.f32.mxu0 0.0
    %1203 = vmatmul.mubr.f32.gmra.mrb[0].mxu0 %v1136
    %v1204 = vpop.f32.mrb[0].mxu0
    %v1205 = vadd.f32 0.0, %v1204
    %v1206 = vpop.f32.mrb[0].mxu0
    %1207 = vdwg.mxu0
    %v1208 = vadd.f32 %v1132, %v1205
    %v1209 = vxor.u32 %v1208, 2147483648
    %v1210 = vmul.f32 %v1209, 1.442695
    %v1211 = vpow.pop %v1210
    %v1212 = vadd.f32 %v1211, 1.0
    %v1213 = vrcp.pop %v1212
    %v1214 = vmul.f32 1.0, %v1213
    %v1215 = vtanh.pop %v1208
    %v1216 = vmul.f32 %v1214, %v785
    %1218 = vrot.lane.b32.xlu0 %v1215, 64
    %v1219 = vpop.permute.xlu0 %1218
    %v1221 = vmul.f32 %v1214, %v1219
    %1223 = vrot.lane.b32.xlu0 %v1221, 32
    %v1224 = vpop.permute.xlu0 %1223
    %v1226 = vadd.f32 %v1216, %v1224
    %v1227 = vtanh.pop %v1226
    %1229 = vrot.lane.b32.xlu0 %v1227, 64
    %v1230 = vpop.permute.xlu0 %1229
    %v1232 = vmul.f32 %v1214, %v1230
    %1233 = vmatprep.subr.mxu0 0.0
    %1234 = vmatpush1.msra.mxu0 %v301
    %1235 = vmatprep.subr.mxu0 0.0
    %1236 = vmatpush1.msra.mxu0 %v302
    %1237 = vmatprep.subr.mxu0 0.0
    %1238 = vmatpush1.msra.mxu0 %v303
    %1239 = vmatprep.subr.mxu0 0.0
    %1240 = vmatpush1.msra.mxu0 %v304
    %1241 = vmatprep.subr.mxu0 0.0
    %1242 = vmatpush1.msra.mxu0 0.0
    %1243 = vmatprep.subr.mxu0 0.0
    %1244 = vmatpush1.msra.mxu0 0.0
    %1245 = vmatprep.subr.mxu0 0.0
    %1246 = vmatpush1.msra.mxu0 0.0
    %1247 = vmatprep.subr.mxu0 0.0
    %1248 = vmatpush1.msra.mxu0 0.0
    %1249 = vmatprep.subr.mxu0 0.0
    %1250 = vmatpush1.msra.mxu0 0.0
    %1251 = vmatprep.subr.mxu0 0.0
    %1252 = vmatpush1.msra.mxu0 0.0
    %1253 = vmatprep.subr.mxu0 0.0
    %1254 = vmatpush1.msra.mxu0 0.0
    %1255 = vmatprep.subr.mxu0 0.0
    %1256 = vmatpush1.msra.mxu0 0.0
    %1257 = vmatprep.subr.mxu0 0.0
    %1258 = vmatpush1.msra.mxu0 0.0
    %1259 = vmatprep.subr.mxu0 0.0
    %1260 = vmatpush1.msra.mxu0 0.0
    %1261 = vmatprep.subr.mxu0 0.0
    %1262 = vmatpush1.msra.mxu0 0.0
    %1263 = vmatprep.subr.mxu0 0.0
    %1264 = vmatpush1.msra.mxu0 0.0
    %1265 = vmatprep.subr.mxu0 0.0
    %1266 = vmatpush1.msra.mxu0 0.0
    %1267 = vmatprep.subr.mxu0 0.0
    %1268 = vmatpush1.msra.mxu0 0.0
    %1269 = vmatprep.subr.mxu0 0.0
    %1270 = vmatpush1.msra.mxu0 0.0
    %1271 = vmatprep.subr.mxu0 0.0
    %1272 = vmatpush1.msra.mxu0 0.0
    %1273 = vmatprep.subr.mxu0 0.0
    %1274 = vmatpush1.msra.mxu0 0.0
    %1275 = vmatprep.subr.mxu0 0.0
    %1276 = vmatpush1.msra.mxu0 0.0
    %1277 = vmatprep.subr.mxu0 0.0
    %1278 = vmatpush1.msra.mxu0 0.0
    %1279 = vmatprep.subr.mxu0 0.0
    %1280 = vmatpush1.msra.mxu0 0.0
    %1281 = vmatprep.subr.mxu0 0.0
    %1282 = vmatpush1.msra.mxu0 0.0
    %1283 = vmatprep.subr.mxu0 0.0
    %1284 = vmatpush1.msra.mxu0 0.0
    %1285 = vmatprep.subr.mxu0 0.0
    %1286 = vmatpush1.msra.mxu0 0.0
    %1287 = vmatprep.subr.mxu0 0.0
    %1288 = vmatpush1.msra.mxu0 0.0
    %1289 = vmatprep.subr.mxu0 0.0
    %1290 = vmatpush1.msra.mxu0 0.0
    %1291 = vmatprep.subr.mxu0 0.0
    %1292 = vmatpush1.msra.mxu0 0.0
    %1293 = vmatprep.subr.mxu0 0.0
    %1294 = vmatpush1.msra.mxu0 0.0
    %1295 = vmatprep.subr.mxu0 0.0
    %1296 = vmatpush1.msra.mxu0 0.0
    %1297 = vmatprep.mubr.f32.mxu0 0.0
    %1298 = vmatmul.mubr.f32.gmra.mrb[0].mxu0 %v1136
    %v1299 = vpop.f32.mrb[0].mxu0
    %v1300 = vadd.f32 %v316, %v1299
    %v1301 = vpop.f32.mrb[0].mxu0
    %1302 = vdwg.mxu0
    %1304 = vrot.lane.b32.xlu0 %v961, 32
    %v1305 = vpop.permute.xlu0 %1304
    %v1306 = vsel %vm42, %v1305, 0
    %1308 = vmatprep.subr.mxu0 0.0
    %1309 = vmatpush1.msra.mxu0 %v291
    %1310 = vmatprep.subr.mxu0 0.0
    %1311 = vmatpush1.msra.mxu0 %v292
    %1312 = vmatprep.subr.mxu0 0.0
    %1313 = vmatpush1.msra.mxu0 %v293
    %1314 = vmatprep.subr.mxu0 0.0
    %1315 = vmatpush1.msra.mxu0 %v294
    %1316 = vmatprep.subr.mxu0 0.0
    %1317 = vmatpush1.msra.mxu0 0.0
    %1318 = vmatprep.subr.mxu0 0.0
    %1319 = vmatpush1.msra.mxu0 0.0
    %1320 = vmatprep.subr.mxu0 0.0
    %1321 = vmatpush1.msra.mxu0 0.0
    %1322 = vmatprep.subr.mxu0 0.0
    %1323 = vmatpush1.msra.mxu0 0.0
    %1324 = vmatprep.subr.mxu0 0.0
    %1325 = vmatpush1.msra.mxu0 0.0
    %1326 = vmatprep.subr.mxu0 0.0
    %1327 = vmatpush1.msra.mxu0 0.0
    %1328 = vmatprep.subr.mxu0 0.0
    %1329 = vmatpush1.msra.mxu0 0.0
    %1330 = vmatprep.subr.mxu0 0.0
    %1331 = vmatpush1.msra.mxu0 0.0
    %1332 = vmatprep.subr.mxu0 0.0
    %1333 = vmatpush1.msra.mxu0 0.0
    %1334 = vmatprep.subr.mxu0 0.0
    %1335 = vmatpush1.msra.mxu0 0.0
    %1336 = vmatprep.subr.mxu0 0.0
    %1337 = vmatpush1.msra.mxu0 0.0
    %1338 = vmatprep.subr.mxu0 0.0
    %1339 = vmatpush1.msra.mxu0 0.0
    %1340 = vmatprep.subr.mxu0 0.0
    %1341 = vmatpush1.msra.mxu0 0.0
    %1342 = vmatprep.subr.mxu0 0.0
    %1343 = vmatpush1.msra.mxu0 0.0
    %1344 = vmatprep.subr.mxu0 0.0
    %1345 = vmatpush1.msra.mxu0 0.0
    %1346 = vmatprep.subr.mxu0 0.0
    %1347 = vmatpush1.msra.mxu0 0.0
    %1348 = vmatprep.subr.mxu0 0.0
    %1349 = vmatpush1.msra.mxu0 0.0
    %1350 = vmatprep.subr.mxu0 0.0
    %1351 = vmatpush1.msra.mxu0 0.0
    %1352 = vmatprep.subr.mxu0 0.0
    %1353 = vmatpush1.msra.mxu0 0.0
    %1354 = vmatprep.subr.mxu0 0.0
    %1355 = vmatpush1.msra.mxu0 0.0
    %1356 = vmatprep.subr.mxu0 0.0
    %1357 = vmatpush1.msra.mxu0 0.0
    %1358 = vmatprep.subr.mxu0 0.0
    %1359 = vmatpush1.msra.mxu0 0.0
    %1360 = vmatprep.subr.mxu0 0.0
    %1361 = vmatpush1.msra.mxu0 0.0
    %1362 = vmatprep.subr.mxu0 0.0
    %1363 = vmatpush1.msra.mxu0 0.0
    %1364 = vmatprep.subr.mxu0 0.0
    %1365 = vmatpush1.msra.mxu0 0.0
    %1366 = vmatprep.subr.mxu0 0.0
    %1367 = vmatpush1.msra.mxu0 0.0
    %1368 = vmatprep.subr.mxu0 0.0
    %1369 = vmatpush1.msra.mxu0 0.0
    %1370 = vmatprep.subr.mxu0 0.0
    %1371 = vmatpush1.msra.mxu0 0.0
    %1372 = vmatprep.mubr.f32.mxu0 0.0
    %1373 = vmatmul.mubr.f32.gmra.mrb[0].mxu0 %v1306
    %v1374 = vpop.f32.mrb[0].mxu0
    %v1375 = vadd.f32 0.0, %v1374
    %v1376 = vpop.f32.mrb[0].mxu0
    %1377 = vdwg.mxu0
    %v1378 = vadd.f32 %v1300, %v1375
    %v1379 = vxor.u32 %v1378, 2147483648
    %v1380 = vmul.f32 %v1379, 1.442695
    %v1381 = vpow.pop %v1380
    %v1382 = vadd.f32 %v1381, 1.0
    %v1383 = vrcp.pop %v1382
    %v1384 = vmul.f32 1.0, %v1383
    %v1385 = vtanh.pop %v1378
    %v1386 = vmul.f32 %v1384, %v955
    %1388 = vrot.lane.b32.xlu0 %v1385, 64
    %v1389 = vpop.permute.xlu0 %1388
    %v1391 = vmul.f32 %v1384, %v1389
    %1393 = vrot.lane.b32.xlu0 %v1391, 32
    %v1394 = vpop.permute.xlu0 %1393
    %v1396 = vadd.f32 %v1386, %v1394
    %v1397 = vtanh.pop %v1396
    %1399 = vrot.lane.b32.xlu0 %v1397, 64
    %v1400 = vpop.permute.xlu0 %1399
    %v1402 = vmul.f32 %v1384, %v1400
    %1403 = vmatprep.subr.mxu0 0.0
    %1404 = vmatpush1.msra.mxu0 %v306
    %1405 = vmatprep.subr.mxu0 0.0
    %1406 = vmatpush1.msra.mxu0 %v307
    %1407 = vmatprep.subr.mxu0 0.0
    %1408 = vmatpush1.msra.mxu0 %v308
    %1409 = vmatprep.subr.mxu0 0.0
    %1410 = vmatpush1.msra.mxu0 %v309
    %1411 = vmatprep.subr.mxu0 0.0
    %1412 = vmatpush1.msra.mxu0 0.0
    %1413 = vmatprep.subr.mxu0 0.0
    %1414 = vmatpush1.msra.mxu0 0.0
    %1415 = vmatprep.subr.mxu0 0.0
    %1416 = vmatpush1.msra.mxu0 0.0
    %1417 = vmatprep.subr.mxu0 0.0
    %1418 = vmatpush1.msra.mxu0 0.0
    %1419 = vmatprep.subr.mxu0 0.0
    %1420 = vmatpush1.msra.mxu0 0.0
    %1421 = vmatprep.subr.mxu0 0.0
    %1422 = vmatpush1.msra.mxu0 0.0
    %1423 = vmatprep.subr.mxu0 0.0
    %1424 = vmatpush1.msra.mxu0 0.0
    %1425 = vmatprep.subr.mxu0 0.0
    %1426 = vmatpush1.msra.mxu0 0.0
    %1427 = vmatprep.subr.mxu0 0.0
    %1428 = vmatpush1.msra.mxu0 0.0
    %1429 = vmatprep.subr.mxu0 0.0
    %1430 = vmatpush1.msra.mxu0 0.0
    %1431 = vmatprep.subr.mxu0 0.0
    %1432 = vmatpush1.msra.mxu0 0.0
    %1433 = vmatprep.subr.mxu0 0.0
    %1434 = vmatpush1.msra.mxu0 0.0
    %1435 = vmatprep.subr.mxu0 0.0
    %1436 = vmatpush1.msra.mxu0 0.0
    %1437 = vmatprep.subr.mxu0 0.0
    %1438 = vmatpush1.msra.mxu0 0.0
    %1439 = vmatprep.subr.mxu0 0.0
    %1440 = vmatpush1.msra.mxu0 0.0
    %1441 = vmatprep.subr.mxu0 0.0
    %1442 = vmatpush1.msra.mxu0 0.0
    %1443 = vmatprep.subr.mxu0 0.0
    %1444 = vmatpush1.msra.mxu0 0.0
    %1445 = vmatprep.subr.mxu0 0.0
    %1446 = vmatpush1.msra.mxu0 0.0
    %1447 = vmatprep.subr.mxu0 0.0
    %1448 = vmatpush1.msra.mxu0 0.0
    %1449 = vmatprep.subr.mxu0 0.0
    %1450 = vmatpush1.msra.mxu0 0.0
    %1451 = vmatprep.subr.mxu0 0.0
    %1452 = vmatpush1.msra.mxu0 0.0
    %1453 = vmatprep.subr.mxu0 0.0
    %1454 = vmatpush1.msra.mxu0 0.0
    %1455 = vmatprep.subr.mxu0 0.0
    %1456 = vmatpush1.msra.mxu0 0.0
    %1457 = vmatprep.subr.mxu0 0.0
    %1458 = vmatpush1.msra.mxu0 0.0
    %1459 = vmatprep.subr.mxu0 0.0
    %1460 = vmatpush1.msra.mxu0 0.0
    %1461 = vmatprep.subr.mxu0 0.0
    %1462 = vmatpush1.msra.mxu0 0.0
    %1463 = vmatprep.subr.mxu0 0.0
    %1464 = vmatpush1.msra.mxu0 0.0
    %1465 = vmatprep.subr.mxu0 0.0
    %1466 = vmatpush1.msra.mxu0 0.0
    %1467 = vmatprep.mubr.f32.mxu0 0.0
    %1468 = vmatmul.mubr.f32.gmra.mrb[0].mxu0 %v1306
    %v1469 = vpop.f32.mrb[0].mxu0
    %v1470 = vadd.f32 %v324, %v1469
    %v1471 = vpop.f32.mrb[0].mxu0
    %1472 = vdwg.mxu0
    %v1473 = vsel %vm42, %v1129, 0
    %1475 = vmatprep.subr.mxu0 0.0
    %1476 = vmatpush1.msra.mxu0 %v296
    %1477 = vmatprep.subr.mxu0 0.0
    %1478 = vmatpush1.msra.mxu0 %v297
    %1479 = vmatprep.subr.mxu0 0.0
    %1480 = vmatpush1.msra.mxu0 %v298
    %1481 = vmatprep.subr.mxu0 0.0
    %1482 = vmatpush1.msra.mxu0 %v299
    %1483 = vmatprep.subr.mxu0 0.0
    %1484 = vmatpush1.msra.mxu0 0.0
    %1485 = vmatprep.subr.mxu0 0.0
    %1486 = vmatpush1.msra.mxu0 0.0
    %1487 = vmatprep.subr.mxu0 0.0
    %1488 = vmatpush1.msra.mxu0 0.0
    %1489 = vmatprep.subr.mxu0 0.0
    %1490 = vmatpush1.msra.mxu0 0.0
    %1491 = vmatprep.subr.mxu0 0.0
    %1492 = vmatpush1.msra.mxu0 0.0
    %1493 = vmatprep.subr.mxu0 0.0
    %1494 = vmatpush1.msra.mxu0 0.0
    %1495 = vmatprep.subr.mxu0 0.0
    %1496 = vmatpush1.msra.mxu0 0.0
    %1497 = vmatprep.subr.mxu0 0.0
    %1498 = vmatpush1.msra.mxu0 0.0
    %1499 = vmatprep.subr.mxu0 0.0
    %1500 = vmatpush1.msra.mxu0 0.0
    %1501 = vmatprep.subr.mxu0 0.0
    %1502 = vmatpush1.msra.mxu0 0.0
    %1503 = vmatprep.subr.mxu0 0.0
    %1504 = vmatpush1.msra.mxu0 0.0
    %1505 = vmatprep.subr.mxu0 0.0
    %1506 = vmatpush1.msra.mxu0 0.0
    %1507 = vmatprep.subr.mxu0 0.0
    %1508 = vmatpush1.msra.mxu0 0.0
    %1509 = vmatprep.subr.mxu0 0.0
    %1510 = vmatpush1.msra.mxu0 0.0
    %1511 = vmatprep.subr.mxu0 0.0
    %1512 = vmatpush1.msra.mxu0 0.0
    %1513 = vmatprep.subr.mxu0 0.0
    %1514 = vmatpush1.msra.mxu0 0.0
    %1515 = vmatprep.subr.mxu0 0.0
    %1516 = vmatpush1.msra.mxu0 0.0
    %1517 = vmatprep.subr.mxu0 0.0
    %1518 = vmatpush1.msra.mxu0 0.0
    %1519 = vmatprep.subr.mxu0 0.0
    %1520 = vmatpush1.msra.mxu0 0.0
    %1521 = vmatprep.subr.mxu0 0.0
    %1522 = vmatpush1.msra.mxu0 0.0
    %1523 = vmatprep.subr.mxu0 0.0
    %1524 = vmatpush1.msra.mxu0 0.0
    %1525 = vmatprep.subr.mxu0 0.0
    %1526 = vmatpush1.msra.mxu0 0.0
    %1527 = vmatprep.subr.mxu0 0.0
    %1528 = vmatpush1.msra.mxu0 0.0
    %1529 = vmatprep.subr.mxu0 0.0
    %1530 = vmatpush1.msra.mxu0 0.0
    %1531 = vmatprep.subr.mxu0 0.0
    %1532 = vmatpush1.msra.mxu0 0.0
    %1533 = vmatprep.subr.mxu0 0.0
    %1534 = vmatpush1.msra.mxu0 0.0
    %1535 = vmatprep.subr.mxu0 0.0
    %1536 = vmatpush1.msra.mxu0 0.0
    %1537 = vmatprep.subr.mxu0 0.0
    %1538 = vmatpush1.msra.mxu0 0.0
    %1539 = vmatprep.mubr.f32.mxu0 0.0
    %1540 = vmatmul.mubr.f32.gmra.mrb[0].mxu0 %v1473
    %v1541 = vpop.f32.mrb[0].mxu0
    %v1542 = vadd.f32 0.0, %v1541
    %v1543 = vpop.f32.mrb[0].mxu0
    %1544 = vdwg.mxu0
    %v1545 = vadd.f32 %v1470, %v1542
    %v1546 = vxor.u32 %v1545, 2147483648
    %v1547 = vmul.f32 %v1546, 1.442695
    %v1548 = vpow.pop %v1547
    %v1549 = vadd.f32 %v1548, 1.0
    %v1550 = vrcp.pop %v1549
    %v1551 = vmul.f32 1.0, %v1550
    %v1552 = vtanh.pop %v1545
    %v1553 = vmul.f32 %v1551, %v1120
    %1555 = vrot.lane.b32.xlu0 %v1552, 64
    %v1556 = vpop.permute.xlu0 %1555
    %v1558 = vmul.f32 %v1551, %v1556
    %1560 = vrot.lane.b32.xlu0 %v1558, 32
    %v1561 = vpop.permute.xlu0 %1560
    %v1563 = vadd.f32 %v1553, %v1561
    %v1564 = vtanh.pop %v1563
    %1566 = vrot.lane.b32.xlu0 %v1564, 64
    %v1567 = vpop.permute.xlu0 %1566
    %v1569 = vmul.f32 %v1551, %v1567
    %1571 = vrot.lane.b32.xlu0 %v1569, 32
    %v1572 = vpop.permute.xlu0 %1571
    %1574 = vst.msk [vmem:[#allocation4 + $0x8] sm:$0xff] %vm42, %v1572
    %v1575 = vld [vmem:[#allocation3 + $0x20] sm:$0xff]
    %1577 = vrot.lane.b32.xlu0 %v1232, 32
    %v1578 = vpop.permute.xlu0 %1577
    %v1579 = vsel %vm42, %v1578, 0
    %1581 = vmatprep.subr.mxu0 0.0
    %1582 = vmatpush1.msra.mxu0 %v286
    %1583 = vmatprep.subr.mxu0 0.0
    %1584 = vmatpush1.msra.mxu0 %v287
    %1585 = vmatprep.subr.mxu0 0.0
    %1586 = vmatpush1.msra.mxu0 %v288
    %1587 = vmatprep.subr.mxu0 0.0
    %1588 = vmatpush1.msra.mxu0 %v289
    %1589 = vmatprep.subr.mxu0 0.0
    %1590 = vmatpush1.msra.mxu0 0.0
    %1591 = vmatprep.subr.mxu0 0.0
    %1592 = vmatpush1.msra.mxu0 0.0
    %1593 = vmatprep.subr.mxu0 0.0
    %1594 = vmatpush1.msra.mxu0 0.0
    %1595 = vmatprep.subr.mxu0 0.0
    %1596 = vmatpush1.msra.mxu0 0.0
    %1597 = vmatprep.subr.mxu0 0.0
    %1598 = vmatpush1.msra.mxu0 0.0
    %1599 = vmatprep.subr.mxu0 0.0
    %1600 = vmatpush1.msra.mxu0 0.0
    %1601 = vmatprep.subr.mxu0 0.0
    %1602 = vmatpush1.msra.mxu0 0.0
    %1603 = vmatprep.subr.mxu0 0.0
    %1604 = vmatpush1.msra.mxu0 0.0
    %1605 = vmatprep.subr.mxu0 0.0
    %1606 = vmatpush1.msra.mxu0 0.0
    %1607 = vmatprep.subr.mxu0 0.0
    %1608 = vmatpush1.msra.mxu0 0.0
    %1609 = vmatprep.subr.mxu0 0.0
    %1610 = vmatpush1.msra.mxu0 0.0
    %1611 = vmatprep.subr.mxu0 0.0
    %1612 = vmatpush1.msra.mxu0 0.0
    %1613 = vmatprep.subr.mxu0 0.0
    %1614 = vmatpush1.msra.mxu0 0.0
    %1615 = vmatprep.subr.mxu0 0.0
    %1616 = vmatpush1.msra.mxu0 0.0
    %1617 = vmatprep.subr.mxu0 0.0
    %1618 = vmatpush1.msra.mxu0 0.0
    %1619 = vmatprep.subr.mxu0 0.0
    %1620 = vmatpush1.msra.mxu0 0.0
    %1621 = vmatprep.subr.mxu0 0.0
    %1622 = vmatpush1.msra.mxu0 0.0
    %1623 = vmatprep.subr.mxu0 0.0
    %1624 = vmatpush1.msra.mxu0 0.0
    %1625 = vmatprep.subr.mxu0 0.0
    %1626 = vmatpush1.msra.mxu0 0.0
    %1627 = vmatprep.subr.mxu0 0.0
    %1628 = vmatpush1.msra.mxu0 0.0
    %1629 = vmatprep.subr.mxu0 0.0
    %1630 = vmatpush1.msra.mxu0 0.0
    %1631 = vmatprep.subr.mxu0 0.0
    %1632 = vmatpush1.msra.mxu0 0.0
    %1633 = vmatprep.subr.mxu0 0.0
    %1634 = vmatpush1.msra.mxu0 0.0
    %1635 = vmatprep.subr.mxu0 0.0
    %1636 = vmatpush1.msra.mxu0 0.0
    %1637 = vmatprep.subr.mxu0 0.0
    %1638 = vmatpush1.msra.mxu0 0.0
    %1639 = vmatprep.subr.mxu0 0.0
    %1640 = vmatpush1.msra.mxu0 0.0
    %1641 = vmatprep.subr.mxu0 0.0
    %1642 = vmatpush1.msra.mxu0 0.0
    %1643 = vmatprep.subr.mxu0 0.0
    %1644 = vmatpush1.msra.mxu0 0.0
    %1645 = vmatprep.mubr.f32.mxu0 0.0
    %1646 = vmatmul.mubr.f32.gmra.mrb[0].mxu0 %v1579
    %v1647 = vpop.f32.mrb[0].mxu0
    %v1648 = vadd.f32 0.0, %v1647
    %v1649 = vpop.f32.mrb[0].mxu0
    %1650 = vdwg.mxu0
    %v1651 = vadd.f32 %v1575, %v1648
    %v1652 = vxor.u32 %v1651, 2147483648
    %v1653 = vmul.f32 %v1652, 1.442695
    %v1654 = vpow.pop %v1653
    %v1655 = vadd.f32 %v1654, 1.0
    %v1656 = vrcp.pop %v1655
    %v1657 = vmul.f32 1.0, %v1656
    %v1658 = vtanh.pop %v1651
    %v1659 = vmul.f32 %v1657, %v1226
    %1661 = vrot.lane.b32.xlu0 %v1658, 64
    %v1662 = vpop.permute.xlu0 %1661
    %v1664 = vmul.f32 %v1657, %v1662
    %1666 = vrot.lane.b32.xlu0 %v1664, 32
    %v1667 = vpop.permute.xlu0 %1666
    %v1669 = vadd.f32 %v1659, %v1667
    %v1670 = vtanh.pop %v1669
    %1672 = vrot.lane.b32.xlu0 %v1670, 64
    %v1673 = vpop.permute.xlu0 %1672
    %v1675 = vmul.f32 %v1657, %v1673
    %1676 = vmatprep.subr.mxu0 0.0
    %1677 = vmatpush1.msra.mxu0 %v301
    %1678 = vmatprep.subr.mxu0 0.0
    %1679 = vmatpush1.msra.mxu0 %v302
    %1680 = vmatprep.subr.mxu0 0.0
    %1681 = vmatpush1.msra.mxu0 %v303
    %1682 = vmatprep.subr.mxu0 0.0
    %1683 = vmatpush1.msra.mxu0 %v304
    %1684 = vmatprep.subr.mxu0 0.0
    %1685 = vmatpush1.msra.mxu0 0.0
    %1686 = vmatprep.subr.mxu0 0.0
    %1687 = vmatpush1.msra.mxu0 0.0
    %1688 = vmatprep.subr.mxu0 0.0
    %1689 = vmatpush1.msra.mxu0 0.0
    %1690 = vmatprep.subr.mxu0 0.0
    %1691 = vmatpush1.msra.mxu0 0.0
    %1692 = vmatprep.subr.mxu0 0.0
    %1693 = vmatpush1.msra.mxu0 0.0
    %1694 = vmatprep.subr.mxu0 0.0
    %1695 = vmatpush1.msra.mxu0 0.0
    %1696 = vmatprep.subr.mxu0 0.0
    %1697 = vmatpush1.msra.mxu0 0.0
    %1698 = vmatprep.subr.mxu0 0.0
    %1699 = vmatpush1.msra.mxu0 0.0
    %1700 = vmatprep.subr.mxu0 0.0
    %1701 = vmatpush1.msra.mxu0 0.0
    %1702 = vmatprep.subr.mxu0 0.0
    %1703 = vmatpush1.msra.mxu0 0.0
    %1704 = vmatprep.subr.mxu0 0.0
    %1705 = vmatpush1.msra.mxu0 0.0
    %1706 = vmatprep.subr.mxu0 0.0
    %1707 = vmatpush1.msra.mxu0 0.0
    %1708 = vmatprep.subr.mxu0 0.0
    %1709 = vmatpush1.msra.mxu0 0.0
    %1710 = vmatprep.subr.mxu0 0.0
    %1711 = vmatpush1.msra.mxu0 0.0
    %1712 = vmatprep.subr.mxu0 0.0
    %1713 = vmatpush1.msra.mxu0 0.0
    %1714 = vmatprep.subr.mxu0 0.0
    %1715 = vmatpush1.msra.mxu0 0.0
    %1716 = vmatprep.subr.mxu0 0.0
    %1717 = vmatpush1.msra.mxu0 0.0
    %1718 = vmatprep.subr.mxu0 0.0
    %1719 = vmatpush1.msra.mxu0 0.0
    %1720 = vmatprep.subr.mxu0 0.0
    %1721 = vmatpush1.msra.mxu0 0.0
    %1722 = vmatprep.subr.mxu0 0.0
    %1723 = vmatpush1.msra.mxu0 0.0
    %1724 = vmatprep.subr.mxu0 0.0
    %1725 = vmatpush1.msra.mxu0 0.0
    %1726 = vmatprep.subr.mxu0 0.0
    %1727 = vmatpush1.msra.mxu0 0.0
    %1728 = vmatprep.subr.mxu0 0.0
    %1729 = vmatpush1.msra.mxu0 0.0
    %1730 = vmatprep.subr.mxu0 0.0
    %1731 = vmatpush1.msra.mxu0 0.0
    %1732 = vmatprep.subr.mxu0 0.0
    %1733 = vmatpush1.msra.mxu0 0.0
    %1734 = vmatprep.subr.mxu0 0.0
    %1735 = vmatpush1.msra.mxu0 0.0
    %1736 = vmatprep.subr.mxu0 0.0
    %1737 = vmatpush1.msra.mxu0 0.0
    %1738 = vmatprep.subr.mxu0 0.0
    %1739 = vmatpush1.msra.mxu0 0.0
    %1740 = vmatprep.mubr.f32.mxu0 0.0
    %1741 = vmatmul.mubr.f32.gmra.mrb[0].mxu0 %v1579
    %v1742 = vpop.f32.mrb[0].mxu0
    %v1743 = vadd.f32 %v316, %v1742
    %v1744 = vpop.f32.mrb[0].mxu0
    %1745 = vdwg.mxu0
    %1747 = vrot.lane.b32.xlu0 %v1402, 32
    %v1748 = vpop.permute.xlu0 %1747
    %v1749 = vsel %vm42, %v1748, 0
    %1751 = vmatprep.subr.mxu0 0.0
    %1752 = vmatpush1.msra.mxu0 %v291
    %1753 = vmatprep.subr.mxu0 0.0
    %1754 = vmatpush1.msra.mxu0 %v292
    %1755 = vmatprep.subr.mxu0 0.0
    %1756 = vmatpush1.msra.mxu0 %v293
    %1757 = vmatprep.subr.mxu0 0.0
    %1758 = vmatpush1.msra.mxu0 %v294
    %1759 = vmatprep.subr.mxu0 0.0
    %1760 = vmatpush1.msra.mxu0 0.0
    %1761 = vmatprep.subr.mxu0 0.0
    %1762 = vmatpush1.msra.mxu0 0.0
    %1763 = vmatprep.subr.mxu0 0.0
    %1764 = vmatpush1.msra.mxu0 0.0
    %1765 = vmatprep.subr.mxu0 0.0
    %1766 = vmatpush1.msra.mxu0 0.0
    %1767 = vmatprep.subr.mxu0 0.0
    %1768 = vmatpush1.msra.mxu0 0.0
    %1769 = vmatprep.subr.mxu0 0.0
    %1770 = vmatpush1.msra.mxu0 0.0
    %1771 = vmatprep.subr.mxu0 0.0
    %1772 = vmatpush1.msra.mxu0 0.0
    %1773 = vmatprep.subr.mxu0 0.0
    %1774 = vmatpush1.msra.mxu0 0.0
    %1775 = vmatprep.subr.mxu0 0.0
    %1776 = vmatpush1.msra.mxu0 0.0
    %1777 = vmatprep.subr.mxu0 0.0
    %1778 = vmatpush1.msra.mxu0 0.0
    %1779 = vmatprep.subr.mxu0 0.0
    %1780 = vmatpush1.msra.mxu0 0.0
    %1781 = vmatprep.subr.mxu0 0.0
    %1782 = vmatpush1.msra.mxu0 0.0
    %1783 = vmatprep.subr.mxu0 0.0
    %1784 = vmatpush1.msra.mxu0 0.0
    %1785 = vmatprep.subr.mxu0 0.0
    %1786 = vmatpush1.msra.mxu0 0.0
    %1787 = vmatprep.subr.mxu0 0.0
    %1788 = vmatpush1.msra.mxu0 0.0
    %1789 = vmatprep.subr.mxu0 0.0
    %1790 = vmatpush1.msra.mxu0 0.0
    %1791 = vmatprep.subr.mxu0 0.0
    %1792 = vmatpush1.msra.mxu0 0.0
    %1793 = vmatprep.subr.mxu0 0.0
    %1794 = vmatpush1.msra.mxu0 0.0
    %1795 = vmatprep.subr.mxu0 0.0
    %1796 = vmatpush1.msra.mxu0 0.0
    %1797 = vmatprep.subr.mxu0 0.0
    %1798 = vmatpush1.msra.mxu0 0.0
    %1799 = vmatprep.subr.mxu0 0.0
    %1800 = vmatpush1.msra.mxu0 0.0
    %1801 = vmatprep.subr.mxu0 0.0
    %1802 = vmatpush1.msra.mxu0 0.0
    %1803 = vmatprep.subr.mxu0 0.0
    %1804 = vmatpush1.msra.mxu0 0.0
    %1805 = vmatprep.subr.mxu0 0.0
    %1806 = vmatpush1.msra.mxu0 0.0
    %1807 = vmatprep.subr.mxu0 0.0
    %1808 = vmatpush1.msra.mxu0 0.0
    %1809 = vmatprep.subr.mxu0 0.0
    %1810 = vmatpush1.msra.mxu0 0.0
    %1811 = vmatprep.subr.mxu0 0.0
    %1812 = vmatpush1.msra.mxu0 0.0
    %1813 = vmatprep.subr.mxu0 0.0
    %1814 = vmatpush1.msra.mxu0 0.0
    %1815 = vmatprep.mubr.f32.mxu0 0.0
    %1816 = vmatmul.mubr.f32.gmra.mrb[0].mxu0 %v1749
    %v1817 = vpop.f32.mrb[0].mxu0
    %v1818 = vadd.f32 0.0, %v1817
    %v1819 = vpop.f32.mrb[0].mxu0
    %1820 = vdwg.mxu0
    %v1821 = vadd.f32 %v1743, %v1818
    %v1822 = vxor.u32 %v1821, 2147483648
    %v1823 = vmul.f32 %v1822, 1.442695
    %v1824 = vpow.pop %v1823
    %v1825 = vadd.f32 %v1824, 1.0
    %v1826 = vrcp.pop %v1825
    %v1827 = vmul.f32 1.0, %v1826
    %v1828 = vtanh.pop %v1821
    %v1829 = vmul.f32 %v1827, %v1396
    %1831 = vrot.lane.b32.xlu0 %v1828, 64
    %v1832 = vpop.permute.xlu0 %1831
    %v1834 = vmul.f32 %v1827, %v1832
    %1836 = vrot.lane.b32.xlu0 %v1834, 32
    %v1837 = vpop.permute.xlu0 %1836
    %v1839 = vadd.f32 %v1829, %v1837
    %v1840 = vtanh.pop %v1839
    %1842 = vrot.lane.b32.xlu0 %v1840, 64
    %v1843 = vpop.permute.xlu0 %1842
    %v1845 = vmul.f32 %v1827, %v1843
    %1846 = vmatprep.subr.mxu0 0.0
    %1847 = vmatpush1.msra.mxu0 %v306
    %1848 = vmatprep.subr.mxu0 0.0
    %1849 = vmatpush1.msra.mxu0 %v307
    %1850 = vmatprep.subr.mxu0 0.0
    %1851 = vmatpush1.msra.mxu0 %v308
    %1852 = vmatprep.subr.mxu0 0.0
    %1853 = vmatpush1.msra.mxu0 %v309
    %1854 = vmatprep.subr.mxu0 0.0
    %1855 = vmatpush1.msra.mxu0 0.0
    %1856 = vmatprep.subr.mxu0 0.0
    %1857 = vmatpush1.msra.mxu0 0.0
    %1858 = vmatprep.subr.mxu0 0.0
    %1859 = vmatpush1.msra.mxu0 0.0
    %1860 = vmatprep.subr.mxu0 0.0
    %1861 = vmatpush1.msra.mxu0 0.0
    %1862 = vmatprep.subr.mxu0 0.0
    %1863 = vmatpush1.msra.mxu0 0.0
    %1864 = vmatprep.subr.mxu0 0.0
    %1865 = vmatpush1.msra.mxu0 0.0
    %1866 = vmatprep.subr.mxu0 0.0
    %1867 = vmatpush1.msra.mxu0 0.0
    %1868 = vmatprep.subr.mxu0 0.0
    %1869 = vmatpush1.msra.mxu0 0.0
    %1870 = vmatprep.subr.mxu0 0.0
    %1871 = vmatpush1.msra.mxu0 0.0
    %1872 = vmatprep.subr.mxu0 0.0
    %1873 = vmatpush1.msra.mxu0 0.0
    %1874 = vmatprep.subr.mxu0 0.0
    %1875 = vmatpush1.msra.mxu0 0.0
    %1876 = vmatprep.subr.mxu0 0.0
    %1877 = vmatpush1.msra.mxu0 0.0
    %1878 = vmatprep.subr.mxu0 0.0
    %1879 = vmatpush1.msra.mxu0 0.0
    %1880 = vmatprep.subr.mxu0 0.0
    %1881 = vmatpush1.msra.mxu0 0.0
    %1882 = vmatprep.subr.mxu0 0.0
    %1883 = vmatpush1.msra.mxu0 0.0
    %1884 = vmatprep.subr.mxu0 0.0
    %1885 = vmatpush1.msra.mxu0 0.0
    %1886 = vmatprep.subr.mxu0 0.0
    %1887 = vmatpush1.msra.mxu0 0.0
    %1888 = vmatprep.subr.mxu0 0.0
    %1889 = vmatpush1.msra.mxu0 0.0
    %1890 = vmatprep.subr.mxu0 0.0
    %1891 = vmatpush1.msra.mxu0 0.0
    %1892 = vmatprep.subr.mxu0 0.0
    %1893 = vmatpush1.msra.mxu0 0.0
    %1894 = vmatprep.subr.mxu0 0.0
    %1895 = vmatpush1.msra.mxu0 0.0
    %1896 = vmatprep.subr.mxu0 0.0
    %1897 = vmatpush1.msra.mxu0 0.0
    %1898 = vmatprep.subr.mxu0 0.0
    %1899 = vmatpush1.msra.mxu0 0.0
    %1900 = vmatprep.subr.mxu0 0.0
    %1901 = vmatpush1.msra.mxu0 0.0
    %1902 = vmatprep.subr.mxu0 0.0
    %1903 = vmatpush1.msra.mxu0 0.0
    %1904 = vmatprep.subr.mxu0 0.0
    %1905 = vmatpush1.msra.mxu0 0.0
    %1906 = vmatprep.subr.mxu0 0.0
    %1907 = vmatpush1.msra.mxu0 0.0
    %1908 = vmatprep.subr.mxu0 0.0
    %1909 = vmatpush1.msra.mxu0 0.0
    %1910 = vmatprep.mubr.f32.mxu0 0.0
    %1911 = vmatmul.mubr.f32.gmra.mrb[0].mxu0 %v1749
    %v1912 = vpop.f32.mrb[0].mxu0
    %v1913 = vadd.f32 %v324, %v1912
    %v1914 = vpop.f32.mrb[0].mxu0
    %1915 = vdwg.mxu0
    %v1916 = vsel %vm42, %v1572, 0
    %1918 = vmatprep.subr.mxu0 0.0
    %1919 = vmatpush1.msra.mxu0 %v296
    %1920 = vmatprep.subr.mxu0 0.0
    %1921 = vmatpush1.msra.mxu0 %v297
    %1922 = vmatprep.subr.mxu0 0.0
    %1923 = vmatpush1.msra.mxu0 %v298
    %1924 = vmatprep.subr.mxu0 0.0
    %1925 = vmatpush1.msra.mxu0 %v299
    %1926 = vmatprep.subr.mxu0 0.0
    %1927 = vmatpush1.msra.mxu0 0.0
    %1928 = vmatprep.subr.mxu0 0.0
    %1929 = vmatpush1.msra.mxu0 0.0
    %1930 = vmatprep.subr.mxu0 0.0
    %1931 = vmatpush1.msra.mxu0 0.0
    %1932 = vmatprep.subr.mxu0 0.0
    %1933 = vmatpush1.msra.mxu0 0.0
    %1934 = vmatprep.subr.mxu0 0.0
    %1935 = vmatpush1.msra.mxu0 0.0
    %1936 = vmatprep.subr.mxu0 0.0
    %1937 = vmatpush1.msra.mxu0 0.0
    %1938 = vmatprep.subr.mxu0 0.0
    %1939 = vmatpush1.msra.mxu0 0.0
    %1940 = vmatprep.subr.mxu0 0.0
    %1941 = vmatpush1.msra.mxu0 0.0
    %1942 = vmatprep.subr.mxu0 0.0
    %1943 = vmatpush1.msra.mxu0 0.0
    %1944 = vmatprep.subr.mxu0 0.0
    %1945 = vmatpush1.msra.mxu0 0.0
    %1946 = vmatprep.subr.mxu0 0.0
    %1947 = vmatpush1.msra.mxu0 0.0
    %1948 = vmatprep.subr.mxu0 0.0
    %1949 = vmatpush1.msra.mxu0 0.0
    %1950 = vmatprep.subr.mxu0 0.0
    %1951 = vmatpush1.msra.mxu0 0.0
    %1952 = vmatprep.subr.mxu0 0.0
    %1953 = vmatpush1.msra.mxu0 0.0
    %1954 = vmatprep.subr.mxu0 0.0
    %1955 = vmatpush1.msra.mxu0 0.0
    %1956 = vmatprep.subr.mxu0 0.0
    %1957 = vmatpush1.msra.mxu0 0.0
    %1958 = vmatprep.subr.mxu0 0.0
    %1959 = vmatpush1.msra.mxu0 0.0
    %1960 = vmatprep.subr.mxu0 0.0
    %1961 = vmatpush1.msra.mxu0 0.0
    %1962 = vmatprep.subr.mxu0 0.0
    %1963 = vmatpush1.msra.mxu0 0.0
    %1964 = vmatprep.subr.mxu0 0.0
    %1965 = vmatpush1.msra.mxu0 0.0
    %1966 = vmatprep.subr.mxu0 0.0
    %1967 = vmatpush1.msra.mxu0 0.0
    %1968 = vmatprep.subr.mxu0 0.0
    %1969 = vmatpush1.msra.mxu0 0.0
    %1970 = vmatprep.subr.mxu0 0.0
    %1971 = vmatpush1.msra.mxu0 0.0
    %1972 = vmatprep.subr.mxu0 0.0
    %1973 = vmatpush1.msra.mxu0 0.0
    %1974 = vmatprep.subr.mxu0 0.0
    %1975 = vmatpush1.msra.mxu0 0.0
    %1976 = vmatprep.subr.mxu0 0.0
    %1977 = vmatpush1.msra.mxu0 0.0
    %1978 = vmatprep.subr.mxu0 0.0
    %1979 = vmatpush1.msra.mxu0 0.0
    %1980 = vmatprep.subr.mxu0 0.0
    %1981 = vmatpush1.msra.mxu0 0.0
    %1982 = vmatprep.mubr.f32.mxu0 0.0
    %1983 = vmatmul.mubr.f32.gmra.mrb[0].mxu0 %v1916
    %v1984 = vpop.f32.mrb[0].mxu0
    %v1985 = vadd.f32 0.0, %v1984
    %v1986 = vpop.f32.mrb[0].mxu0
    %1987 = vdwg.mxu0
    %v1988 = vadd.f32 %v1913, %v1985
    %v1989 = vxor.u32 %v1988, 2147483648
    %v1990 = vmul.f32 %v1989, 1.442695
    %v1991 = vpow.pop %v1990
    %v1992 = vadd.f32 %v1991, 1.0
    %v1993 = vrcp.pop %v1992
    %v1994 = vmul.f32 1.0, %v1993
    %v1995 = vtanh.pop %v1988
    %v1996 = vmul.f32 %v1994, %v1563
    %1998 = vrot.lane.b32.xlu0 %v1995, 64
    %v1999 = vpop.permute.xlu0 %1998
    %v2001 = vmul.f32 %v1994, %v1999
    %2003 = vrot.lane.b32.xlu0 %v2001, 32
    %v2004 = vpop.permute.xlu0 %2003
    %v2006 = vadd.f32 %v1996, %v2004
    %v2007 = vtanh.pop %v2006
    %2009 = vrot.lane.b32.xlu0 %v2007, 64
    %v2010 = vpop.permute.xlu0 %2009
    %v2012 = vmul.f32 %v1994, %v2010
    %2014 = vrot.lane.b32.xlu0 %v2012, 32
    %v2015 = vpop.permute.xlu0 %2014
    %2017 = vst.msk [vmem:[#allocation4 + $0x10] sm:$0xff] %vm42, %v2015
    %v2018 = vld [vmem:[#allocation3 + $0x28] sm:$0xff]
    %2020 = vrot.lane.b32.xlu0 %v1675, 32
    %v2021 = vpop.permute.xlu0 %2020
    %v2022 = vsel %vm42, %v2021, 0
    %2024 = vmatprep.subr.mxu0 0.0
    %2025 = vmatpush1.msra.mxu0 %v286
    %2026 = vmatprep.subr.mxu0 0.0
    %2027 = vmatpush1.msra.mxu0 %v287
    %2028 = vmatprep.subr.mxu0 0.0
    %2029 = vmatpush1.msra.mxu0 %v288
    %2030 = vmatprep.subr.mxu0 0.0
    %2031 = vmatpush1.msra.mxu0 %v289
    %2032 = vmatprep.subr.mxu0 0.0
    %2033 = vmatpush1.msra.mxu0 0.0
    %2034 = vmatprep.subr.mxu0 0.0
    %2035 = vmatpush1.msra.mxu0 0.0
    %2036 = vmatprep.subr.mxu0 0.0
    %2037 = vmatpush1.msra.mxu0 0.0
    %2038 = vmatprep.subr.mxu0 0.0
    %2039 = vmatpush1.msra.mxu0 0.0
    %2040 = vmatprep.subr.mxu0 0.0
    %2041 = vmatpush1.msra.mxu0 0.0
    %2042 = vmatprep.subr.mxu0 0.0
    %2043 = vmatpush1.msra.mxu0 0.0
    %2044 = vmatprep.subr.mxu0 0.0
    %2045 = vmatpush1.msra.mxu0 0.0
    %2046 = vmatprep.subr.mxu0 0.0
    %2047 = vmatpush1.msra.mxu0 0.0
    %2048 = vmatprep.subr.mxu0 0.0
    %2049 = vmatpush1.msra.mxu0 0.0
    %2050 = vmatprep.subr.mxu0 0.0
    %2051 = vmatpush1.msra.mxu0 0.0
    %2052 = vmatprep.subr.mxu0 0.0
    %2053 = vmatpush1.msra.mxu0 0.0
    %2054 = vmatprep.subr.mxu0 0.0
    %2055 = vmatpush1.msra.mxu0 0.0
    %2056 = vmatprep.subr.mxu0 0.0
    %2057 = vmatpush1.msra.mxu0 0.0
    %2058 = vmatprep.subr.mxu0 0.0
    %2059 = vmatpush1.msra.mxu0 0.0
    %2060 = vmatprep.subr.mxu0 0.0
    %2061 = vmatpush1.msra.mxu0 0.0
    %2062 = vmatprep.subr.mxu0 0.0
    %2063 = vmatpush1.msra.mxu0 0.0
    %2064 = vmatprep.subr.mxu0 0.0
    %2065 = vmatpush1.msra.mxu0 0.0
    %2066 = vmatprep.subr.mxu0 0.0
    %2067 = vmatpush1.msra.mxu0 0.0
    %2068 = vmatprep.subr.mxu0 0.0
    %2069 = vmatpush1.msra.mxu0 0.0
    %2070 = vmatprep.subr.mxu0 0.0
    %2071 = vmatpush1.msra.mxu0 0.0
    %2072 = vmatprep.subr.mxu0 0.0
    %2073 = vmatpush1.msra.mxu0 0.0
    %2074 = vmatprep.subr.mxu0 0.0
    %2075 = vmatpush1.msra.mxu0 0.0
    %2076 = vmatprep.subr.mxu0 0.0
    %2077 = vmatpush1.msra.mxu0 0.0
    %2078 = vmatprep.subr.mxu0 0.0
    %2079 = vmatpush1.msra.mxu0 0.0
    %2080 = vmatprep.subr.mxu0 0.0
    %2081 = vmatpush1.msra.mxu0 0.0
    %2082 = vmatprep.subr.mxu0 0.0
    %2083 = vmatpush1.msra.mxu0 0.0
    %2084 = vmatprep.subr.mxu0 0.0
    %2085 = vmatpush1.msra.mxu0 0.0
    %2086 = vmatprep.subr.mxu0 0.0
    %2087 = vmatpush1.msra.mxu0 0.0
    %2088 = vmatprep.mubr.f32.mxu0 0.0
    %2089 = vmatmul.mubr.f32.gmra.mrb[0].mxu0 %v2022
    %v2090 = vpop.f32.mrb[0].mxu0
    %v2091 = vadd.f32 0.0, %v2090
    %v2092 = vpop.f32.mrb[0].mxu0
    %2093 = vdwg.mxu0
    %v2094 = vadd.f32 %v2018, %v2091
    %v2095 = vxor.u32 %v2094, 2147483648
    %v2096 = vmul.f32 %v2095, 1.442695
    %v2097 = vpow.pop %v2096
    %v2098 = vadd.f32 %v2097, 1.0
    %v2099 = vrcp.pop %v2098
    %v2100 = vmul.f32 1.0, %v2099
    %v2101 = vtanh.pop %v2094
    %v2102 = vmul.f32 %v2100, %v1669
    %2104 = vrot.lane.b32.xlu0 %v2101, 64
    %v2105 = vpop.permute.xlu0 %2104
    %v2107 = vmul.f32 %v2100, %v2105
    %2109 = vrot.lane.b32.xlu0 %v2107, 32
    %v2110 = vpop.permute.xlu0 %2109
    %v2112 = vadd.f32 %v2102, %v2110
    %v2113 = vtanh.pop %v2112
    %2115 = vrot.lane.b32.xlu0 %v2113, 64
    %v2116 = vpop.permute.xlu0 %2115
    %v2118 = vmul.f32 %v2100, %v2116
    %2119 = vmatprep.subr.mxu0 0.0
    %2120 = vmatpush1.msra.mxu0 %v301
    %2121 = vmatprep.subr.mxu0 0.0
    %2122 = vmatpush1.msra.mxu0 %v302
    %2123 = vmatprep.subr.mxu0 0.0
    %2124 = vmatpush1.msra.mxu0 %v303
    %2125 = vmatprep.subr.mxu0 0.0
    %2126 = vmatpush1.msra.mxu0 %v304
    %2127 = vmatprep.subr.mxu0 0.0
    %2128 = vmatpush1.msra.mxu0 0.0
    %2129 = vmatprep.subr.mxu0 0.0
    %2130 = vmatpush1.msra.mxu0 0.0
    %2131 = vmatprep.subr.mxu0 0.0
    %2132 = vmatpush1.msra.mxu0 0.0
    %2133 = vmatprep.subr.mxu0 0.0
    %2134 = vmatpush1.msra.mxu0 0.0
    %2135 = vmatprep.subr.mxu0 0.0
    %2136 = vmatpush1.msra.mxu0 0.0
    %2137 = vmatprep.subr.mxu0 0.0
    %2138 = vmatpush1.msra.mxu0 0.0
    %2139 = vmatprep.subr.mxu0 0.0
    %2140 = vmatpush1.msra.mxu0 0.0
    %2141 = vmatprep.subr.mxu0 0.0
    %2142 = vmatpush1.msra.mxu0 0.0
    %2143 = vmatprep.subr.mxu0 0.0
    %2144 = vmatpush1.msra.mxu0 0.0
    %2145 = vmatprep.subr.mxu0 0.0
    %2146 = vmatpush1.msra.mxu0 0.0
    %2147 = vmatprep.subr.mxu0 0.0
    %2148 = vmatpush1.msra.mxu0 0.0
    %2149 = vmatprep.subr.mxu0 0.0
    %2150 = vmatpush1.msra.mxu0 0.0
    %2151 = vmatprep.subr.mxu0 0.0
    %2152 = vmatpush1.msra.mxu0 0.0
    %2153 = vmatprep.subr.mxu0 0.0
    %2154 = vmatpush1.msra.mxu0 0.0
    %2155 = vmatprep.subr.mxu0 0.0
    %2156 = vmatpush1.msra.mxu0 0.0
    %2157 = vmatprep.subr.mxu0 0.0
    %2158 = vmatpush1.msra.mxu0 0.0
    %2159 = vmatprep.subr.mxu0 0.0
    %2160 = vmatpush1.msra.mxu0 0.0
    %2161 = vmatprep.subr.mxu0 0.0
    %2162 = vmatpush1.msra.mxu0 0.0
    %2163 = vmatprep.subr.mxu0 0.0
    %2164 = vmatpush1.msra.mxu0 0.0
    %2165 = vmatprep.subr.mxu0 0.0
    %2166 = vmatpush1.msra.mxu0 0.0
    %2167 = vmatprep.subr.mxu0 0.0
    %2168 = vmatpush1.msra.mxu0 0.0
    %2169 = vmatprep.subr.mxu0 0.0
    %2170 = vmatpush1.msra.mxu0 0.0
    %2171 = vmatprep.subr.mxu0 0.0
    %2172 = vmatpush1.msra.mxu0 0.0
    %2173 = vmatprep.subr.mxu0 0.0
    %2174 = vmatpush1.msra.mxu0 0.0
    %2175 = vmatprep.subr.mxu0 0.0
    %2176 = vmatpush1.msra.mxu0 0.0
    %2177 = vmatprep.subr.mxu0 0.0
    %2178 = vmatpush1.msra.mxu0 0.0
    %2179 = vmatprep.subr.mxu0 0.0
    %2180 = vmatpush1.msra.mxu0 0.0
    %2181 = vmatprep.subr.mxu0 0.0
    %2182 = vmatpush1.msra.mxu0 0.0
    %2183 = vmatprep.mubr.f32.mxu0 0.0
    %2184 = vmatmul.mubr.f32.gmra.mrb[0].mxu0 %v2022
    %v2185 = vpop.f32.mrb[0].mxu0
    %v2186 = vadd.f32 %v316, %v2185
    %v2187 = vpop.f32.mrb[0].mxu0
    %2188 = vdwg.mxu0
    %2190 = vrot.lane.b32.xlu0 %v1845, 32
    %v2191 = vpop.permute.xlu0 %2190
    %v2192 = vsel %vm42, %v2191, 0
    %2194 = vmatprep.subr.mxu0 0.0
    %2195 = vmatpush1.msra.mxu0 %v291
    %2196 = vmatprep.subr.mxu0 0.0
    %2197 = vmatpush1.msra.mxu0 %v292
    %2198 = vmatprep.subr.mxu0 0.0
    %2199 = vmatpush1.msra.mxu0 %v293
    %2200 = vmatprep.subr.mxu0 0.0
    %2201 = vmatpush1.msra.mxu0 %v294
    %2202 = vmatprep.subr.mxu0 0.0
    %2203 = vmatpush1.msra.mxu0 0.0
    %2204 = vmatprep.subr.mxu0 0.0
    %2205 = vmatpush1.msra.mxu0 0.0
    %2206 = vmatprep.subr.mxu0 0.0
    %2207 = vmatpush1.msra.mxu0 0.0
    %2208 = vmatprep.subr.mxu0 0.0
    %2209 = vmatpush1.msra.mxu0 0.0
    %2210 = vmatprep.subr.mxu0 0.0
    %2211 = vmatpush1.msra.mxu0 0.0
    %2212 = vmatprep.subr.mxu0 0.0
    %2213 = vmatpush1.msra.mxu0 0.0
    %2214 = vmatprep.subr.mxu0 0.0
    %2215 = vmatpush1.msra.mxu0 0.0
    %2216 = vmatprep.subr.mxu0 0.0
    %2217 = vmatpush1.msra.mxu0 0.0
    %2218 = vmatprep.subr.mxu0 0.0
    %2219 = vmatpush1.msra.mxu0 0.0
    %2220 = vmatprep.subr.mxu0 0.0
    %2221 = vmatpush1.msra.mxu0 0.0
    %2222 = vmatprep.subr.mxu0 0.0
    %2223 = vmatpush1.msra.mxu0 0.0
    %2224 = vmatprep.subr.mxu0 0.0
    %2225 = vmatpush1.msra.mxu0 0.0
    %2226 = vmatprep.subr.mxu0 0.0
    %2227 = vmatpush1.msra.mxu0 0.0
    %2228 = vmatprep.subr.mxu0 0.0
    %2229 = vmatpush1.msra.mxu0 0.0
    %2230 = vmatprep.subr.mxu0 0.0
    %2231 = vmatpush1.msra.mxu0 0.0
    %2232 = vmatprep.subr.mxu0 0.0
    %2233 = vmatpush1.msra.mxu0 0.0
    %2234 = vmatprep.subr.mxu0 0.0
    %2235 = vmatpush1.msra.mxu0 0.0
    %2236 = vmatprep.subr.mxu0 0.0
    %2237 = vmatpush1.msra.mxu0 0.0
    %2238 = vmatprep.subr.mxu0 0.0
    %2239 = vmatpush1.msra.mxu0 0.0
    %2240 = vmatprep.subr.mxu0 0.0
    %2241 = vmatpush1.msra.mxu0 0.0
    %2242 = vmatprep.subr.mxu0 0.0
    %2243 = vmatpush1.msra.mxu0 0.0
    %2244 = vmatprep.subr.mxu0 0.0
    %2245 = vmatpush1.msra.mxu0 0.0
    %2246 = vmatprep.subr.mxu0 0.0
    %2247 = vmatpush1.msra.mxu0 0.0
    %2248 = vmatprep.subr.mxu0 0.0
    %2249 = vmatpush1.msra.mxu0 0.0
    %2250 = vmatprep.subr.mxu0 0.0
    %2251 = vmatpush1.msra.mxu0 0.0
    %2252 = vmatprep.subr.mxu0 0.0
    %2253 = vmatpush1.msra.mxu0 0.0
    %2254 = vmatprep.subr.mxu0 0.0
    %2255 = vmatpush1.msra.mxu0 0.0
    %2256 = vmatprep.subr.mxu0 0.0
    %2257 = vmatpush1.msra.mxu0 0.0
    %2258 = vmatprep.mubr.f32.mxu0 0.0
    %2259 = vmatmul.mubr.f32.gmra.mrb[0].mxu0 %v2192
    %v2260 = vpop.f32.mrb[0].mxu0
    %v2261 = vadd.f32 0.0, %v2260
    %v2262 = vpop.f32.mrb[0].mxu0
    %2263 = vdwg.mxu0
    %v2264 = vadd.f32 %v2186, %v2261
    %v2265 = vxor.u32 %v2264, 2147483648
    %v2266 = vmul.f32 %v2265, 1.442695
    %v2267 = vpow.pop %v2266
    %v2268 = vadd.f32 %v2267, 1.0
    %v2269 = vrcp.pop %v2268
    %v2270 = vmul.f32 1.0, %v2269
    %v2271 = vtanh.pop %v2264
    %v2272 = vmul.f32 %v2270, %v1839
    %2274 = vrot.lane.b32.xlu0 %v2271, 64
    %v2275 = vpop.permute.xlu0 %2274
    %v2277 = vmul.f32 %v2270, %v2275
    %2279 = vrot.lane.b32.xlu0 %v2277, 32
    %v2280 = vpop.permute.xlu0 %2279
    %v2282 = vadd.f32 %v2272, %v2280
    %v2283 = vtanh.pop %v2282
    %2285 = vrot.lane.b32.xlu0 %v2283, 64
    %v2286 = vpop.permute.xlu0 %2285
    %v2288 = vmul.f32 %v2270, %v2286
    %2289 = vmatprep.subr.mxu0 0.0
    %2290 = vmatpush1.msra.mxu0 %v306
    %2291 = vmatprep.subr.mxu0 0.0
    %2292 = vmatpush1.msra.mxu0 %v307
    %2293 = vmatprep.subr.mxu0 0.0
    %2294 = vmatpush1.msra.mxu0 %v308
    %2295 = vmatprep.subr.mxu0 0.0
    %2296 = vmatpush1.msra.mxu0 %v309
    %2297 = vmatprep.subr.mxu0 0.0
    %2298 = vmatpush1.msra.mxu0 0.0
    %2299 = vmatprep.subr.mxu0 0.0
    %2300 = vmatpush1.msra.mxu0 0.0
    %2301 = vmatprep.subr.mxu0 0.0
    %2302 = vmatpush1.msra.mxu0 0.0
    %2303 = vmatprep.subr.mxu0 0.0
    %2304 = vmatpush1.msra.mxu0 0.0
    %2305 = vmatprep.subr.mxu0 0.0
    %2306 = vmatpush1.msra.mxu0 0.0
    %2307 = vmatprep.subr.mxu0 0.0
    %2308 = vmatpush1.msra.mxu0 0.0
    %2309 = vmatprep.subr.mxu0 0.0
    %2310 = vmatpush1.msra.mxu0 0.0
    %2311 = vmatprep.subr.mxu0 0.0
    %2312 = vmatpush1.msra.mxu0 0.0
    %2313 = vmatprep.subr.mxu0 0.0
    %2314 = vmatpush1.msra.mxu0 0.0
    %2315 = vmatprep.subr.mxu0 0.0
    %2316 = vmatpush1.msra.mxu0 0.0
    %2317 = vmatprep.subr.mxu0 0.0
    %2318 = vmatpush1.msra.mxu0 0.0
    %2319 = vmatprep.subr.mxu0 0.0
    %2320 = vmatpush1.msra.mxu0 0.0
    %2321 = vmatprep.subr.mxu0 0.0
    %2322 = vmatpush1.msra.mxu0 0.0
    %2323 = vmatprep.subr.mxu0 0.0
    %2324 = vmatpush1.msra.mxu0 0.0
    %2325 = vmatprep.subr.mxu0 0.0
    %2326 = vmatpush1.msra.mxu0 0.0
    %2327 = vmatprep.subr.mxu0 0.0
    %2328 = vmatpush1.msra.mxu0 0.0
    %2329 = vmatprep.subr.mxu0 0.0
    %2330 = vmatpush1.msra.mxu0 0.0
    %2331 = vmatprep.subr.mxu0 0.0
    %2332 = vmatpush1.msra.mxu0 0.0
    %2333 = vmatprep.subr.mxu0 0.0
    %2334 = vmatpush1.msra.mxu0 0.0
    %2335 = vmatprep.subr.mxu0 0.0
    %2336 = vmatpush1.msra.mxu0 0.0
    %2337 = vmatprep.subr.mxu0 0.0
    %2338 = vmatpush1.msra.mxu0 0.0
    %2339 = vmatprep.subr.mxu0 0.0
    %2340 = vmatpush1.msra.mxu0 0.0
    %2341 = vmatprep.subr.mxu0 0.0
    %2342 = vmatpush1.msra.mxu0 0.0
    %2343 = vmatprep.subr.mxu0 0.0
    %2344 = vmatpush1.msra.mxu0 0.0
    %2345 = vmatprep.subr.mxu0 0.0
    %2346 = vmatpush1.msra.mxu0 0.0
    %2347 = vmatprep.subr.mxu0 0.0
    %2348 = vmatpush1.msra.mxu0 0.0
    %2349 = vmatprep.subr.mxu0 0.0
    %2350 = vmatpush1.msra.mxu0 0.0
    %2351 = vmatprep.subr.mxu0 0.0
    %2352 = vmatpush1.msra.mxu0 0.0
    %2353 = vmatprep.mubr.f32.mxu0 0.0
    %2354 = vmatmul.mubr.f32.gmra.mrb[0].mxu0 %v2192
    %v2355 = vpop.f32.mrb[0].mxu0
    %v2356 = vadd.f32 %v324, %v2355
    %v2357 = vpop.f32.mrb[0].mxu0
    %2358 = vdwg.mxu0
    %v2359 = vsel %vm42, %v2015, 0
    %2361 = vmatprep.subr.mxu0 0.0
    %2362 = vmatpush1.msra.mxu0 %v296
    %2363 = vmatprep.subr.mxu0 0.0
    %2364 = vmatpush1.msra.mxu0 %v297
    %2365 = vmatprep.subr.mxu0 0.0
    %2366 = vmatpush1.msra.mxu0 %v298
    %2367 = vmatprep.subr.mxu0 0.0
    %2368 = vmatpush1.msra.mxu0 %v299
    %2369 = vmatprep.subr.mxu0 0.0
    %2370 = vmatpush1.msra.mxu0 0.0
    %2371 = vmatprep.subr.mxu0 0.0
    %2372 = vmatpush1.msra.mxu0 0.0
    %2373 = vmatprep.subr.mxu0 0.0
    %2374 = vmatpush1.msra.mxu0 0.0
    %2375 = vmatprep.subr.mxu0 0.0
    %2376 = vmatpush1.msra.mxu0 0.0
    %2377 = vmatprep.subr.mxu0 0.0
    %2378 = vmatpush1.msra.mxu0 0.0
    %2379 = vmatprep.subr.mxu0 0.0
    %2380 = vmatpush1.msra.mxu0 0.0
    %2381 = vmatprep.subr.mxu0 0.0
    %2382 = vmatpush1.msra.mxu0 0.0
    %2383 = vmatprep.subr.mxu0 0.0
    %2384 = vmatpush1.msra.mxu0 0.0
    %2385 = vmatprep.subr.mxu0 0.0
    %2386 = vmatpush1.msra.mxu0 0.0
    %2387 = vmatprep.subr.mxu0 0.0
    %2388 = vmatpush1.msra.mxu0 0.0
    %2389 = vmatprep.subr.mxu0 0.0
    %2390 = vmatpush1.msra.mxu0 0.0
    %2391 = vmatprep.subr.mxu0 0.0
    %2392 = vmatpush1.msra.mxu0 0.0
    %2393 = vmatprep.subr.mxu0 0.0
    %2394 = vmatpush1.msra.mxu0 0.0
    %2395 = vmatprep.subr.mxu0 0.0
    %2396 = vmatpush1.msra.mxu0 0.0
    %2397 = vmatprep.subr.mxu0 0.0
    %2398 = vmatpush1.msra.mxu0 0.0
    %2399 = vmatprep.subr.mxu0 0.0
    %2400 = vmatpush1.msra.mxu0 0.0
    %2401 = vmatprep.subr.mxu0 0.0
    %2402 = vmatpush1.msra.mxu0 0.0
    %2403 = vmatprep.subr.mxu0 0.0
    %2404 = vmatpush1.msra.mxu0 0.0
    %2405 = vmatprep.subr.mxu0 0.0
    %2406 = vmatpush1.msra.mxu0 0.0
    %2407 = vmatprep.subr.mxu0 0.0
    %2408 = vmatpush1.msra.mxu0 0.0
    %2409 = vmatprep.subr.mxu0 0.0
    %2410 = vmatpush1.msra.mxu0 0.0
    %2411 = vmatprep.subr.mxu0 0.0
    %2412 = vmatpush1.msra.mxu0 0.0
    %2413 = vmatprep.subr.mxu0 0.0
    %2414 = vmatpush1.msra.mxu0 0.0
    %2415 = vmatprep.subr.mxu0 0.0
    %2416 = vmatpush1.msra.mxu0 0.0
    %2417 = vmatprep.subr.mxu0 0.0
    %2418 = vmatpush1.msra.mxu0 0.0
    %2419 = vmatprep.subr.mxu0 0.0
    %2420 = vmatpush1.msra.mxu0 0.0
    %2421 = vmatprep.subr.mxu0 0.0
    %2422 = vmatpush1.msra.mxu0 0.0
    %2423 = vmatprep.subr.mxu0 0.0
    %2424 = vmatpush1.msra.mxu0 0.0
    %2425 = vmatprep.mubr.f32.mxu0 0.0
    %2426 = vmatmul.mubr.f32.gmra.mrb[0].mxu0 %v2359
    %v2427 = vpop.f32.mrb[0].mxu0
    %v2428 = vadd.f32 0.0, %v2427
    %v2429 = vpop.f32.mrb[0].mxu0
    %2430 = vdwg.mxu0
    %v2431 = vadd.f32 %v2356, %v2428
    %v2432 = vxor.u32 %v2431, 2147483648
    %v2433 = vmul.f32 %v2432, 1.442695
    %v2434 = vpow.pop %v2433
    %v2435 = vadd.f32 %v2434, 1.0
    %v2436 = vrcp.pop %v2435
    %v2437 = vmul.f32 1.0, %v2436
    %v2438 = vtanh.pop %v2431
    %v2439 = vmul.f32 %v2437, %v2006
    %2441 = vrot.lane.b32.xlu0 %v2438, 64
    %v2442 = vpop.permute.xlu0 %2441
    %v2444 = vmul.f32 %v2437, %v2442
    %2446 = vrot.lane.b32.xlu0 %v2444, 32
    %v2447 = vpop.permute.xlu0 %2446
    %v2449 = vadd.f32 %v2439, %v2447
    %v2450 = vtanh.pop %v2449
    %2452 = vrot.lane.b32.xlu0 %v2450, 64
    %v2453 = vpop.permute.xlu0 %2452
    %v2455 = vmul.f32 %v2437, %v2453
    %2457 = vrot.lane.b32.xlu0 %v2455, 32
    %v2458 = vpop.permute.xlu0 %2457
    %2460 = vst.msk [vmem:[#allocation4 + $0x18] sm:$0xff] %vm42, %v2458
    %v2461 = vld [vmem:[#allocation3 + $0x30] sm:$0xff]
    %2463 = vrot.lane.b32.xlu0 %v2118, 32
    %v2464 = vpop.permute.xlu0 %2463
    %v2465 = vsel %vm42, %v2464, 0
    %2467 = vmatprep.subr.mxu0 0.0
    %2468 = vmatpush1.msra.mxu0 %v286
    %2469 = vmatprep.subr.mxu0 0.0
    %2470 = vmatpush1.msra.mxu0 %v287
    %2471 = vmatprep.subr.mxu0 0.0
    %2472 = vmatpush1.msra.mxu0 %v288
    %2473 = vmatprep.subr.mxu0 0.0
    %2474 = vmatpush1.msra.mxu0 %v289
    %2475 = vmatprep.subr.mxu0 0.0
    %2476 = vmatpush1.msra.mxu0 0.0
    %2477 = vmatprep.subr.mxu0 0.0
    %2478 = vmatpush1.msra.mxu0 0.0
    %2479 = vmatprep.subr.mxu0 0.0
    %2480 = vmatpush1.msra.mxu0 0.0
    %2481 = vmatprep.subr.mxu0 0.0
    %2482 = vmatpush1.msra.mxu0 0.0
    %2483 = vmatprep.subr.mxu0 0.0
    %2484 = vmatpush1.msra.mxu0 0.0
    %2485 = vmatprep.subr.mxu0 0.0
    %2486 = vmatpush1.msra.mxu0 0.0
    %2487 = vmatprep.subr.mxu0 0.0
    %2488 = vmatpush1.msra.mxu0 0.0
    %2489 = vmatprep.subr.mxu0 0.0
    %2490 = vmatpush1.msra.mxu0 0.0
    %2491 = vmatprep.subr.mxu0 0.0
    %2492 = vmatpush1.msra.mxu0 0.0
    %2493 = vmatprep.subr.mxu0 0.0
    %2494 = vmatpush1.msra.mxu0 0.0
    %2495 = vmatprep.subr.mxu0 0.0
    %2496 = vmatpush1.msra.mxu0 0.0
    %2497 = vmatprep.subr.mxu0 0.0
    %2498 = vmatpush1.msra.mxu0 0.0
    %2499 = vmatprep.subr.mxu0 0.0
    %2500 = vmatpush1.msra.mxu0 0.0
    %2501 = vmatprep.subr.mxu0 0.0
    %2502 = vmatpush1.msra.mxu0 0.0
    %2503 = vmatprep.subr.mxu0 0.0
    %2504 = vmatpush1.msra.mxu0 0.0
    %2505 = vmatprep.subr.mxu0 0.0
    %2506 = vmatpush1.msra.mxu0 0.0
    %2507 = vmatprep.subr.mxu0 0.0
    %2508 = vmatpush1.msra.mxu0 0.0
    %2509 = vmatprep.subr.mxu0 0.0
    %2510 = vmatpush1.msra.mxu0 0.0
    %2511 = vmatprep.subr.mxu0 0.0
    %2512 = vmatpush1.msra.mxu0 0.0
    %2513 = vmatprep.subr.mxu0 0.0
    %2514 = vmatpush1.msra.mxu0 0.0
    %2515 = vmatprep.subr.mxu0 0.0
    %2516 = vmatpush1.msra.mxu0 0.0
    %2517 = vmatprep.subr.mxu0 0.0
    %2518 = vmatpush1.msra.mxu0 0.0
    %2519 = vmatprep.subr.mxu0 0.0
    %2520 = vmatpush1.msra.mxu0 0.0
    %2521 = vmatprep.subr.mxu0 0.0
    %2522 = vmatpush1.msra.mxu0 0.0
    %2523 = vmatprep.subr.mxu0 0.0
    %2524 = vmatpush1.msra.mxu0 0.0
    %2525 = vmatprep.subr.mxu0 0.0
    %2526 = vmatpush1.msra.mxu0 0.0
    %2527 = vmatprep.subr.mxu0 0.0
    %2528 = vmatpush1.msra.mxu0 0.0
    %2529 = vmatprep.subr.mxu0 0.0
    %2530 = vmatpush1.msra.mxu0 0.0
    %2531 = vmatprep.mubr.f32.mxu0 0.0
    %2532 = vmatmul.mubr.f32.gmra.mrb[0].mxu0 %v2465
    %v2533 = vpop.f32.mrb[0].mxu0
    %v2534 = vadd.f32 0.0, %v2533
    %v2535 = vpop.f32.mrb[0].mxu0
    %2536 = vdwg.mxu0
    %v2537 = vadd.f32 %v2461, %v2534
    %v2538 = vxor.u32 %v2537, 2147483648
    %v2539 = vmul.f32 %v2538, 1.442695
    %v2540 = vpow.pop %v2539
    %v2541 = vadd.f32 %v2540, 1.0
    %v2542 = vrcp.pop %v2541
    %v2543 = vmul.f32 1.0, %v2542
    %v2544 = vtanh.pop %v2537
    %v2545 = vmul.f32 %v2543, %v2112
    %2547 = vrot.lane.b32.xlu0 %v2544, 64
    %v2548 = vpop.permute.xlu0 %2547
    %v2550 = vmul.f32 %v2543, %v2548
    %2552 = vrot.lane.b32.xlu0 %v2550, 32
    %v2553 = vpop.permute.xlu0 %2552
    %v2555 = vadd.f32 %v2545, %v2553
    %v2556 = vtanh.pop %v2555
    %2558 = vrot.lane.b32.xlu0 %v2556, 64
    %v2559 = vpop.permute.xlu0 %2558
    %v2561 = vmul.f32 %v2543, %v2559
    %2562 = vmatprep.subr.mxu0 0.0
    %2563 = vmatpush1.msra.mxu0 %v301
    %2564 = vmatprep.subr.mxu0 0.0
    %2565 = vmatpush1.msra.mxu0 %v302
    %2566 = vmatprep.subr.mxu0 0.0
    %2567 = vmatpush1.msra.mxu0 %v303
    %2568 = vmatprep.subr.mxu0 0.0
    %2569 = vmatpush1.msra.mxu0 %v304
    %2570 = vmatprep.subr.mxu0 0.0
    %2571 = vmatpush1.msra.mxu0 0.0
    %2572 = vmatprep.subr.mxu0 0.0
    %2573 = vmatpush1.msra.mxu0 0.0
    %2574 = vmatprep.subr.mxu0 0.0
    %2575 = vmatpush1.msra.mxu0 0.0
    %2576 = vmatprep.subr.mxu0 0.0
    %2577 = vmatpush1.msra.mxu0 0.0
    %2578 = vmatprep.subr.mxu0 0.0
    %2579 = vmatpush1.msra.mxu0 0.0
    %2580 = vmatprep.subr.mxu0 0.0
    %2581 = vmatpush1.msra.mxu0 0.0
    %2582 = vmatprep.subr.mxu0 0.0
    %2583 = vmatpush1.msra.mxu0 0.0
    %2584 = vmatprep.subr.mxu0 0.0
    %2585 = vmatpush1.msra.mxu0 0.0
    %2586 = vmatprep.subr.mxu0 0.0
    %2587 = vmatpush1.msra.mxu0 0.0
    %2588 = vmatprep.subr.mxu0 0.0
    %2589 = vmatpush1.msra.mxu0 0.0
    %2590 = vmatprep.subr.mxu0 0.0
    %2591 = vmatpush1.msra.mxu0 0.0
    %2592 = vmatprep.subr.mxu0 0.0
    %2593 = vmatpush1.msra.mxu0 0.0
    %2594 = vmatprep.subr.mxu0 0.0
    %2595 = vmatpush1.msra.mxu0 0.0
    %2596 = vmatprep.subr.mxu0 0.0
    %2597 = vmatpush1.msra.mxu0 0.0
    %2598 = vmatprep.subr.mxu0 0.0
    %2599 = vmatpush1.msra.mxu0 0.0
    %2600 = vmatprep.subr.mxu0 0.0
    %2601 = vmatpush1.msra.mxu0 0.0
    %2602 = vmatprep.subr.mxu0 0.0
    %2603 = vmatpush1.msra.mxu0 0.0
    %2604 = vmatprep.subr.mxu0 0.0
    %2605 = vmatpush1.msra.mxu0 0.0
    %2606 = vmatprep.subr.mxu0 0.0
    %2607 = vmatpush1.msra.mxu0 0.0
    %2608 = vmatprep.subr.mxu0 0.0
    %2609 = vmatpush1.msra.mxu0 0.0
    %2610 = vmatprep.subr.mxu0 0.0
    %2611 = vmatpush1.msra.mxu0 0.0
    %2612 = vmatprep.subr.mxu0 0.0
    %2613 = vmatpush1.msra.mxu0 0.0
    %2614 = vmatprep.subr.mxu0 0.0
    %2615 = vmatpush1.msra.mxu0 0.0
    %2616 = vmatprep.subr.mxu0 0.0
    %2617 = vmatpush1.msra.mxu0 0.0
    %2618 = vmatprep.subr.mxu0 0.0
    %2619 = vmatpush1.msra.mxu0 0.0
    %2620 = vmatprep.subr.mxu0 0.0
    %2621 = vmatpush1.msra.mxu0 0.0
    %2622 = vmatprep.subr.mxu0 0.0
    %2623 = vmatpush1.msra.mxu0 0.0
    %2624 = vmatprep.subr.mxu0 0.0
    %2625 = vmatpush1.msra.mxu0 0.0
    %2626 = vmatprep.mubr.f32.mxu0 0.0
    %2627 = vmatmul.mubr.f32.gmra.mrb[0].mxu0 %v2465
    %v2628 = vpop.f32.mrb[0].mxu0
    %v2629 = vadd.f32 %v316, %v2628
    %v2630 = vpop.f32.mrb[0].mxu0
    %2631 = vdwg.mxu0
    %2633 = vrot.lane.b32.xlu0 %v2288, 32
    %v2634 = vpop.permute.xlu0 %2633
    %v2635 = vsel %vm42, %v2634, 0
    %2637 = vmatprep.subr.mxu0 0.0
    %2638 = vmatpush1.msra.mxu0 %v291
    %2639 = vmatprep.subr.mxu0 0.0
    %2640 = vmatpush1.msra.mxu0 %v292
    %2641 = vmatprep.subr.mxu0 0.0
    %2642 = vmatpush1.msra.mxu0 %v293
    %2643 = vmatprep.subr.mxu0 0.0
    %2644 = vmatpush1.msra.mxu0 %v294
    %2645 = vmatprep.subr.mxu0 0.0
    %2646 = vmatpush1.msra.mxu0 0.0
    %2647 = vmatprep.subr.mxu0 0.0
    %2648 = vmatpush1.msra.mxu0 0.0
    %2649 = vmatprep.subr.mxu0 0.0
    %2650 = vmatpush1.msra.mxu0 0.0
    %2651 = vmatprep.subr.mxu0 0.0
    %2652 = vmatpush1.msra.mxu0 0.0
    %2653 = vmatprep.subr.mxu0 0.0
    %2654 = vmatpush1.msra.mxu0 0.0
    %2655 = vmatprep.subr.mxu0 0.0
    %2656 = vmatpush1.msra.mxu0 0.0
    %2657 = vmatprep.subr.mxu0 0.0
    %2658 = vmatpush1.msra.mxu0 0.0
    %2659 = vmatprep.subr.mxu0 0.0
    %2660 = vmatpush1.msra.mxu0 0.0
    %2661 = vmatprep.subr.mxu0 0.0
    %2662 = vmatpush1.msra.mxu0 0.0
    %2663 = vmatprep.subr.mxu0 0.0
    %2664 = vmatpush1.msra.mxu0 0.0
    %2665 = vmatprep.subr.mxu0 0.0
    %2666 = vmatpush1.msra.mxu0 0.0
    %2667 = vmatprep.subr.mxu0 0.0
    %2668 = vmatpush1.msra.mxu0 0.0
    %2669 = vmatprep.subr.mxu0 0.0
    %2670 = vmatpush1.msra.mxu0 0.0
    %2671 = vmatprep.subr.mxu0 0.0
    %2672 = vmatpush1.msra.mxu0 0.0
    %2673 = vmatprep.subr.mxu0 0.0
    %2674 = vmatpush1.msra.mxu0 0.0
    %2675 = vmatprep.subr.mxu0 0.0
    %2676 = vmatpush1.msra.mxu0 0.0
    %2677 = vmatprep.subr.mxu0 0.0
    %2678 = vmatpush1.msra.mxu0 0.0
    %2679 = vmatprep.subr.mxu0 0.0
    %2680 = vmatpush1.msra.mxu0 0.0
    %2681 = vmatprep.subr.mxu0 0.0
    %2682 = vmatpush1.msra.mxu0 0.0
    %2683 = vmatprep.subr.mxu0 0.0
    %2684 = vmatpush1.msra.mxu0 0.0
    %2685 = vmatprep.subr.mxu0 0.0
    %2686 = vmatpush1.msra.mxu0 0.0
    %2687 = vmatprep.subr.mxu0 0.0
    %2688 = vmatpush1.msra.mxu0 0.0
    %2689 = vmatprep.subr.mxu0 0.0
    %2690 = vmatpush1.msra.mxu0 0.0
    %2691 = vmatprep.subr.mxu0 0.0
    %2692 = vmatpush1.msra.mxu0 0.0
    %2693 = vmatprep.subr.mxu0 0.0
    %2694 = vmatpush1.msra.mxu0 0.0
    %2695 = vmatprep.subr.mxu0 0.0
    %2696 = vmatpush1.msra.mxu0 0.0
    %2697 = vmatprep.subr.mxu0 0.0
    %2698 = vmatpush1.msra.mxu0 0.0
    %2699 = vmatprep.subr.mxu0 0.0
    %2700 = vmatpush1.msra.mxu0 0.0
    %2701 = vmatprep.mubr.f32.mxu0 0.0
    %2702 = vmatmul.mubr.f32.gmra.mrb[0].mxu0 %v2635
    %v2703 = vpop.f32.mrb[0].mxu0
    %v2704 = vadd.f32 0.0, %v2703
    %v2705 = vpop.f32.mrb[0].mxu0
    %2706 = vdwg.mxu0
    %v2707 = vadd.f32 %v2629, %v2704
    %v2708 = vxor.u32 %v2707, 2147483648
    %v2709 = vmul.f32 %v2708, 1.442695
    %v2710 = vpow.pop %v2709
    %v2711 = vadd.f32 %v2710, 1.0
    %v2712 = vrcp.pop %v2711
    %v2713 = vmul.f32 1.0, %v2712
    %v2714 = vtanh.pop %v2707
    %v2715 = vmul.f32 %v2713, %v2282
    %2717 = vrot.lane.b32.xlu0 %v2714, 64
    %v2718 = vpop.permute.xlu0 %2717
    %v2720 = vmul.f32 %v2713, %v2718
    %2722 = vrot.lane.b32.xlu0 %v2720, 32
    %v2723 = vpop.permute.xlu0 %2722
    %v2725 = vadd.f32 %v2715, %v2723
    %v2726 = vtanh.pop %v2725
    %2728 = vrot.lane.b32.xlu0 %v2726, 64
    %v2729 = vpop.permute.xlu0 %2728
    %v2731 = vmul.f32 %v2713, %v2729
    %2732 = vmatprep.subr.mxu0 0.0
    %2733 = vmatpush1.msra.mxu0 %v306
    %2734 = vmatprep.subr.mxu0 0.0
    %2735 = vmatpush1.msra.mxu0 %v307
    %2736 = vmatprep.subr.mxu0 0.0
    %2737 = vmatpush1.msra.mxu0 %v308
    %2738 = vmatprep.subr.mxu0 0.0
    %2739 = vmatpush1.msra.mxu0 %v309
    %2740 = vmatprep.subr.mxu0 0.0
    %2741 = vmatpush1.msra.mxu0 0.0
    %2742 = vmatprep.subr.mxu0 0.0
    %2743 = vmatpush1.msra.mxu0 0.0
    %2744 = vmatprep.subr.mxu0 0.0
    %2745 = vmatpush1.msra.mxu0 0.0
    %2746 = vmatprep.subr.mxu0 0.0
    %2747 = vmatpush1.msra.mxu0 0.0
    %2748 = vmatprep.subr.mxu0 0.0
    %2749 = vmatpush1.msra.mxu0 0.0
    %2750 = vmatprep.subr.mxu0 0.0
    %2751 = vmatpush1.msra.mxu0 0.0
    %2752 = vmatprep.subr.mxu0 0.0
    %2753 = vmatpush1.msra.mxu0 0.0
    %2754 = vmatprep.subr.mxu0 0.0
    %2755 = vmatpush1.msra.mxu0 0.0
    %2756 = vmatprep.subr.mxu0 0.0
    %2757 = vmatpush1.msra.mxu0 0.0
    %2758 = vmatprep.subr.mxu0 0.0
    %2759 = vmatpush1.msra.mxu0 0.0
    %2760 = vmatprep.subr.mxu0 0.0
    %2761 = vmatpush1.msra.mxu0 0.0
    %2762 = vmatprep.subr.mxu0 0.0
    %2763 = vmatpush1.msra.mxu0 0.0
    %2764 = vmatprep.subr.mxu0 0.0
    %2765 = vmatpush1.msra.mxu0 0.0
    %2766 = vmatprep.subr.mxu0 0.0
    %2767 = vmatpush1.msra.mxu0 0.0
    %2768 = vmatprep.subr.mxu0 0.0
    %2769 = vmatpush1.msra.mxu0 0.0
    %2770 = vmatprep.subr.mxu0 0.0
    %2771 = vmatpush1.msra.mxu0 0.0
    %2772 = vmatprep.subr.mxu0 0.0
    %2773 = vmatpush1.msra.mxu0 0.0
    %2774 = vmatprep.subr.mxu0 0.0
    %2775 = vmatpush1.msra.mxu0 0.0
    %2776 = vmatprep.subr.mxu0 0.0
    %2777 = vmatpush1.msra.mxu0 0.0
    %2778 = vmatprep.subr.mxu0 0.0
    %2779 = vmatpush1.msra.mxu0 0.0
    %2780 = vmatprep.subr.mxu0 0.0
    %2781 = vmatpush1.msra.mxu0 0.0
    %2782 = vmatprep.subr.mxu0 0.0
    %2783 = vmatpush1.msra.mxu0 0.0
    %2784 = vmatprep.subr.mxu0 0.0
    %2785 = vmatpush1.msra.mxu0 0.0
    %2786 = vmatprep.subr.mxu0 0.0
    %2787 = vmatpush1.msra.mxu0 0.0
    %2788 = vmatprep.subr.mxu0 0.0
    %2789 = vmatpush1.msra.mxu0 0.0
    %2790 = vmatprep.subr.mxu0 0.0
    %2791 = vmatpush1.msra.mxu0 0.0
    %2792 = vmatprep.subr.mxu0 0.0
    %2793 = vmatpush1.msra.mxu0 0.0
    %2794 = vmatprep.subr.mxu0 0.0
    %2795 = vmatpush1.msra.mxu0 0.0
    %2796 = vmatprep.mubr.f32.mxu0 0.0
    %2797 = vmatmul.mubr.f32.gmra.mrb[0].mxu0 %v2635
    %v2798 = vpop.f32.mrb[0].mxu0
    %v2799 = vadd.f32 %v324, %v2798
    %v2800 = vpop.f32.mrb[0].mxu0
    %2801 = vdwg.mxu0
    %v2802 = vsel %vm42, %v2458, 0
    %2804 = vmatprep.subr.mxu0 0.0
    %2805 = vmatpush1.msra.mxu0 %v296
    %2806 = vmatprep.subr.mxu0 0.0
    %2807 = vmatpush1.msra.mxu0 %v297
    %2808 = vmatprep.subr.mxu0 0.0
    %2809 = vmatpush1.msra.mxu0 %v298
    %2810 = vmatprep.subr.mxu0 0.0
    %2811 = vmatpush1.msra.mxu0 %v299
    %2812 = vmatprep.subr.mxu0 0.0
    %2813 = vmatpush1.msra.mxu0 0.0
    %2814 = vmatprep.subr.mxu0 0.0
    %2815 = vmatpush1.msra.mxu0 0.0
    %2816 = vmatprep.subr.mxu0 0.0
    %2817 = vmatpush1.msra.mxu0 0.0
    %2818 = vmatprep.subr.mxu0 0.0
    %2819 = vmatpush1.msra.mxu0 0.0
    %2820 = vmatprep.subr.mxu0 0.0
    %2821 = vmatpush1.msra.mxu0 0.0
    %2822 = vmatprep.subr.mxu0 0.0
    %2823 = vmatpush1.msra.mxu0 0.0
    %2824 = vmatprep.subr.mxu0 0.0
    %2825 = vmatpush1.msra.mxu0 0.0
    %2826 = vmatprep.subr.mxu0 0.0
    %2827 = vmatpush1.msra.mxu0 0.0
    %2828 = vmatprep.subr.mxu0 0.0
    %2829 = vmatpush1.msra.mxu0 0.0
    %2830 = vmatprep.subr.mxu0 0.0
    %2831 = vmatpush1.msra.mxu0 0.0
    %2832 = vmatprep.subr.mxu0 0.0
    %2833 = vmatpush1.msra.mxu0 0.0
    %2834 = vmatprep.subr.mxu0 0.0
    %2835 = vmatpush1.msra.mxu0 0.0
    %2836 = vmatprep.subr.mxu0 0.0
    %2837 = vmatpush1.msra.mxu0 0.0
    %2838 = vmatprep.subr.mxu0 0.0
    %2839 = vmatpush1.msra.mxu0 0.0
    %2840 = vmatprep.subr.mxu0 0.0
    %2841 = vmatpush1.msra.mxu0 0.0
    %2842 = vmatprep.subr.mxu0 0.0
    %2843 = vmatpush1.msra.mxu0 0.0
    %2844 = vmatprep.subr.mxu0 0.0
    %2845 = vmatpush1.msra.mxu0 0.0
    %2846 = vmatprep.subr.mxu0 0.0
    %2847 = vmatpush1.msra.mxu0 0.0
    %2848 = vmatprep.subr.mxu0 0.0
    %2849 = vmatpush1.msra.mxu0 0.0
    %2850 = vmatprep.subr.mxu0 0.0
    %2851 = vmatpush1.msra.mxu0 0.0
    %2852 = vmatprep.subr.mxu0 0.0
    %2853 = vmatpush1.msra.mxu0 0.0
    %2854 = vmatprep.subr.mxu0 0.0
    %2855 = vmatpush1.msra.mxu0 0.0
    %2856 = vmatprep.subr.mxu0 0.0
    %2857 = vmatpush1.msra.mxu0 0.0
    %2858 = vmatprep.subr.mxu0 0.0
    %2859 = vmatpush1.msra.mxu0 0.0
    %2860 = vmatprep.subr.mxu0 0.0
    %2861 = vmatpush1.msra.mxu0 0.0
    %2862 = vmatprep.subr.mxu0 0.0
    %2863 = vmatpush1.msra.mxu0 0.0
    %2864 = vmatprep.subr.mxu0 0.0
    %2865 = vmatpush1.msra.mxu0 0.0
    %2866 = vmatprep.subr.mxu0 0.0
    %2867 = vmatpush1.msra.mxu0 0.0
    %2868 = vmatprep.mubr.f32.mxu0 0.0
    %2869 = vmatmul.mubr.f32.gmra.mrb[0].mxu0 %v2802
    %v2870 = vpop.f32.mrb[0].mxu0
    %v2871 = vadd.f32 0.0, %v2870
    %v2872 = vpop.f32.mrb[0].mxu0
    %2873 = vdwg.mxu0
    %v2874 = vadd.f32 %v2799, %v2871
    %v2875 = vxor.u32 %v2874, 2147483648
    %v2876 = vmul.f32 %v2875, 1.442695
    %v2877 = vpow.pop %v2876
    %v2878 = vadd.f32 %v2877, 1.0
    %v2879 = vrcp.pop %v2878
    %v2880 = vmul.f32 1.0, %v2879
    %v2881 = vtanh.pop %v2874
    %v2882 = vmul.f32 %v2880, %v2449
    %2884 = vrot.lane.b32.xlu0 %v2881, 64
    %v2885 = vpop.permute.xlu0 %2884
    %v2887 = vmul.f32 %v2880, %v2885
    %2889 = vrot.lane.b32.xlu0 %v2887, 32
    %v2890 = vpop.permute.xlu0 %2889
    %v2892 = vadd.f32 %v2882, %v2890
    %v2893 = vtanh.pop %v2892
    %2895 = vrot.lane.b32.xlu0 %v2893, 64
    %v2896 = vpop.permute.xlu0 %2895
    %v2898 = vmul.f32 %v2880, %v2896
    %2900 = vrot.lane.b32.xlu0 %v2898, 32
    %v2901 = vpop.permute.xlu0 %2900
    %2903 = vst.msk [vmem:[#allocation4 + $0x20] sm:$0xff] %vm42, %v2901
    %v2904 = vld [vmem:[#allocation3 + $0x38] sm:$0xff]
    %2906 = vrot.lane.b32.xlu0 %v2561, 32
    %v2907 = vpop.permute.xlu0 %2906
    %v2908 = vsel %vm42, %v2907, 0
    %2910 = vmatprep.subr.mxu0 0.0
    %2911 = vmatpush1.msra.mxu0 %v286
    %2912 = vmatprep.subr.mxu0 0.0
    %2913 = vmatpush1.msra.mxu0 %v287
    %2914 = vmatprep.subr.mxu0 0.0
    %2915 = vmatpush1.msra.mxu0 %v288
    %2916 = vmatprep.subr.mxu0 0.0
    %2917 = vmatpush1.msra.mxu0 %v289
    %2918 = vmatprep.subr.mxu0 0.0
    %2919 = vmatpush1.msra.mxu0 0.0
    %2920 = vmatprep.subr.mxu0 0.0
    %2921 = vmatpush1.msra.mxu0 0.0
    %2922 = vmatprep.subr.mxu0 0.0
    %2923 = vmatpush1.msra.mxu0 0.0
    %2924 = vmatprep.subr.mxu0 0.0
    %2925 = vmatpush1.msra.mxu0 0.0
    %2926 = vmatprep.subr.mxu0 0.0
    %2927 = vmatpush1.msra.mxu0 0.0
    %2928 = vmatprep.subr.mxu0 0.0
    %2929 = vmatpush1.msra.mxu0 0.0
    %2930 = vmatprep.subr.mxu0 0.0
    %2931 = vmatpush1.msra.mxu0 0.0
    %2932 = vmatprep.subr.mxu0 0.0
    %2933 = vmatpush1.msra.mxu0 0.0
    %2934 = vmatprep.subr.mxu0 0.0
    %2935 = vmatpush1.msra.mxu0 0.0
    %2936 = vmatprep.subr.mxu0 0.0
    %2937 = vmatpush1.msra.mxu0 0.0
    %2938 = vmatprep.subr.mxu0 0.0
    %2939 = vmatpush1.msra.mxu0 0.0
    %2940 = vmatprep.subr.mxu0 0.0
    %2941 = vmatpush1.msra.mxu0 0.0
    %2942 = vmatprep.subr.mxu0 0.0
    %2943 = vmatpush1.msra.mxu0 0.0
    %2944 = vmatprep.subr.mxu0 0.0
    %2945 = vmatpush1.msra.mxu0 0.0
    %2946 = vmatprep.subr.mxu0 0.0
    %2947 = vmatpush1.msra.mxu0 0.0
    %2948 = vmatprep.subr.mxu0 0.0
    %2949 = vmatpush1.msra.mxu0 0.0
    %2950 = vmatprep.subr.mxu0 0.0
    %2951 = vmatpush1.msra.mxu0 0.0
    %2952 = vmatprep.subr.mxu0 0.0
    %2953 = vmatpush1.msra.mxu0 0.0
    %2954 = vmatprep.subr.mxu0 0.0
    %2955 = vmatpush1.msra.mxu0 0.0
    %2956 = vmatprep.subr.mxu0 0.0
    %2957 = vmatpush1.msra.mxu0 0.0
    %2958 = vmatprep.subr.mxu0 0.0
    %2959 = vmatpush1.msra.mxu0 0.0
    %2960 = vmatprep.subr.mxu0 0.0
    %2961 = vmatpush1.msra.mxu0 0.0
    %2962 = vmatprep.subr.mxu0 0.0
    %2963 = vmatpush1.msra.mxu0 0.0
    %2964 = vmatprep.subr.mxu0 0.0
    %2965 = vmatpush1.msra.mxu0 0.0
    %2966 = vmatprep.subr.mxu0 0.0
    %2967 = vmatpush1.msra.mxu0 0.0
    %2968 = vmatprep.subr.mxu0 0.0
    %2969 = vmatpush1.msra.mxu0 0.0
    %2970 = vmatprep.subr.mxu0 0.0
    %2971 = vmatpush1.msra.mxu0 0.0
    %2972 = vmatprep.subr.mxu0 0.0
    %2973 = vmatpush1.msra.mxu0 0.0
    %2974 = vmatprep.mubr.f32.mxu0 0.0
    %2975 = vmatmul.mubr.f32.gmra.mrb[0].mxu0 %v2908
    %v2976 = vpop.f32.mrb[0].mxu0
    %v2977 = vadd.f32 0.0, %v2976
    %v2978 = vpop.f32.mrb[0].mxu0
    %2979 = vdwg.mxu0
    %v2980 = vadd.f32 %v2904, %v2977
    %v2981 = vxor.u32 %v2980, 2147483648
    %v2982 = vmul.f32 %v2981, 1.442695
    %v2983 = vpow.pop %v2982
    %v2984 = vadd.f32 %v2983, 1.0
    %v2985 = vrcp.pop %v2984
    %v2986 = vmul.f32 1.0, %v2985
    %v2987 = vtanh.pop %v2980
    %v2988 = vmul.f32 %v2986, %v2555
    %2990 = vrot.lane.b32.xlu0 %v2987, 64
    %v2991 = vpop.permute.xlu0 %2990
    %v2993 = vmul.f32 %v2986, %v2991
    %2995 = vrot.lane.b32.xlu0 %v2993, 32
    %v2996 = vpop.permute.xlu0 %2995
    %v2998 = vadd.f32 %v2988, %v2996
    %v2999 = vtanh.pop %v2998
    %3001 = vrot.lane.b32.xlu0 %v2999, 64
    %v3002 = vpop.permute.xlu0 %3001
    %v3004 = vmul.f32 %v2986, %v3002
    %3005 = vmatprep.subr.mxu0 0.0
    %3006 = vmatpush1.msra.mxu0 %v301
    %3007 = vmatprep.subr.mxu0 0.0
    %3008 = vmatpush1.msra.mxu0 %v302
    %3009 = vmatprep.subr.mxu0 0.0
    %3010 = vmatpush1.msra.mxu0 %v303
    %3011 = vmatprep.subr.mxu0 0.0
    %3012 = vmatpush1.msra.mxu0 %v304
    %3013 = vmatprep.subr.mxu0 0.0
    %3014 = vmatpush1.msra.mxu0 0.0
    %3015 = vmatprep.subr.mxu0 0.0
    %3016 = vmatpush1.msra.mxu0 0.0
    %3017 = vmatprep.subr.mxu0 0.0
    %3018 = vmatpush1.msra.mxu0 0.0
    %3019 = vmatprep.subr.mxu0 0.0
    %3020 = vmatpush1.msra.mxu0 0.0
    %3021 = vmatprep.subr.mxu0 0.0
    %3022 = vmatpush1.msra.mxu0 0.0
    %3023 = vmatprep.subr.mxu0 0.0
    %3024 = vmatpush1.msra.mxu0 0.0
    %3025 = vmatprep.subr.mxu0 0.0
    %3026 = vmatpush1.msra.mxu0 0.0
    %3027 = vmatprep.subr.mxu0 0.0
    %3028 = vmatpush1.msra.mxu0 0.0
    %3029 = vmatprep.subr.mxu0 0.0
    %3030 = vmatpush1.msra.mxu0 0.0
    %3031 = vmatprep.subr.mxu0 0.0
    %3032 = vmatpush1.msra.mxu0 0.0
    %3033 = vmatprep.subr.mxu0 0.0
    %3034 = vmatpush1.msra.mxu0 0.0
    %3035 = vmatprep.subr.mxu0 0.0
    %3036 = vmatpush1.msra.mxu0 0.0
    %3037 = vmatprep.subr.mxu0 0.0
    %3038 = vmatpush1.msra.mxu0 0.0
    %3039 = vmatprep.subr.mxu0 0.0
    %3040 = vmatpush1.msra.mxu0 0.0
    %3041 = vmatprep.subr.mxu0 0.0
    %3042 = vmatpush1.msra.mxu0 0.0
    %3043 = vmatprep.subr.mxu0 0.0
    %3044 = vmatpush1.msra.mxu0 0.0
    %3045 = vmatprep.subr.mxu0 0.0
    %3046 = vmatpush1.msra.mxu0 0.0
    %3047 = vmatprep.subr.mxu0 0.0
    %3048 = vmatpush1.msra.mxu0 0.0
    %3049 = vmatprep.subr.mxu0 0.0
    %3050 = vmatpush1.msra.mxu0 0.0
    %3051 = vmatprep.subr.mxu0 0.0
    %3052 = vmatpush1.msra.mxu0 0.0
    %3053 = vmatprep.subr.mxu0 0.0
    %3054 = vmatpush1.msra.mxu0 0.0
    %3055 = vmatprep.subr.mxu0 0.0
    %3056 = vmatpush1.msra.mxu0 0.0
    %3057 = vmatprep.subr.mxu0 0.0
    %3058 = vmatpush1.msra.mxu0 0.0
    %3059 = vmatprep.subr.mxu0 0.0
    %3060 = vmatpush1.msra.mxu0 0.0
    %3061 = vmatprep.subr.mxu0 0.0
    %3062 = vmatpush1.msra.mxu0 0.0
    %3063 = vmatprep.subr.mxu0 0.0
    %3064 = vmatpush1.msra.mxu0 0.0
    %3065 = vmatprep.subr.mxu0 0.0
    %3066 = vmatpush1.msra.mxu0 0.0
    %3067 = vmatprep.subr.mxu0 0.0
    %3068 = vmatpush1.msra.mxu0 0.0
    %3069 = vmatprep.mubr.f32.mxu0 0.0
    %3070 = vmatmul.mubr.f32.gmra.mrb[0].mxu0 %v2908
    %v3071 = vpop.f32.mrb[0].mxu0
    %v3072 = vadd.f32 %v316, %v3071
    %v3073 = vpop.f32.mrb[0].mxu0
    %3074 = vdwg.mxu0
    %3076 = vrot.lane.b32.xlu0 %v2731, 32
    %v3077 = vpop.permute.xlu0 %3076
    %v3078 = vsel %vm42, %v3077, 0
    %3080 = vmatprep.subr.mxu0 0.0
    %3081 = vmatpush1.msra.mxu0 %v291
    %3082 = vmatprep.subr.mxu0 0.0
    %3083 = vmatpush1.msra.mxu0 %v292
    %3084 = vmatprep.subr.mxu0 0.0
    %3085 = vmatpush1.msra.mxu0 %v293
    %3086 = vmatprep.subr.mxu0 0.0
    %3087 = vmatpush1.msra.mxu0 %v294
    %3088 = vmatprep.subr.mxu0 0.0
    %3089 = vmatpush1.msra.mxu0 0.0
    %3090 = vmatprep.subr.mxu0 0.0
    %3091 = vmatpush1.msra.mxu0 0.0
    %3092 = vmatprep.subr.mxu0 0.0
    %3093 = vmatpush1.msra.mxu0 0.0
    %3094 = vmatprep.subr.mxu0 0.0
    %3095 = vmatpush1.msra.mxu0 0.0
    %3096 = vmatprep.subr.mxu0 0.0
    %3097 = vmatpush1.msra.mxu0 0.0
    %3098 = vmatprep.subr.mxu0 0.0
    %3099 = vmatpush1.msra.mxu0 0.0
    %3100 = vmatprep.subr.mxu0 0.0
    %3101 = vmatpush1.msra.mxu0 0.0
    %3102 = vmatprep.subr.mxu0 0.0
    %3103 = vmatpush1.msra.mxu0 0.0
    %3104 = vmatprep.subr.mxu0 0.0
    %3105 = vmatpush1.msra.mxu0 0.0
    %3106 = vmatprep.subr.mxu0 0.0
    %3107 = vmatpush1.msra.mxu0 0.0
    %3108 = vmatprep.subr.mxu0 0.0
    %3109 = vmatpush1.msra.mxu0 0.0
    %3110 = vmatprep.subr.mxu0 0.0
    %3111 = vmatpush1.msra.mxu0 0.0
    %3112 = vmatprep.subr.mxu0 0.0
    %3113 = vmatpush1.msra.mxu0 0.0
    %3114 = vmatprep.subr.mxu0 0.0
    %3115 = vmatpush1.msra.mxu0 0.0
    %3116 = vmatprep.subr.mxu0 0.0
    %3117 = vmatpush1.msra.mxu0 0.0
    %3118 = vmatprep.subr.mxu0 0.0
    %3119 = vmatpush1.msra.mxu0 0.0
    %3120 = vmatprep.subr.mxu0 0.0
    %3121 = vmatpush1.msra.mxu0 0.0
    %3122 = vmatprep.subr.mxu0 0.0
    %3123 = vmatpush1.msra.mxu0 0.0
    %3124 = vmatprep.subr.mxu0 0.0
    %3125 = vmatpush1.msra.mxu0 0.0
    %3126 = vmatprep.subr.mxu0 0.0
    %3127 = vmatpush1.msra.mxu0 0.0
    %3128 = vmatprep.subr.mxu0 0.0
    %3129 = vmatpush1.msra.mxu0 0.0
    %3130 = vmatprep.subr.mxu0 0.0
    %3131 = vmatpush1.msra.mxu0 0.0
    %3132 = vmatprep.subr.mxu0 0.0
    %3133 = vmatpush1.msra.mxu0 0.0
    %3134 = vmatprep.subr.mxu0 0.0
    %3135 = vmatpush1.msra.mxu0 0.0
    %3136 = vmatprep.subr.mxu0 0.0
    %3137 = vmatpush1.msra.mxu0 0.0
    %3138 = vmatprep.subr.mxu0 0.0
    %3139 = vmatpush1.msra.mxu0 0.0
    %3140 = vmatprep.subr.mxu0 0.0
    %3141 = vmatpush1.msra.mxu0 0.0
    %3142 = vmatprep.subr.mxu0 0.0
    %3143 = vmatpush1.msra.mxu0 0.0
    %3144 = vmatprep.mubr.f32.mxu0 0.0
    %3145 = vmatmul.mubr.f32.gmra.mrb[0].mxu0 %v3078
    %v3146 = vpop.f32.mrb[0].mxu0
    %v3147 = vadd.f32 0.0, %v3146
    %v3148 = vpop.f32.mrb[0].mxu0
    %3149 = vdwg.mxu0
    %v3150 = vadd.f32 %v3072, %v3147
    %v3151 = vxor.u32 %v3150, 2147483648
    %v3152 = vmul.f32 %v3151, 1.442695
    %v3153 = vpow.pop %v3152
    %v3154 = vadd.f32 %v3153, 1.0
    %v3155 = vrcp.pop %v3154
    %v3156 = vmul.f32 1.0, %v3155
    %v3157 = vtanh.pop %v3150
    %v3158 = vmul.f32 %v3156, %v2725
    %3160 = vrot.lane.b32.xlu0 %v3157, 64
    %v3161 = vpop.permute.xlu0 %3160
    %v3163 = vmul.f32 %v3156, %v3161
    %3165 = vrot.lane.b32.xlu0 %v3163, 32
    %v3166 = vpop.permute.xlu0 %3165
    %v3168 = vadd.f32 %v3158, %v3166
    %v3169 = vtanh.pop %v3168
    %3171 = vrot.lane.b32.xlu0 %v3169, 64
    %v3172 = vpop.permute.xlu0 %3171
    %v3174 = vmul.f32 %v3156, %v3172
    %3175 = vmatprep.subr.mxu0 0.0
    %3176 = vmatpush1.msra.mxu0 %v306
    %3177 = vmatprep.subr.mxu0 0.0
    %3178 = vmatpush1.msra.mxu0 %v307
    %3179 = vmatprep.subr.mxu0 0.0
    %3180 = vmatpush1.msra.mxu0 %v308
    %3181 = vmatprep.subr.mxu0 0.0
    %3182 = vmatpush1.msra.mxu0 %v309
    %3183 = vmatprep.subr.mxu0 0.0
    %3184 = vmatpush1.msra.mxu0 0.0
    %3185 = vmatprep.subr.mxu0 0.0
    %3186 = vmatpush1.msra.mxu0 0.0
    %3187 = vmatprep.subr.mxu0 0.0
    %3188 = vmatpush1.msra.mxu0 0.0
    %3189 = vmatprep.subr.mxu0 0.0
    %3190 = vmatpush1.msra.mxu0 0.0
    %3191 = vmatprep.subr.mxu0 0.0
    %3192 = vmatpush1.msra.mxu0 0.0
    %3193 = vmatprep.subr.mxu0 0.0
    %3194 = vmatpush1.msra.mxu0 0.0
    %3195 = vmatprep.subr.mxu0 0.0
    %3196 = vmatpush1.msra.mxu0 0.0
    %3197 = vmatprep.subr.mxu0 0.0
    %3198 = vmatpush1.msra.mxu0 0.0
    %3199 = vmatprep.subr.mxu0 0.0
    %3200 = vmatpush1.msra.mxu0 0.0
    %3201 = vmatprep.subr.mxu0 0.0
    %3202 = vmatpush1.msra.mxu0 0.0
    %3203 = vmatprep.subr.mxu0 0.0
    %3204 = vmatpush1.msra.mxu0 0.0
    %3205 = vmatprep.subr.mxu0 0.0
    %3206 = vmatpush1.msra.mxu0 0.0
    %3207 = vmatprep.subr.mxu0 0.0
    %3208 = vmatpush1.msra.mxu0 0.0
    %3209 = vmatprep.subr.mxu0 0.0
    %3210 = vmatpush1.msra.mxu0 0.0
    %3211 = vmatprep.subr.mxu0 0.0
    %3212 = vmatpush1.msra.mxu0 0.0
    %3213 = vmatprep.subr.mxu0 0.0
    %3214 = vmatpush1.msra.mxu0 0.0
    %3215 = vmatprep.subr.mxu0 0.0
    %3216 = vmatpush1.msra.mxu0 0.0
    %3217 = vmatprep.subr.mxu0 0.0
    %3218 = vmatpush1.msra.mxu0 0.0
    %3219 = vmatprep.subr.mxu0 0.0
    %3220 = vmatpush1.msra.mxu0 0.0
    %3221 = vmatprep.subr.mxu0 0.0
    %3222 = vmatpush1.msra.mxu0 0.0
    %3223 = vmatprep.subr.mxu0 0.0
    %3224 = vmatpush1.msra.mxu0 0.0
    %3225 = vmatprep.subr.mxu0 0.0
    %3226 = vmatpush1.msra.mxu0 0.0
    %3227 = vmatprep.subr.mxu0 0.0
    %3228 = vmatpush1.msra.mxu0 0.0
    %3229 = vmatprep.subr.mxu0 0.0
    %3230 = vmatpush1.msra.mxu0 0.0
    %3231 = vmatprep.subr.mxu0 0.0
    %3232 = vmatpush1.msra.mxu0 0.0
    %3233 = vmatprep.subr.mxu0 0.0
    %3234 = vmatpush1.msra.mxu0 0.0
    %3235 = vmatprep.subr.mxu0 0.0
    %3236 = vmatpush1.msra.mxu0 0.0
    %3237 = vmatprep.subr.mxu0 0.0
    %3238 = vmatpush1.msra.mxu0 0.0
    %3239 = vmatprep.mubr.f32.mxu0 0.0
    %3240 = vmatmul.mubr.f32.gmra.mrb[0].mxu0 %v3078
    %v3241 = vpop.f32.mrb[0].mxu0
    %v3242 = vadd.f32 %v324, %v3241
    %v3243 = vpop.f32.mrb[0].mxu0
    %3244 = vdwg.mxu0
    %v3245 = vsel %vm42, %v2901, 0
    %3247 = vmatprep.subr.mxu0 0.0
    %3248 = vmatpush1.msra.mxu0 %v296
    %3249 = vmatprep.subr.mxu0 0.0
    %3250 = vmatpush1.msra.mxu0 %v297
    %3251 = vmatprep.subr.mxu0 0.0
    %3252 = vmatpush1.msra.mxu0 %v298
    %3253 = vmatprep.subr.mxu0 0.0
    %3254 = vmatpush1.msra.mxu0 %v299
    %3255 = vmatprep.subr.mxu0 0.0
    %3256 = vmatpush1.msra.mxu0 0.0
    %3257 = vmatprep.subr.mxu0 0.0
    %3258 = vmatpush1.msra.mxu0 0.0
    %3259 = vmatprep.subr.mxu0 0.0
    %3260 = vmatpush1.msra.mxu0 0.0
    %3261 = vmatprep.subr.mxu0 0.0
    %3262 = vmatpush1.msra.mxu0 0.0
    %3263 = vmatprep.subr.mxu0 0.0
    %3264 = vmatpush1.msra.mxu0 0.0
    %3265 = vmatprep.subr.mxu0 0.0
    %3266 = vmatpush1.msra.mxu0 0.0
    %3267 = vmatprep.subr.mxu0 0.0
    %3268 = vmatpush1.msra.mxu0 0.0
    %3269 = vmatprep.subr.mxu0 0.0
    %3270 = vmatpush1.msra.mxu0 0.0
    %3271 = vmatprep.subr.mxu0 0.0
    %3272 = vmatpush1.msra.mxu0 0.0
    %3273 = vmatprep.subr.mxu0 0.0
    %3274 = vmatpush1.msra.mxu0 0.0
    %3275 = vmatprep.subr.mxu0 0.0
    %3276 = vmatpush1.msra.mxu0 0.0
    %3277 = vmatprep.subr.mxu0 0.0
    %3278 = vmatpush1.msra.mxu0 0.0
    %3279 = vmatprep.subr.mxu0 0.0
    %3280 = vmatpush1.msra.mxu0 0.0
    %3281 = vmatprep.subr.mxu0 0.0
    %3282 = vmatpush1.msra.mxu0 0.0
    %3283 = vmatprep.subr.mxu0 0.0
    %3284 = vmatpush1.msra.mxu0 0.0
    %3285 = vmatprep.subr.mxu0 0.0
    %3286 = vmatpush1.msra.mxu0 0.0
    %3287 = vmatprep.subr.mxu0 0.0
    %3288 = vmatpush1.msra.mxu0 0.0
    %3289 = vmatprep.subr.mxu0 0.0
    %3290 = vmatpush1.msra.mxu0 0.0
    %3291 = vmatprep.subr.mxu0 0.0
    %3292 = vmatpush1.msra.mxu0 0.0
    %3293 = vmatprep.subr.mxu0 0.0
    %3294 = vmatpush1.msra.mxu0 0.0
    %3295 = vmatprep.subr.mxu0 0.0
    %3296 = vmatpush1.msra.mxu0 0.0
    %3297 = vmatprep.subr.mxu0 0.0
    %3298 = vmatpush1.msra.mxu0 0.0
    %3299 = vmatprep.subr.mxu0 0.0
    %3300 = vmatpush1.msra.mxu0 0.0
    %3301 = vmatprep.subr.mxu0 0.0
    %3302 = vmatpush1.msra.mxu0 0.0
    %3303 = vmatprep.subr.mxu0 0.0
    %3304 = vmatpush1.msra.mxu0 0.0
    %3305 = vmatprep.subr.mxu0 0.0
    %3306 = vmatpush1.msra.mxu0 0.0
    %3307 = vmatprep.subr.mxu0 0.0
    %3308 = vmatpush1.msra.mxu0 0.0
    %3309 = vmatprep.subr.mxu0 0.0
    %3310 = vmatpush1.msra.mxu0 0.0
    %3311 = vmatprep.mubr.f32.mxu0 0.0
    %3312 = vmatmul.mubr.f32.gmra.mrb[0].mxu0 %v3245
    %v3313 = vpop.f32.mrb[0].mxu0
    %v3314 = vadd.f32 0.0, %v3313
    %v3315 = vpop.f32.mrb[0].mxu0
    %3316 = vdwg.mxu0
    %v3317 = vadd.f32 %v3242, %v3314
    %v3318 = vxor.u32 %v3317, 2147483648
    %v3319 = vmul.f32 %v3318, 1.442695
    %v3320 = vpow.pop %v3319
    %v3321 = vadd.f32 %v3320, 1.0
    %v3322 = vrcp.pop %v3321
    %v3323 = vmul.f32 1.0, %v3322
    %v3324 = vtanh.pop %v3317
    %v3325 = vmul.f32 %v3323, %v2892
    %3327 = vrot.lane.b32.xlu0 %v3324, 64
    %v3328 = vpop.permute.xlu0 %3327
    %v3330 = vmul.f32 %v3323, %v3328
    %3332 = vrot.lane.b32.xlu0 %v3330, 32
    %v3333 = vpop.permute.xlu0 %3332
    %v3335 = vadd.f32 %v3325, %v3333
    %v3336 = vtanh.pop %v3335
    %3338 = vrot.lane.b32.xlu0 %v3336, 64
    %v3339 = vpop.permute.xlu0 %3338
    %v3341 = vmul.f32 %v3323, %v3339
    %3343 = vrot.lane.b32.xlu0 %v3341, 32
    %v3344 = vpop.permute.xlu0 %3343
    %3346 = vst.msk [vmem:[#allocation4 + $0x28] sm:$0xff] %vm42, %v3344
    %v3347 = vld [vmem:[#allocation3 + $0x40] sm:$0xff]
    %3349 = vrot.lane.b32.xlu0 %v3004, 32
    %v3350 = vpop.permute.xlu0 %3349
    %v3351 = vsel %vm42, %v3350, 0
    %3353 = vmatprep.subr.mxu0 0.0
    %3354 = vmatpush1.msra.mxu0 %v286
    %3355 = vmatprep.subr.mxu0 0.0
    %3356 = vmatpush1.msra.mxu0 %v287
    %3357 = vmatprep.subr.mxu0 0.0
    %3358 = vmatpush1.msra.mxu0 %v288
    %3359 = vmatprep.subr.mxu0 0.0
    %3360 = vmatpush1.msra.mxu0 %v289
    %3361 = vmatprep.subr.mxu0 0.0
    %3362 = vmatpush1.msra.mxu0 0.0
    %3363 = vmatprep.subr.mxu0 0.0
    %3364 = vmatpush1.msra.mxu0 0.0
    %3365 = vmatprep.subr.mxu0 0.0
    %3366 = vmatpush1.msra.mxu0 0.0
    %3367 = vmatprep.subr.mxu0 0.0
    %3368 = vmatpush1.msra.mxu0 0.0
    %3369 = vmatprep.subr.mxu0 0.0
    %3370 = vmatpush1.msra.mxu0 0.0
    %3371 = vmatprep.subr.mxu0 0.0
    %3372 = vmatpush1.msra.mxu0 0.0
    %3373 = vmatprep.subr.mxu0 0.0
    %3374 = vmatpush1.msra.mxu0 0.0
    %3375 = vmatprep.subr.mxu0 0.0
    %3376 = vmatpush1.msra.mxu0 0.0
    %3377 = vmatprep.subr.mxu0 0.0
    %3378 = vmatpush1.msra.mxu0 0.0
    %3379 = vmatprep.subr.mxu0 0.0
    %3380 = vmatpush1.msra.mxu0 0.0
    %3381 = vmatprep.subr.mxu0 0.0
    %3382 = vmatpush1.msra.mxu0 0.0
    %3383 = vmatprep.subr.mxu0 0.0
    %3384 = vmatpush1.msra.mxu0 0.0
    %3385 = vmatprep.subr.mxu0 0.0
    %3386 = vmatpush1.msra.mxu0 0.0
    %3387 = vmatprep.subr.mxu0 0.0
    %3388 = vmatpush1.msra.mxu0 0.0
    %3389 = vmatprep.subr.mxu0 0.0
    %3390 = vmatpush1.msra.mxu0 0.0
    %3391 = vmatprep.subr.mxu0 0.0
    %3392 = vmatpush1.msra.mxu0 0.0
    %3393 = vmatprep.subr.mxu0 0.0
    %3394 = vmatpush1.msra.mxu0 0.0
    %3395 = vmatprep.subr.mxu0 0.0
    %3396 = vmatpush1.msra.mxu0 0.0
    %3397 = vmatprep.subr.mxu0 0.0
    %3398 = vmatpush1.msra.mxu0 0.0
    %3399 = vmatprep.subr.mxu0 0.0
    %3400 = vmatpush1.msra.mxu0 0.0
    %3401 = vmatprep.subr.mxu0 0.0
    %3402 = vmatpush1.msra.mxu0 0.0
    %3403 = vmatprep.subr.mxu0 0.0
    %3404 = vmatpush1.msra.mxu0 0.0
    %3405 = vmatprep.subr.mxu0 0.0
    %3406 = vmatpush1.msra.mxu0 0.0
    %3407 = vmatprep.subr.mxu0 0.0
    %3408 = vmatpush1.msra.mxu0 0.0
    %3409 = vmatprep.subr.mxu0 0.0
    %3410 = vmatpush1.msra.mxu0 0.0
    %3411 = vmatprep.subr.mxu0 0.0
    %3412 = vmatpush1.msra.mxu0 0.0
    %3413 = vmatprep.subr.mxu0 0.0
    %3414 = vmatpush1.msra.mxu0 0.0
    %3415 = vmatprep.subr.mxu0 0.0
    %3416 = vmatpush1.msra.mxu0 0.0
    %3417 = vmatprep.mubr.f32.mxu0 0.0
    %3418 = vmatmul.mubr.f32.gmra.mrb[0].mxu0 %v3351
    %v3419 = vpop.f32.mrb[0].mxu0
    %v3420 = vadd.f32 0.0, %v3419
    %v3421 = vpop.f32.mrb[0].mxu0
    %3422 = vdwg.mxu0
    %v3423 = vadd.f32 %v3347, %v3420
    %v3424 = vxor.u32 %v3423, 2147483648
    %v3425 = vmul.f32 %v3424, 1.442695
    %v3426 = vpow.pop %v3425
    %v3427 = vadd.f32 %v3426, 1.0
    %v3428 = vrcp.pop %v3427
    %v3429 = vmul.f32 1.0, %v3428
    %v3430 = vtanh.pop %v3423
    %v3431 = vmul.f32 %v3429, %v2998
    %3433 = vrot.lane.b32.xlu0 %v3430, 64
    %v3434 = vpop.permute.xlu0 %3433
    %v3436 = vmul.f32 %v3429, %v3434
    %3438 = vrot.lane.b32.xlu0 %v3436, 32
    %v3439 = vpop.permute.xlu0 %3438
    %v3441 = vadd.f32 %v3431, %v3439
    %v3442 = vtanh.pop %v3441
    %3444 = vrot.lane.b32.xlu0 %v3442, 64
    %v3445 = vpop.permute.xlu0 %3444
    %v3447 = vmul.f32 %v3429, %v3445
    %3448 = vmatprep.subr.mxu0 0.0
    %3449 = vmatpush1.msra.mxu0 %v301
    %3450 = vmatprep.subr.mxu0 0.0
    %3451 = vmatpush1.msra.mxu0 %v302
    %3452 = vmatprep.subr.mxu0 0.0
    %3453 = vmatpush1.msra.mxu0 %v303
    %3454 = vmatprep.subr.mxu0 0.0
    %3455 = vmatpush1.msra.mxu0 %v304
    %3456 = vmatprep.subr.mxu0 0.0
    %3457 = vmatpush1.msra.mxu0 0.0
    %3458 = vmatprep.subr.mxu0 0.0
    %3459 = vmatpush1.msra.mxu0 0.0
    %3460 = vmatprep.subr.mxu0 0.0
    %3461 = vmatpush1.msra.mxu0 0.0
    %3462 = vmatprep.subr.mxu0 0.0
    %3463 = vmatpush1.msra.mxu0 0.0
    %3464 = vmatprep.subr.mxu0 0.0
    %3465 = vmatpush1.msra.mxu0 0.0
    %3466 = vmatprep.subr.mxu0 0.0
    %3467 = vmatpush1.msra.mxu0 0.0
    %3468 = vmatprep.subr.mxu0 0.0
    %3469 = vmatpush1.msra.mxu0 0.0
    %3470 = vmatprep.subr.mxu0 0.0
    %3471 = vmatpush1.msra.mxu0 0.0
    %3472 = vmatprep.subr.mxu0 0.0
    %3473 = vmatpush1.msra.mxu0 0.0
    %3474 = vmatprep.subr.mxu0 0.0
    %3475 = vmatpush1.msra.mxu0 0.0
    %3476 = vmatprep.subr.mxu0 0.0
    %3477 = vmatpush1.msra.mxu0 0.0
    %3478 = vmatprep.subr.mxu0 0.0
    %3479 = vmatpush1.msra.mxu0 0.0
    %3480 = vmatprep.subr.mxu0 0.0
    %3481 = vmatpush1.msra.mxu0 0.0
    %3482 = vmatprep.subr.mxu0 0.0
    %3483 = vmatpush1.msra.mxu0 0.0
    %3484 = vmatprep.subr.mxu0 0.0
    %3485 = vmatpush1.msra.mxu0 0.0
    %3486 = vmatprep.subr.mxu0 0.0
    %3487 = vmatpush1.msra.mxu0 0.0
    %3488 = vmatprep.subr.mxu0 0.0
    %3489 = vmatpush1.msra.mxu0 0.0
    %3490 = vmatprep.subr.mxu0 0.0
    %3491 = vmatpush1.msra.mxu0 0.0
    %3492 = vmatprep.subr.mxu0 0.0
    %3493 = vmatpush1.msra.mxu0 0.0
    %3494 = vmatprep.subr.mxu0 0.0
    %3495 = vmatpush1.msra.mxu0 0.0
    %3496 = vmatprep.subr.mxu0 0.0
    %3497 = vmatpush1.msra.mxu0 0.0
    %3498 = vmatprep.subr.mxu0 0.0
    %3499 = vmatpush1.msra.mxu0 0.0
    %3500 = vmatprep.subr.mxu0 0.0
    %3501 = vmatpush1.msra.mxu0 0.0
    %3502 = vmatprep.subr.mxu0 0.0
    %3503 = vmatpush1.msra.mxu0 0.0
    %3504 = vmatprep.subr.mxu0 0.0
    %3505 = vmatpush1.msra.mxu0 0.0
    %3506 = vmatprep.subr.mxu0 0.0
    %3507 = vmatpush1.msra.mxu0 0.0
    %3508 = vmatprep.subr.mxu0 0.0
    %3509 = vmatpush1.msra.mxu0 0.0
    %3510 = vmatprep.subr.mxu0 0.0
    %3511 = vmatpush1.msra.mxu0 0.0
    %3512 = vmatprep.mubr.f32.mxu0 0.0
    %3513 = vmatmul.mubr.f32.gmra.mrb[0].mxu0 %v3351
    %v3514 = vpop.f32.mrb[0].mxu0
    %v3515 = vadd.f32 %v316, %v3514
    %v3516 = vpop.f32.mrb[0].mxu0
    %3517 = vdwg.mxu0
    %3519 = vrot.lane.b32.xlu0 %v3174, 32
    %v3520 = vpop.permute.xlu0 %3519
    %v3521 = vsel %vm42, %v3520, 0
    %3523 = vmatprep.subr.mxu0 0.0
    %3524 = vmatpush1.msra.mxu0 %v291
    %3525 = vmatprep.subr.mxu0 0.0
    %3526 = vmatpush1.msra.mxu0 %v292
    %3527 = vmatprep.subr.mxu0 0.0
    %3528 = vmatpush1.msra.mxu0 %v293
    %3529 = vmatprep.subr.mxu0 0.0
    %3530 = vmatpush1.msra.mxu0 %v294
    %3531 = vmatprep.subr.mxu0 0.0
    %3532 = vmatpush1.msra.mxu0 0.0
    %3533 = vmatprep.subr.mxu0 0.0
    %3534 = vmatpush1.msra.mxu0 0.0
    %3535 = vmatprep.subr.mxu0 0.0
    %3536 = vmatpush1.msra.mxu0 0.0
    %3537 = vmatprep.subr.mxu0 0.0
    %3538 = vmatpush1.msra.mxu0 0.0
    %3539 = vmatprep.subr.mxu0 0.0
    %3540 = vmatpush1.msra.mxu0 0.0
    %3541 = vmatprep.subr.mxu0 0.0
    %3542 = vmatpush1.msra.mxu0 0.0
    %3543 = vmatprep.subr.mxu0 0.0
    %3544 = vmatpush1.msra.mxu0 0.0
    %3545 = vmatprep.subr.mxu0 0.0
    %3546 = vmatpush1.msra.mxu0 0.0
    %3547 = vmatprep.subr.mxu0 0.0
    %3548 = vmatpush1.msra.mxu0 0.0
    %3549 = vmatprep.subr.mxu0 0.0
    %3550 = vmatpush1.msra.mxu0 0.0
    %3551 = vmatprep.subr.mxu0 0.0
    %3552 = vmatpush1.msra.mxu0 0.0
    %3553 = vmatprep.subr.mxu0 0.0
    %3554 = vmatpush1.msra.mxu0 0.0
    %3555 = vmatprep.subr.mxu0 0.0
    %3556 = vmatpush1.msra.mxu0 0.0
    %3557 = vmatprep.subr.mxu0 0.0
    %3558 = vmatpush1.msra.mxu0 0.0
    %3559 = vmatprep.subr.mxu0 0.0
    %3560 = vmatpush1.msra.mxu0 0.0
    %3561 = vmatprep.subr.mxu0 0.0
    %3562 = vmatpush1.msra.mxu0 0.0
    %3563 = vmatprep.subr.mxu0 0.0
    %3564 = vmatpush1.msra.mxu0 0.0
    %3565 = vmatprep.subr.mxu0 0.0
    %3566 = vmatpush1.msra.mxu0 0.0
    %3567 = vmatprep.subr.mxu0 0.0
    %3568 = vmatpush1.msra.mxu0 0.0
    %3569 = vmatprep.subr.mxu0 0.0
    %3570 = vmatpush1.msra.mxu0 0.0
    %3571 = vmatprep.subr.mxu0 0.0
    %3572 = vmatpush1.msra.mxu0 0.0
    %3573 = vmatprep.subr.mxu0 0.0
    %3574 = vmatpush1.msra.mxu0 0.0
    %3575 = vmatprep.subr.mxu0 0.0
    %3576 = vmatpush1.msra.mxu0 0.0
    %3577 = vmatprep.subr.mxu0 0.0
    %3578 = vmatpush1.msra.mxu0 0.0
    %3579 = vmatprep.subr.mxu0 0.0
    %3580 = vmatpush1.msra.mxu0 0.0
    %3581 = vmatprep.subr.mxu0 0.0
    %3582 = vmatpush1.msra.mxu0 0.0
    %3583 = vmatprep.subr.mxu0 0.0
    %3584 = vmatpush1.msra.mxu0 0.0
    %3585 = vmatprep.subr.mxu0 0.0
    %3586 = vmatpush1.msra.mxu0 0.0
    %3587 = vmatprep.mubr.f32.mxu0 0.0
    %3588 = vmatmul.mubr.f32.gmra.mrb[0].mxu0 %v3521
    %v3589 = vpop.f32.mrb[0].mxu0
    %v3590 = vadd.f32 0.0, %v3589
    %v3591 = vpop.f32.mrb[0].mxu0
    %3592 = vdwg.mxu0
    %v3593 = vadd.f32 %v3515, %v3590
    %v3594 = vxor.u32 %v3593, 2147483648
    %v3595 = vmul.f32 %v3594, 1.442695
    %v3596 = vpow.pop %v3595
    %v3597 = vadd.f32 %v3596, 1.0
    %v3598 = vrcp.pop %v3597
    %v3599 = vmul.f32 1.0, %v3598
    %v3600 = vtanh.pop %v3593
    %v3601 = vmul.f32 %v3599, %v3168
    %3603 = vrot.lane.b32.xlu0 %v3600, 64
    %v3604 = vpop.permute.xlu0 %3603
    %v3606 = vmul.f32 %v3599, %v3604
    %3608 = vrot.lane.b32.xlu0 %v3606, 32
    %v3609 = vpop.permute.xlu0 %3608
    %v3611 = vadd.f32 %v3601, %v3609
    %v3612 = vtanh.pop %v3611
    %3614 = vrot.lane.b32.xlu0 %v3612, 64
    %v3615 = vpop.permute.xlu0 %3614
    %v3617 = vmul.f32 %v3599, %v3615
    %3618 = vmatprep.subr.mxu0 0.0
    %3619 = vmatpush1.msra.mxu0 %v306
    %3620 = vmatprep.subr.mxu0 0.0
    %3621 = vmatpush1.msra.mxu0 %v307
    %3622 = vmatprep.subr.mxu0 0.0
    %3623 = vmatpush1.msra.mxu0 %v308
    %3624 = vmatprep.subr.mxu0 0.0
    %3625 = vmatpush1.msra.mxu0 %v309
    %3626 = vmatprep.subr.mxu0 0.0
    %3627 = vmatpush1.msra.mxu0 0.0
    %3628 = vmatprep.subr.mxu0 0.0
    %3629 = vmatpush1.msra.mxu0 0.0
    %3630 = vmatprep.subr.mxu0 0.0
    %3631 = vmatpush1.msra.mxu0 0.0
    %3632 = vmatprep.subr.mxu0 0.0
    %3633 = vmatpush1.msra.mxu0 0.0
    %3634 = vmatprep.subr.mxu0 0.0
    %3635 = vmatpush1.msra.mxu0 0.0
    %3636 = vmatprep.subr.mxu0 0.0
    %3637 = vmatpush1.msra.mxu0 0.0
    %3638 = vmatprep.subr.mxu0 0.0
    %3639 = vmatpush1.msra.mxu0 0.0
    %3640 = vmatprep.subr.mxu0 0.0
    %3641 = vmatpush1.msra.mxu0 0.0
    %3642 = vmatprep.subr.mxu0 0.0
    %3643 = vmatpush1.msra.mxu0 0.0
    %3644 = vmatprep.subr.mxu0 0.0
    %3645 = vmatpush1.msra.mxu0 0.0
    %3646 = vmatprep.subr.mxu0 0.0
    %3647 = vmatpush1.msra.mxu0 0.0
    %3648 = vmatprep.subr.mxu0 0.0
    %3649 = vmatpush1.msra.mxu0 0.0
    %3650 = vmatprep.subr.mxu0 0.0
    %3651 = vmatpush1.msra.mxu0 0.0
    %3652 = vmatprep.subr.mxu0 0.0
    %3653 = vmatpush1.msra.mxu0 0.0
    %3654 = vmatprep.subr.mxu0 0.0
    %3655 = vmatpush1.msra.mxu0 0.0
    %3656 = vmatprep.subr.mxu0 0.0
    %3657 = vmatpush1.msra.mxu0 0.0
    %3658 = vmatprep.subr.mxu0 0.0
    %3659 = vmatpush1.msra.mxu0 0.0
    %3660 = vmatprep.subr.mxu0 0.0
    %3661 = vmatpush1.msra.mxu0 0.0
    %3662 = vmatprep.subr.mxu0 0.0
    %3663 = vmatpush1.msra.mxu0 0.0
    %3664 = vmatprep.subr.mxu0 0.0
    %3665 = vmatpush1.msra.mxu0 0.0
    %3666 = vmatprep.subr.mxu0 0.0
    %3667 = vmatpush1.msra.mxu0 0.0
    %3668 = vmatprep.subr.mxu0 0.0
    %3669 = vmatpush1.msra.mxu0 0.0
    %3670 = vmatprep.subr.mxu0 0.0
    %3671 = vmatpush1.msra.mxu0 0.0
    %3672 = vmatprep.subr.mxu0 0.0
    %3673 = vmatpush1.msra.mxu0 0.0
    %3674 = vmatprep.subr.mxu0 0.0
    %3675 = vmatpush1.msra.mxu0 0.0
    %3676 = vmatprep.subr.mxu0 0.0
    %3677 = vmatpush1.msra.mxu0 0.0
    %3678 = vmatprep.subr.mxu0 0.0
    %3679 = vmatpush1.msra.mxu0 0.0
    %3680 = vmatprep.subr.mxu0 0.0
    %3681 = vmatpush1.msra.mxu0 0.0
    %3682 = vmatprep.mubr.f32.mxu0 0.0
    %3683 = vmatmul.mubr.f32.gmra.mrb[0].mxu0 %v3521
    %v3684 = vpop.f32.mrb[0].mxu0
    %v3685 = vadd.f32 %v324, %v3684
    %v3686 = vpop.f32.mrb[0].mxu0
    %3687 = vdwg.mxu0
    %v3688 = vsel %vm42, %v3344, 0
    %3690 = vmatprep.subr.mxu0 0.0
    %3691 = vmatpush1.msra.mxu0 %v296
    %3692 = vmatprep.subr.mxu0 0.0
    %3693 = vmatpush1.msra.mxu0 %v297
    %3694 = vmatprep.subr.mxu0 0.0
    %3695 = vmatpush1.msra.mxu0 %v298
    %3696 = vmatprep.subr.mxu0 0.0
    %3697 = vmatpush1.msra.mxu0 %v299
    %3698 = vmatprep.subr.mxu0 0.0
    %3699 = vmatpush1.msra.mxu0 0.0
    %3700 = vmatprep.subr.mxu0 0.0
    %3701 = vmatpush1.msra.mxu0 0.0
    %3702 = vmatprep.subr.mxu0 0.0
    %3703 = vmatpush1.msra.mxu0 0.0
    %3704 = vmatprep.subr.mxu0 0.0
    %3705 = vmatpush1.msra.mxu0 0.0
    %3706 = vmatprep.subr.mxu0 0.0
    %3707 = vmatpush1.msra.mxu0 0.0
    %3708 = vmatprep.subr.mxu0 0.0
    %3709 = vmatpush1.msra.mxu0 0.0
    %3710 = vmatprep.subr.mxu0 0.0
    %3711 = vmatpush1.msra.mxu0 0.0
    %3712 = vmatprep.subr.mxu0 0.0
    %3713 = vmatpush1.msra.mxu0 0.0
    %3714 = vmatprep.subr.mxu0 0.0
    %3715 = vmatpush1.msra.mxu0 0.0
    %3716 = vmatprep.subr.mxu0 0.0
    %3717 = vmatpush1.msra.mxu0 0.0
    %3718 = vmatprep.subr.mxu0 0.0
    %3719 = vmatpush1.msra.mxu0 0.0
    %3720 = vmatprep.subr.mxu0 0.0
    %3721 = vmatpush1.msra.mxu0 0.0
    %3722 = vmatprep.subr.mxu0 0.0
    %3723 = vmatpush1.msra.mxu0 0.0
    %3724 = vmatprep.subr.mxu0 0.0
    %3725 = vmatpush1.msra.mxu0 0.0
    %3726 = vmatprep.subr.mxu0 0.0
    %3727 = vmatpush1.msra.mxu0 0.0
    %3728 = vmatprep.subr.mxu0 0.0
    %3729 = vmatpush1.msra.mxu0 0.0
    %3730 = vmatprep.subr.mxu0 0.0
    %3731 = vmatpush1.msra.mxu0 0.0
    %3732 = vmatprep.subr.mxu0 0.0
    %3733 = vmatpush1.msra.mxu0 0.0
    %3734 = vmatprep.subr.mxu0 0.0
    %3735 = vmatpush1.msra.mxu0 0.0
    %3736 = vmatprep.subr.mxu0 0.0
    %3737 = vmatpush1.msra.mxu0 0.0
    %3738 = vmatprep.subr.mxu0 0.0
    %3739 = vmatpush1.msra.mxu0 0.0
    %3740 = vmatprep.subr.mxu0 0.0
    %3741 = vmatpush1.msra.mxu0 0.0
    %3742 = vmatprep.subr.mxu0 0.0
    %3743 = vmatpush1.msra.mxu0 0.0
    %3744 = vmatprep.subr.mxu0 0.0
    %3745 = vmatpush1.msra.mxu0 0.0
    %3746 = vmatprep.subr.mxu0 0.0
    %3747 = vmatpush1.msra.mxu0 0.0
    %3748 = vmatprep.subr.mxu0 0.0
    %3749 = vmatpush1.msra.mxu0 0.0
    %3750 = vmatprep.subr.mxu0 0.0
    %3751 = vmatpush1.msra.mxu0 0.0
    %3752 = vmatprep.subr.mxu0 0.0
    %3753 = vmatpush1.msra.mxu0 0.0
    %3754 = vmatprep.mubr.f32.mxu0 0.0
    %3755 = vmatmul.mubr.f32.gmra.mrb[0].mxu0 %v3688
    %v3756 = vpop.f32.mrb[0].mxu0
    %v3757 = vadd.f32 0.0, %v3756
    %v3758 = vpop.f32.mrb[0].mxu0
    %3759 = vdwg.mxu0
    %v3760 = vadd.f32 %v3685, %v3757
    %v3761 = vxor.u32 %v3760, 2147483648
    %v3762 = vmul.f32 %v3761, 1.442695
    %v3763 = vpow.pop %v3762
    %v3764 = vadd.f32 %v3763, 1.0
    %v3765 = vrcp.pop %v3764
    %v3766 = vmul.f32 1.0, %v3765
    %v3767 = vtanh.pop %v3760
    %v3768 = vmul.f32 %v3766, %v3335
    %3770 = vrot.lane.b32.xlu0 %v3767, 64
    %v3771 = vpop.permute.xlu0 %3770
    %v3773 = vmul.f32 %v3766, %v3771
    %3775 = vrot.lane.b32.xlu0 %v3773, 32
    %v3776 = vpop.permute.xlu0 %3775
    %v3778 = vadd.f32 %v3768, %v3776
    %v3779 = vtanh.pop %v3778
    %3781 = vrot.lane.b32.xlu0 %v3779, 64
    %v3782 = vpop.permute.xlu0 %3781
    %v3784 = vmul.f32 %v3766, %v3782
    %3786 = vrot.lane.b32.xlu0 %v3784, 32
    %v3787 = vpop.permute.xlu0 %3786
    %3789 = vst.msk [vmem:[#allocation4 + $0x30] sm:$0xff] %vm42, %v3787
    %3791 = vrot.lane.b32.xlu0 %v3447, 32
    %v3792 = vpop.permute.xlu0 %3791
    %v3793 = vsel %vm42, %v3792, 0
    %3795 = vmatprep.subr.mxu0 0.0
    %3796 = vmatpush1.msra.mxu0 %v301
    %3797 = vmatprep.subr.mxu0 0.0
    %3798 = vmatpush1.msra.mxu0 %v302
    %3799 = vmatprep.subr.mxu0 0.0
    %3800 = vmatpush1.msra.mxu0 %v303
    %3801 = vmatprep.subr.mxu0 0.0
    %3802 = vmatpush1.msra.mxu0 %v304
    %3803 = vmatprep.subr.mxu0 0.0
    %3804 = vmatpush1.msra.mxu0 0.0
    %3805 = vmatprep.subr.mxu0 0.0
    %3806 = vmatpush1.msra.mxu0 0.0
    %3807 = vmatprep.subr.mxu0 0.0
    %3808 = vmatpush1.msra.mxu0 0.0
    %3809 = vmatprep.subr.mxu0 0.0
    %3810 = vmatpush1.msra.mxu0 0.0
    %3811 = vmatprep.subr.mxu0 0.0
    %3812 = vmatpush1.msra.mxu0 0.0
    %3813 = vmatprep.subr.mxu0 0.0
    %3814 = vmatpush1.msra.mxu0 0.0
    %3815 = vmatprep.subr.mxu0 0.0
    %3816 = vmatpush1.msra.mxu0 0.0
    %3817 = vmatprep.subr.mxu0 0.0
    %3818 = vmatpush1.msra.mxu0 0.0
    %3819 = vmatprep.subr.mxu0 0.0
    %3820 = vmatpush1.msra.mxu0 0.0
    %3821 = vmatprep.subr.mxu0 0.0
    %3822 = vmatpush1.msra.mxu0 0.0
    %3823 = vmatprep.subr.mxu0 0.0
    %3824 = vmatpush1.msra.mxu0 0.0
    %3825 = vmatprep.subr.mxu0 0.0
    %3826 = vmatpush1.msra.mxu0 0.0
    %3827 = vmatprep.subr.mxu0 0.0
    %3828 = vmatpush1.msra.mxu0 0.0
    %3829 = vmatprep.subr.mxu0 0.0
    %3830 = vmatpush1.msra.mxu0 0.0
    %3831 = vmatprep.subr.mxu0 0.0
    %3832 = vmatpush1.msra.mxu0 0.0
    %3833 = vmatprep.subr.mxu0 0.0
    %3834 = vmatpush1.msra.mxu0 0.0
    %3835 = vmatprep.subr.mxu0 0.0
    %3836 = vmatpush1.msra.mxu0 0.0
    %3837 = vmatprep.subr.mxu0 0.0
    %3838 = vmatpush1.msra.mxu0 0.0
    %3839 = vmatprep.subr.mxu0 0.0
    %3840 = vmatpush1.msra.mxu0 0.0
    %3841 = vmatprep.subr.mxu0 0.0
    %3842 = vmatpush1.msra.mxu0 0.0
    %3843 = vmatprep.subr.mxu0 0.0
    %3844 = vmatpush1.msra.mxu0 0.0
    %3845 = vmatprep.subr.mxu0 0.0
    %3846 = vmatpush1.msra.mxu0 0.0
    %3847 = vmatprep.subr.mxu0 0.0
    %3848 = vmatpush1.msra.mxu0 0.0
    %3849 = vmatprep.subr.mxu0 0.0
    %3850 = vmatpush1.msra.mxu0 0.0
    %3851 = vmatprep.subr.mxu0 0.0
    %3852 = vmatpush1.msra.mxu0 0.0
    %3853 = vmatprep.subr.mxu0 0.0
    %3854 = vmatpush1.msra.mxu0 0.0
    %3855 = vmatprep.subr.mxu0 0.0
    %3856 = vmatpush1.msra.mxu0 0.0
    %3857 = vmatprep.subr.mxu0 0.0
    %3858 = vmatpush1.msra.mxu0 0.0
    %3859 = vmatprep.mubr.f32.mxu0 0.0
    %3860 = vmatmul.mubr.f32.gmra.mrb[0].mxu0 %v3793
    %v3861 = vpop.f32.mrb[0].mxu0
    %v3862 = vadd.f32 %v316, %v3861
    %v3863 = vpop.f32.mrb[0].mxu0
    %3864 = vdwg.mxu0
    %3866 = vrot.lane.b32.xlu0 %v3617, 32
    %v3867 = vpop.permute.xlu0 %3866
    %v3868 = vsel %vm42, %v3867, 0
    %3870 = vmatprep.subr.mxu0 0.0
    %3871 = vmatpush1.msra.mxu0 %v291
    %3872 = vmatprep.subr.mxu0 0.0
    %3873 = vmatpush1.msra.mxu0 %v292
    %3874 = vmatprep.subr.mxu0 0.0
    %3875 = vmatpush1.msra.mxu0 %v293
    %3876 = vmatprep.subr.mxu0 0.0
    %3877 = vmatpush1.msra.mxu0 %v294
    %3878 = vmatprep.subr.mxu0 0.0
    %3879 = vmatpush1.msra.mxu0 0.0
    %3880 = vmatprep.subr.mxu0 0.0
    %3881 = vmatpush1.msra.mxu0 0.0
    %3882 = vmatprep.subr.mxu0 0.0
    %3883 = vmatpush1.msra.mxu0 0.0
    %3884 = vmatprep.subr.mxu0 0.0
    %3885 = vmatpush1.msra.mxu0 0.0
    %3886 = vmatprep.subr.mxu0 0.0
    %3887 = vmatpush1.msra.mxu0 0.0
    %3888 = vmatprep.subr.mxu0 0.0
    %3889 = vmatpush1.msra.mxu0 0.0
    %3890 = vmatprep.subr.mxu0 0.0
    %3891 = vmatpush1.msra.mxu0 0.0
    %3892 = vmatprep.subr.mxu0 0.0
    %3893 = vmatpush1.msra.mxu0 0.0
    %3894 = vmatprep.subr.mxu0 0.0
    %3895 = vmatpush1.msra.mxu0 0.0
    %3896 = vmatprep.subr.mxu0 0.0
    %3897 = vmatpush1.msra.mxu0 0.0
    %3898 = vmatprep.subr.mxu0 0.0
    %3899 = vmatpush1.msra.mxu0 0.0
    %3900 = vmatprep.subr.mxu0 0.0
    %3901 = vmatpush1.msra.mxu0 0.0
    %3902 = vmatprep.subr.mxu0 0.0
    %3903 = vmatpush1.msra.mxu0 0.0
    %3904 = vmatprep.subr.mxu0 0.0
    %3905 = vmatpush1.msra.mxu0 0.0
    %3906 = vmatprep.subr.mxu0 0.0
    %3907 = vmatpush1.msra.mxu0 0.0
    %3908 = vmatprep.subr.mxu0 0.0
    %3909 = vmatpush1.msra.mxu0 0.0
    %3910 = vmatprep.subr.mxu0 0.0
    %3911 = vmatpush1.msra.mxu0 0.0
    %3912 = vmatprep.subr.mxu0 0.0
    %3913 = vmatpush1.msra.mxu0 0.0
    %3914 = vmatprep.subr.mxu0 0.0
    %3915 = vmatpush1.msra.mxu0 0.0
    %3916 = vmatprep.subr.mxu0 0.0
    %3917 = vmatpush1.msra.mxu0 0.0
    %3918 = vmatprep.subr.mxu0 0.0
    %3919 = vmatpush1.msra.mxu0 0.0
    %3920 = vmatprep.subr.mxu0 0.0
    %3921 = vmatpush1.msra.mxu0 0.0
    %3922 = vmatprep.subr.mxu0 0.0
    %3923 = vmatpush1.msra.mxu0 0.0
    %3924 = vmatprep.subr.mxu0 0.0
    %3925 = vmatpush1.msra.mxu0 0.0
    %3926 = vmatprep.subr.mxu0 0.0
    %3927 = vmatpush1.msra.mxu0 0.0
    %3928 = vmatprep.subr.mxu0 0.0
    %3929 = vmatpush1.msra.mxu0 0.0
    %3930 = vmatprep.subr.mxu0 0.0
    %3931 = vmatpush1.msra.mxu0 0.0
    %3932 = vmatprep.subr.mxu0 0.0
    %3933 = vmatpush1.msra.mxu0 0.0
    %3934 = vmatprep.mubr.f32.mxu0 0.0
    %3935 = vmatmul.mubr.f32.gmra.mrb[0].mxu0 %v3868
    %v3936 = vpop.f32.mrb[0].mxu0
    %v3937 = vadd.f32 0.0, %v3936
    %v3938 = vpop.f32.mrb[0].mxu0
    %3939 = vdwg.mxu0
    %v3940 = vadd.f32 %v3862, %v3937
    %v3941 = vxor.u32 %v3940, 2147483648
    %v3942 = vmul.f32 %v3941, 1.442695
    %v3943 = vpow.pop %v3942
    %v3944 = vadd.f32 %v3943, 1.0
    %v3945 = vrcp.pop %v3944
    %v3946 = vmul.f32 1.0, %v3945
    %v3947 = vtanh.pop %v3940
    %v3948 = vmul.f32 %v3946, %v3611
    %3950 = vrot.lane.b32.xlu0 %v3947, 64
    %v3951 = vpop.permute.xlu0 %3950
    %v3953 = vmul.f32 %v3946, %v3951
    %3955 = vrot.lane.b32.xlu0 %v3953, 32
    %v3956 = vpop.permute.xlu0 %3955
    %v3958 = vadd.f32 %v3948, %v3956
    %v3959 = vtanh.pop %v3958
    %3961 = vrot.lane.b32.xlu0 %v3959, 64
    %v3962 = vpop.permute.xlu0 %3961
    %v3964 = vmul.f32 %v3946, %v3962
    %3965 = vmatprep.subr.mxu0 0.0
    %3966 = vmatpush1.msra.mxu0 %v306
    %3967 = vmatprep.subr.mxu0 0.0
    %3968 = vmatpush1.msra.mxu0 %v307
    %3969 = vmatprep.subr.mxu0 0.0
    %3970 = vmatpush1.msra.mxu0 %v308
    %3971 = vmatprep.subr.mxu0 0.0
    %3972 = vmatpush1.msra.mxu0 %v309
    %3973 = vmatprep.subr.mxu0 0.0
    %3974 = vmatpush1.msra.mxu0 0.0
    %3975 = vmatprep.subr.mxu0 0.0
    %3976 = vmatpush1.msra.mxu0 0.0
    %3977 = vmatprep.subr.mxu0 0.0
    %3978 = vmatpush1.msra.mxu0 0.0
    %3979 = vmatprep.subr.mxu0 0.0
    %3980 = vmatpush1.msra.mxu0 0.0
    %3981 = vmatprep.subr.mxu0 0.0
    %3982 = vmatpush1.msra.mxu0 0.0
    %3983 = vmatprep.subr.mxu0 0.0
    %3984 = vmatpush1.msra.mxu0 0.0
    %3985 = vmatprep.subr.mxu0 0.0
    %3986 = vmatpush1.msra.mxu0 0.0
    %3987 = vmatprep.subr.mxu0 0.0
    %3988 = vmatpush1.msra.mxu0 0.0
    %3989 = vmatprep.subr.mxu0 0.0
    %3990 = vmatpush1.msra.mxu0 0.0
    %3991 = vmatprep.subr.mxu0 0.0
    %3992 = vmatpush1.msra.mxu0 0.0
    %3993 = vmatprep.subr.mxu0 0.0
    %3994 = vmatpush1.msra.mxu0 0.0
    %3995 = vmatprep.subr.mxu0 0.0
    %3996 = vmatpush1.msra.mxu0 0.0
    %3997 = vmatprep.subr.mxu0 0.0
    %3998 = vmatpush1.msra.mxu0 0.0
    %3999 = vmatprep.subr.mxu0 0.0
    %4000 = vmatpush1.msra.mxu0 0.0
    %4001 = vmatprep.subr.mxu0 0.0
    %4002 = vmatpush1.msra.mxu0 0.0
    %4003 = vmatprep.subr.mxu0 0.0
    %4004 = vmatpush1.msra.mxu0 0.0
    %4005 = vmatprep.subr.mxu0 0.0
    %4006 = vmatpush1.msra.mxu0 0.0
    %4007 = vmatprep.subr.mxu0 0.0
    %4008 = vmatpush1.msra.mxu0 0.0
    %4009 = vmatprep.subr.mxu0 0.0
    %4010 = vmatpush1.msra.mxu0 0.0
    %4011 = vmatprep.subr.mxu0 0.0
    %4012 = vmatpush1.msra.mxu0 0.0
    %4013 = vmatprep.subr.mxu0 0.0
    %4014 = vmatpush1.msra.mxu0 0.0
    %4015 = vmatprep.subr.mxu0 0.0
    %4016 = vmatpush1.msra.mxu0 0.0
    %4017 = vmatprep.subr.mxu0 0.0
    %4018 = vmatpush1.msra.mxu0 0.0
    %4019 = vmatprep.subr.mxu0 0.0
    %4020 = vmatpush1.msra.mxu0 0.0
    %4021 = vmatprep.subr.mxu0 0.0
    %4022 = vmatpush1.msra.mxu0 0.0
    %4023 = vmatprep.subr.mxu0 0.0
    %4024 = vmatpush1.msra.mxu0 0.0
    %4025 = vmatprep.subr.mxu0 0.0
    %4026 = vmatpush1.msra.mxu0 0.0
    %4027 = vmatprep.subr.mxu0 0.0
    %4028 = vmatpush1.msra.mxu0 0.0
    %4029 = vmatprep.mubr.f32.mxu0 0.0
    %4030 = vmatmul.mubr.f32.gmra.mrb[0].mxu0 %v3868
    %v4031 = vpop.f32.mrb[0].mxu0
    %v4032 = vadd.f32 %v324, %v4031
    %v4033 = vpop.f32.mrb[0].mxu0
    %4034 = vdwg.mxu0
    %v4035 = vsel %vm42, %v3787, 0
    %4037 = vmatprep.subr.mxu0 0.0
    %4038 = vmatpush1.msra.mxu0 %v296
    %4039 = vmatprep.subr.mxu0 0.0
    %4040 = vmatpush1.msra.mxu0 %v297
    %4041 = vmatprep.subr.mxu0 0.0
    %4042 = vmatpush1.msra.mxu0 %v298
    %4043 = vmatprep.subr.mxu0 0.0
    %4044 = vmatpush1.msra.mxu0 %v299
    %4045 = vmatprep.subr.mxu0 0.0
    %4046 = vmatpush1.msra.mxu0 0.0
    %4047 = vmatprep.subr.mxu0 0.0
    %4048 = vmatpush1.msra.mxu0 0.0
    %4049 = vmatprep.subr.mxu0 0.0
    %4050 = vmatpush1.msra.mxu0 0.0
    %4051 = vmatprep.subr.mxu0 0.0
    %4052 = vmatpush1.msra.mxu0 0.0
    %4053 = vmatprep.subr.mxu0 0.0
    %4054 = vmatpush1.msra.mxu0 0.0
    %4055 = vmatprep.subr.mxu0 0.0
    %4056 = vmatpush1.msra.mxu0 0.0
    %4057 = vmatprep.subr.mxu0 0.0
    %4058 = vmatpush1.msra.mxu0 0.0
    %4059 = vmatprep.subr.mxu0 0.0
    %4060 = vmatpush1.msra.mxu0 0.0
    %4061 = vmatprep.subr.mxu0 0.0
    %4062 = vmatpush1.msra.mxu0 0.0
    %4063 = vmatprep.subr.mxu0 0.0
    %4064 = vmatpush1.msra.mxu0 0.0
    %4065 = vmatprep.subr.mxu0 0.0
    %4066 = vmatpush1.msra.mxu0 0.0
    %4067 = vmatprep.subr.mxu0 0.0
    %4068 = vmatpush1.msra.mxu0 0.0
    %4069 = vmatprep.subr.mxu0 0.0
    %4070 = vmatpush1.msra.mxu0 0.0
    %4071 = vmatprep.subr.mxu0 0.0
    %4072 = vmatpush1.msra.mxu0 0.0
    %4073 = vmatprep.subr.mxu0 0.0
    %4074 = vmatpush1.msra.mxu0 0.0
    %4075 = vmatprep.subr.mxu0 0.0
    %4076 = vmatpush1.msra.mxu0 0.0
    %4077 = vmatprep.subr.mxu0 0.0
    %4078 = vmatpush1.msra.mxu0 0.0
    %4079 = vmatprep.subr.mxu0 0.0
    %4080 = vmatpush1.msra.mxu0 0.0
    %4081 = vmatprep.subr.mxu0 0.0
    %4082 = vmatpush1.msra.mxu0 0.0
    %4083 = vmatprep.subr.mxu0 0.0
    %4084 = vmatpush1.msra.mxu0 0.0
    %4085 = vmatprep.subr.mxu0 0.0
    %4086 = vmatpush1.msra.mxu0 0.0
    %4087 = vmatprep.subr.mxu0 0.0
    %4088 = vmatpush1.msra.mxu0 0.0
    %4089 = vmatprep.subr.mxu0 0.0
    %4090 = vmatpush1.msra.mxu0 0.0
    %4091 = vmatprep.subr.mxu0 0.0
    %4092 = vmatpush1.msra.mxu0 0.0
    %4093 = vmatprep.subr.mxu0 0.0
    %4094 = vmatpush1.msra.mxu0 0.0
    %4095 = vmatprep.subr.mxu0 0.0
    %4096 = vmatpush1.msra.mxu0 0.0
    %4097 = vmatprep.subr.mxu0 0.0
    %4098 = vmatpush1.msra.mxu0 0.0
    %4099 = vmatprep.subr.mxu0 0.0
    %4100 = vmatpush1.msra.mxu0 0.0
    %4101 = vmatprep.mubr.f32.mxu0 0.0
    %4102 = vmatmul.mubr.f32.gmra.mrb[0].mxu0 %v4035
    %v4103 = vpop.f32.mrb[0].mxu0
    %v4104 = vadd.f32 0.0, %v4103
    %v4105 = vpop.f32.mrb[0].mxu0
    %4106 = vdwg.mxu0
    %v4107 = vadd.f32 %v4032, %v4104
    %v4108 = vxor.u32 %v4107, 2147483648
    %v4109 = vmul.f32 %v4108, 1.442695
    %v4110 = vpow.pop %v4109
    %v4111 = vadd.f32 %v4110, 1.0
    %v4112 = vrcp.pop %v4111
    %v4113 = vmul.f32 1.0, %v4112
    %v4114 = vtanh.pop %v4107
    %v4115 = vmul.f32 %v4113, %v3778
    %4117 = vrot.lane.b32.xlu0 %v4114, 64
    %v4118 = vpop.permute.xlu0 %4117
    %v4120 = vmul.f32 %v4113, %v4118
    %4122 = vrot.lane.b32.xlu0 %v4120, 32
    %v4123 = vpop.permute.xlu0 %4122
    %v4125 = vadd.f32 %v4115, %v4123
    %v4126 = vtanh.pop %v4125
    %4128 = vrot.lane.b32.xlu0 %v4126, 64
    %v4129 = vpop.permute.xlu0 %4128
    %v4131 = vmul.f32 %v4113, %v4129
    %4133 = vrot.lane.b32.xlu0 %v4131, 32
    %v4134 = vpop.permute.xlu0 %4133
    %4136 = vst.msk [vmem:[#allocation4 + $0x38] sm:$0xff] %vm42, %v4134
    %4138 = vrot.lane.b32.xlu0 %v3964, 32
    %v4139 = vpop.permute.xlu0 %4138
    %v4140 = vsel %vm42, %v4139, 0
    %4142 = vmatprep.subr.mxu0 0.0
    %4143 = vmatpush1.msra.mxu0 %v306
    %4144 = vmatprep.subr.mxu0 0.0
    %4145 = vmatpush1.msra.mxu0 %v307
    %4146 = vmatprep.subr.mxu0 0.0
    %4147 = vmatpush1.msra.mxu0 %v308
    %4148 = vmatprep.subr.mxu0 0.0
    %4149 = vmatpush1.msra.mxu0 %v309
    %4150 = vmatprep.subr.mxu0 0.0
    %4151 = vmatpush1.msra.mxu0 0.0
    %4152 = vmatprep.subr.mxu0 0.0
    %4153 = vmatpush1.msra.mxu0 0.0
    %4154 = vmatprep.subr.mxu0 0.0
    %4155 = vmatpush1.msra.mxu0 0.0
    %4156 = vmatprep.subr.mxu0 0.0
    %4157 = vmatpush1.msra.mxu0 0.0
    %4158 = vmatprep.subr.mxu0 0.0
    %4159 = vmatpush1.msra.mxu0 0.0
    %4160 = vmatprep.subr.mxu0 0.0
    %4161 = vmatpush1.msra.mxu0 0.0
    %4162 = vmatprep.subr.mxu0 0.0
    %4163 = vmatpush1.msra.mxu0 0.0
    %4164 = vmatprep.subr.mxu0 0.0
    %4165 = vmatpush1.msra.mxu0 0.0
    %4166 = vmatprep.subr.mxu0 0.0
    %4167 = vmatpush1.msra.mxu0 0.0
    %4168 = vmatprep.subr.mxu0 0.0
    %4169 = vmatpush1.msra.mxu0 0.0
    %4170 = vmatprep.subr.mxu0 0.0
    %4171 = vmatpush1.msra.mxu0 0.0
    %4172 = vmatprep.subr.mxu0 0.0
    %4173 = vmatpush1.msra.mxu0 0.0
    %4174 = vmatprep.subr.mxu0 0.0
    %4175 = vmatpush1.msra.mxu0 0.0
    %4176 = vmatprep.subr.mxu0 0.0
    %4177 = vmatpush1.msra.mxu0 0.0
    %4178 = vmatprep.subr.mxu0 0.0
    %4179 = vmatpush1.msra.mxu0 0.0
    %4180 = vmatprep.subr.mxu0 0.0
    %4181 = vmatpush1.msra.mxu0 0.0
    %4182 = vmatprep.subr.mxu0 0.0
    %4183 = vmatpush1.msra.mxu0 0.0
    %4184 = vmatprep.subr.mxu0 0.0
    %4185 = vmatpush1.msra.mxu0 0.0
    %4186 = vmatprep.subr.mxu0 0.0
    %4187 = vmatpush1.msra.mxu0 0.0
    %4188 = vmatprep.subr.mxu0 0.0
    %4189 = vmatpush1.msra.mxu0 0.0
    %4190 = vmatprep.subr.mxu0 0.0
    %4191 = vmatpush1.msra.mxu0 0.0
    %4192 = vmatprep.subr.mxu0 0.0
    %4193 = vmatpush1.msra.mxu0 0.0
    %4194 = vmatprep.subr.mxu0 0.0
    %4195 = vmatpush1.msra.mxu0 0.0
    %4196 = vmatprep.subr.mxu0 0.0
    %4197 = vmatpush1.msra.mxu0 0.0
    %4198 = vmatprep.subr.mxu0 0.0
    %4199 = vmatpush1.msra.mxu0 0.0
    %4200 = vmatprep.subr.mxu0 0.0
    %4201 = vmatpush1.msra.mxu0 0.0
    %4202 = vmatprep.subr.mxu0 0.0
    %4203 = vmatpush1.msra.mxu0 0.0
    %4204 = vmatprep.subr.mxu0 0.0
    %4205 = vmatpush1.msra.mxu0 0.0
    %4206 = vmatprep.mubr.f32.mxu0 0.0
    %4207 = vmatmul.mubr.f32.gmra.mrb[0].mxu0 %v4140
    %v4208 = vpop.f32.mrb[0].mxu0
    %v4209 = vadd.f32 %v324, %v4208
    %v4210 = vpop.f32.mrb[0].mxu0
    %4211 = vdwg.mxu0
    %v4212 = vsel %vm42, %v4134, 0
    %4214 = vmatprep.subr.mxu0 0.0
    %4215 = vmatpush1.msra.mxu0 %v296
    %4216 = vmatprep.subr.mxu0 0.0
    %4217 = vmatpush1.msra.mxu0 %v297
    %4218 = vmatprep.subr.mxu0 0.0
    %4219 = vmatpush1.msra.mxu0 %v298
    %4220 = vmatprep.subr.mxu0 0.0
    %4221 = vmatpush1.msra.mxu0 %v299
    %4222 = vmatprep.subr.mxu0 0.0
    %4223 = vmatpush1.msra.mxu0 0.0
    %4224 = vmatprep.subr.mxu0 0.0
    %4225 = vmatpush1.msra.mxu0 0.0
    %4226 = vmatprep.subr.mxu0 0.0
    %4227 = vmatpush1.msra.mxu0 0.0
    %4228 = vmatprep.subr.mxu0 0.0
    %4229 = vmatpush1.msra.mxu0 0.0
    %4230 = vmatprep.subr.mxu0 0.0
    %4231 = vmatpush1.msra.mxu0 0.0
    %4232 = vmatprep.subr.mxu0 0.0
    %4233 = vmatpush1.msra.mxu0 0.0
    %4234 = vmatprep.subr.mxu0 0.0
    %4235 = vmatpush1.msra.mxu0 0.0
    %4236 = vmatprep.subr.mxu0 0.0
    %4237 = vmatpush1.msra.mxu0 0.0
    %4238 = vmatprep.subr.mxu0 0.0
    %4239 = vmatpush1.msra.mxu0 0.0
    %4240 = vmatprep.subr.mxu0 0.0
    %4241 = vmatpush1.msra.mxu0 0.0
    %4242 = vmatprep.subr.mxu0 0.0
    %4243 = vmatpush1.msra.mxu0 0.0
    %4244 = vmatprep.subr.mxu0 0.0
    %4245 = vmatpush1.msra.mxu0 0.0
    %4246 = vmatprep.subr.mxu0 0.0
    %4247 = vmatpush1.msra.mxu0 0.0
    %4248 = vmatprep.subr.mxu0 0.0
    %4249 = vmatpush1.msra.mxu0 0.0
    %4250 = vmatprep.subr.mxu0 0.0
    %4251 = vmatpush1.msra.mxu0 0.0
    %4252 = vmatprep.subr.mxu0 0.0
    %4253 = vmatpush1.msra.mxu0 0.0
    %4254 = vmatprep.subr.mxu0 0.0
    %4255 = vmatpush1.msra.mxu0 0.0
    %4256 = vmatprep.subr.mxu0 0.0
    %4257 = vmatpush1.msra.mxu0 0.0
    %4258 = vmatprep.subr.mxu0 0.0
    %4259 = vmatpush1.msra.mxu0 0.0
    %4260 = vmatprep.subr.mxu0 0.0
    %4261 = vmatpush1.msra.mxu0 0.0
    %4262 = vmatprep.subr.mxu0 0.0
    %4263 = vmatpush1.msra.mxu0 0.0
    %4264 = vmatprep.subr.mxu0 0.0
    %4265 = vmatpush1.msra.mxu0 0.0
    %4266 = vmatprep.subr.mxu0 0.0
    %4267 = vmatpush1.msra.mxu0 0.0
    %4268 = vmatprep.subr.mxu0 0.0
    %4269 = vmatpush1.msra.mxu0 0.0
    %4270 = vmatprep.subr.mxu0 0.0
    %4271 = vmatpush1.msra.mxu0 0.0
    %4272 = vmatprep.subr.mxu0 0.0
    %4273 = vmatpush1.msra.mxu0 0.0
    %4274 = vmatprep.subr.mxu0 0.0
    %4275 = vmatpush1.msra.mxu0 0.0
    %4276 = vmatprep.subr.mxu0 0.0
    %4277 = vmatpush1.msra.mxu0 0.0
    %4278 = vmatprep.mubr.f32.mxu0 0.0
    %4279 = vmatmul.mubr.f32.gmra.mrb[0].mxu0 %v4212
    %v4280 = vpop.f32.mrb[0].mxu0
    %v4281 = vadd.f32 0.0, %v4280
    %v4282 = vpop.f32.mrb[0].mxu0
    %4283 = vdwg.mxu0
    %v4284 = vadd.f32 %v4209, %v4281
    %v4285 = vxor.u32 %v4284, 2147483648
    %v4286 = vmul.f32 %v4285, 1.442695
    %v4287 = vpow.pop %v4286
    %v4288 = vadd.f32 %v4287, 1.0
    %v4289 = vrcp.pop %v4288
    %v4290 = vmul.f32 1.0, %v4289
    %v4291 = vtanh.pop %v4284
    %v4292 = vmul.f32 %v4290, %v4125
    %4294 = vrot.lane.b32.xlu0 %v4291, 64
    %v4295 = vpop.permute.xlu0 %4294
    %v4297 = vmul.f32 %v4290, %v4295
    %4299 = vrot.lane.b32.xlu0 %v4297, 32
    %v4300 = vpop.permute.xlu0 %4299
    %v4302 = vadd.f32 %v4292, %v4300
    %v4303 = vtanh.pop %v4302
    %4305 = vrot.lane.b32.xlu0 %v4303, 64
    %v4306 = vpop.permute.xlu0 %4305
    %v4308 = vmul.f32 %v4290, %v4306
    %4310 = vrot.lane.b32.xlu0 %v4308, 32
    %v4311 = vpop.permute.xlu0 %4310
    %4313 = vst.msk [vmem:[#allocation4 + $0x40] sm:$0xff] %vm42, %v4311
    %v4314 = vld [vmem:[#allocation4] sm:$0xff]
    %v4315 = vld [vmem:[#allocation4 + $0x8] sm:$0xff]
    %v4316 = vld [vmem:[#allocation4 + $0x10] sm:$0xff]
    %v4317 = vld [vmem:[#allocation4 + $0x18] sm:$0xff]
    %v4318 = vld [vmem:[#allocation4 + $0x20] sm:$0xff]
    %v4319 = vld [vmem:[#allocation4 + $0x28] sm:$0xff]
    %v4320 = vld [vmem:[#allocation4 + $0x30] sm:$0xff]
    %v4321 = vld [vmem:[#allocation4 + $0x38] sm:$0xff]
    %v4322 = vld [vmem:[#allocation4 + $0x40] sm:$0xff]
    %v4323 = vld [vmem:[%s6] sm:$0xff]
    %v4324 = vld [vmem:[%s6 + $0x8] sm:$0xff]
    %v4325 = vld [vmem:[%s6 + $0x10] sm:$0xff]
    %v4326 = vld [vmem:[%s6 + $0x18] sm:$0xff]
    %v4327 = vld [vmem:[%s7] sm:$0x1]
    %v4329 = vlaneseq
    %v4330 = vshrl.u32 %v4329, 7
    %v4331 = vsub.s32 0, %v4330
    %v4332 = vrot.slane %v4327, %v4331
    %v4335 = vsel %vm42, %v4314, 0
    %v4338 = vsel %vm42, %v4315, 0
    %v4341 = vsel %vm42, %v4316, 0
    %v4344 = vsel %vm42, %v4317, 0
    %v4347 = vsel %vm42, %v4318, 0
    %v4350 = vsel %vm42, %v4319, 0
    %v4353 = vsel %vm42, %v4320, 0
    %v4356 = vsel %vm42, %v4321, 0
    %v4359 = vsel %vm42, %v4322, 0
    %4361 = vmatprep.subr.mxu0 0.0
    %4362 = vmatpush1.msra.mxu0 %v4323
    %4363 = vmatprep.subr.mxu0 0.0
    %4364 = vmatpush1.msra.mxu0 %v4324
    %4365 = vmatprep.subr.mxu0 0.0
    %4366 = vmatpush1.msra.mxu0 %v4325
    %4367 = vmatprep.subr.mxu0 0.0
    %4368 = vmatpush1.msra.mxu0 %v4326
    %4369 = vmatprep.subr.mxu0 0.0
    %4370 = vmatpush1.msra.mxu0 0.0
    %4371 = vmatprep.subr.mxu0 0.0
    %4372 = vmatpush1.msra.mxu0 0.0
    %4373 = vmatprep.subr.mxu0 0.0
    %4374 = vmatpush1.msra.mxu0 0.0
    %4375 = vmatprep.subr.mxu0 0.0
    %4376 = vmatpush1.msra.mxu0 0.0
    %4377 = vmatprep.subr.mxu0 0.0
    %4378 = vmatpush1.msra.mxu0 0.0
    %4379 = vmatprep.subr.mxu0 0.0
    %4380 = vmatpush1.msra.mxu0 0.0
    %4381 = vmatprep.subr.mxu0 0.0
    %4382 = vmatpush1.msra.mxu0 0.0
    %4383 = vmatprep.subr.mxu0 0.0
    %4384 = vmatpush1.msra.mxu0 0.0
    %4385 = vmatprep.subr.mxu0 0.0
    %4386 = vmatpush1.msra.mxu0 0.0
    %4387 = vmatprep.subr.mxu0 0.0
    %4388 = vmatpush1.msra.mxu0 0.0
    %4389 = vmatprep.subr.mxu0 0.0
    %4390 = vmatpush1.msra.mxu0 0.0
    %4391 = vmatprep.subr.mxu0 0.0
    %4392 = vmatpush1.msra.mxu0 0.0
    %4393 = vmatprep.subr.mxu0 0.0
    %4394 = vmatpush1.msra.mxu0 0.0
    %4395 = vmatprep.subr.mxu0 0.0
    %4396 = vmatpush1.msra.mxu0 0.0
    %4397 = vmatprep.subr.mxu0 0.0
    %4398 = vmatpush1.msra.mxu0 0.0
    %4399 = vmatprep.subr.mxu0 0.0
    %4400 = vmatpush1.msra.mxu0 0.0
    %4401 = vmatprep.subr.mxu0 0.0
    %4402 = vmatpush1.msra.mxu0 0.0
    %4403 = vmatprep.subr.mxu0 0.0
    %4404 = vmatpush1.msra.mxu0 0.0
    %4405 = vmatprep.subr.mxu0 0.0
    %4406 = vmatpush1.msra.mxu0 0.0
    %4407 = vmatprep.subr.mxu0 0.0
    %4408 = vmatpush1.msra.mxu0 0.0
    %4409 = vmatprep.subr.mxu0 0.0
    %4410 = vmatpush1.msra.mxu0 0.0
    %4411 = vmatprep.subr.mxu0 0.0
    %4412 = vmatpush1.msra.mxu0 0.0
    %4413 = vmatprep.subr.mxu0 0.0
    %4414 = vmatpush1.msra.mxu0 0.0
    %4415 = vmatprep.subr.mxu0 0.0
    %4416 = vmatpush1.msra.mxu0 0.0
    %4417 = vmatprep.subr.mxu0 0.0
    %4418 = vmatpush1.msra.mxu0 0.0
    %4419 = vmatprep.subr.mxu0 0.0
    %4420 = vmatpush1.msra.mxu0 0.0
    %4421 = vmatprep.subr.mxu0 0.0
    %4422 = vmatpush1.msra.mxu0 0.0
    %4423 = vmatprep.subr.mxu0 0.0
    %4424 = vmatpush1.msra.mxu0 0.0
    %4425 = vmatprep.mubr.f32.mxu0 0.0
    %4426 = vmatmul.mubr.f32.gmra.mrb[0].mxu0 %v4335
    %v4427 = vpop.f32.mrb[0].mxu0
    %v4428 = vadd.f32 %v4332, %v4427
    %v4429 = vpop.f32.mrb[0].mxu0
    %4430 = vmatprep.mubr.f32.mxu0 0.0
    %4431 = vmatmul.mubr.f32.gmra.mrb[0].mxu0 %v4338
    %v4432 = vpop.f32.mrb[0].mxu0
    %v4433 = vadd.f32 %v4332, %v4432
    %v4434 = vpop.f32.mrb[0].mxu0
    %4435 = vmatprep.mubr.f32.mxu0 0.0
    %4436 = vmatmul.mubr.f32.gmra.mrb[0].mxu0 %v4341
    %v4437 = vpop.f32.mrb[0].mxu0
    %v4438 = vadd.f32 %v4332, %v4437
    %v4439 = vpop.f32.mrb[0].mxu0
    %4440 = vmatprep.mubr.f32.mxu0 0.0
    %4441 = vmatmul.mubr.f32.gmra.mrb[0].mxu0 %v4344
    %v4442 = vpop.f32.mrb[0].mxu0
    %v4443 = vadd.f32 %v4332, %v4442
    %v4444 = vpop.f32.mrb[0].mxu0
    %4445 = vmatprep.mubr.f32.mxu0 0.0
    %4446 = vmatmul.mubr.f32.gmra.mrb[0].mxu0 %v4347
    %v4447 = vpop.f32.mrb[0].mxu0
    %v4448 = vadd.f32 %v4332, %v4447
    %v4449 = vpop.f32.mrb[0].mxu0
    %4450 = vmatprep.mubr.f32.mxu0 0.0
    %4451 = vmatmul.mubr.f32.gmra.mrb[0].mxu0 %v4350
    %v4452 = vpop.f32.mrb[0].mxu0
    %v4453 = vadd.f32 %v4332, %v4452
    %v4454 = vpop.f32.mrb[0].mxu0
    %4455 = vmatprep.mubr.f32.mxu0 0.0
    %4456 = vmatmul.mubr.f32.gmra.mrb[0].mxu0 %v4353
    %v4457 = vpop.f32.mrb[0].mxu0
    %v4458 = vadd.f32 %v4332, %v4457
    %v4459 = vpop.f32.mrb[0].mxu0
    %4460 = vmatprep.mubr.f32.mxu0 0.0
    %4461 = vmatmul.mubr.f32.gmra.mrb[0].mxu0 %v4356
    %v4462 = vpop.f32.mrb[0].mxu0
    %v4463 = vadd.f32 %v4332, %v4462
    %v4464 = vpop.f32.mrb[0].mxu0
    %4465 = vmatprep.mubr.f32.mxu0 0.0
    %4466 = vmatmul.mubr.f32.gmra.mrb[0].mxu0 %v4359
    %v4467 = vpop.f32.mrb[0].mxu0
    %v4468 = vadd.f32 %v4332, %v4467
    %v4469 = vpop.f32.mrb[0].mxu0
    %4470 = vdwg.mxu0
    %4471 = vst [vmem:[%s8] sm:$0xff] %v4428
    %4472 = vst [vmem:[%s8 + $0x8] sm:$0xff] %v4433
    %4473 = vst [vmem:[%s8 + $0x10] sm:$0xff] %v4438
    %4474 = vst [vmem:[%s8 + $0x18] sm:$0xff] %v4443
    %4475 = vst [vmem:[%s8 + $0x20] sm:$0xff] %v4448
    %4476 = vst [vmem:[%s8 + $0x28] sm:$0xff] %v4453
    %4477 = vst [vmem:[%s8 + $0x30] sm:$0xff] %v4458
    %4478 = vst [vmem:[%s8 + $0x38] sm:$0xff] %v4463
    %4479 = vst [vmem:[%s8 + $0x40] sm:$0xff] %v4468
    // Predicated region
    $region38: #{_lstm_decoder_forward.1} parent=1 // pred_check
      _
    $region39: #{_lstm_decoder_forward.1} parent=1 // pred_check_branch
      %4481 = sbr.rel (0) target = $region41
    $region40: #{_lstm_decoder_forward.1} parent=1 // pred_region
      _
    $region41: #{_lstm_decoder_forward.1} parent=1 // pred_fallthru
      _
    // Predicated region
    $region42: #{_lstm_decoder_forward.1} parent=1 // pred_check
      _
    $region43: #{_lstm_decoder_forward.1} parent=1 // pred_check_branch
      %4483 = sbr.rel (0) target = $region45
    $region44: #{_lstm_decoder_forward.1} parent=1 // pred_region
      _
    $region45: #{_lstm_decoder_forward.1} parent=1 // pred_fallthru
      _
    %4484 = vsyncpa [#allocation6], 1

</llo_original>
